<compile_context>
chip_gen: v7x
topology: tpu7x:2x2x1
jax: 0.10.0
libtpu: 0.0.40
codegen_flags: <defaults>
</compile_context>

<pallas_src>
import jax
import jax.numpy as jnp
from jax import lax
from jax.experimental import pallas as pl
from jax.experimental.pallas import tpu as pltpu


def _round_up(x, m):
    return ((x + m - 1) // m) * m


def _fast_sigmoid(x):
    # sigmoid(x) == 0.5 * tanh(0.5 * x) + 0.5  -> single EUP transcendental per gate.
    return 0.5 * jnp.tanh(0.5 * x) + 0.5


def decoder_lstm_kernel(ids_ref, emb_hbm, h0_ref, c0_ref,
                        wih_ref, whh_ref, bias_ref,
                        wcls_ref, bcls_ref,
                        out_ref, ht_ref, ct_ref,
                        emb_buf, dma_sem, whh_f32):
    T, DP = emb_buf.shape
    HP = h0_ref.shape[1]                      # lane-padded hidden size (multiple of 128)

    # ---- In-kernel embedding gather: token ids live in SMEM, table in HBM.
    # Issue all row DMAs up front; they overlap with the w_hh upcast below.
    copies = []
    for t in range(T):
        cp = pltpu.make_async_copy(emb_hbm.at[ids_ref[t]], emb_buf.at[t],
                                   dma_sem.at[t])
        cp.start()
        copies.append(cp)

    # ---- One-time bf16 -> f32 upcast of the recurrent weight into VMEM scratch.
    # HBM traffic stays bf16; per-step dots read the VMEM ref (no 64-vreg live range).
    whh_f32[...] = whh_ref[...].astype(jnp.float32)

    for cp in copies:
        cp.wait()

    # ---- Hoisted input projection: one (T, DP) @ (DP, 4*HP) MXU matmul + bias,
    # removed from the serial per-step dependent chain.
    x_proj = jnp.dot(emb_buf[...], wih_ref[...].astype(jnp.float32),
                     preferred_element_type=jnp.float32) + bias_ref[...]    # (T, 4*HP)

    # Padded lanes of h/c start at zero and provably stay zero (padded weight
    # columns/rows and bias entries are zero -> padded gates pre-acts are 0, so
    # c_pad = 0.5*0 + 0.5*tanh(0) = 0 and h_pad = 0.5*tanh(0) = 0).
    h = h0_ref[...]                           # (1, HP)
    c = c0_ref[...]                           # (1, HP)
    hs = []
    # Fully unrolled static recurrence (T is small): only the (1,HP)@(HP,4*HP)
    # dot and the gate nonlinearities remain on the critical path per step.
    for t in range(T):
        gates = x_proj[t:t + 1, :] + jnp.dot(
            h, whh_f32[...], preferred_element_type=jnp.float32)            # (1, 4*HP)
        i_g = _fast_sigmoid(gates[:, 0 * HP:1 * HP])     # 128-lane aligned slices
        f_g = _fast_sigmoid(gates[:, 1 * HP:2 * HP])
        g_g = jnp.tanh(gates[:, 2 * HP:3 * HP])
        o_g = _fast_sigmoid(gates[:, 3 * HP:4 * HP])
        c = f_g * c + i_g * g_g
        h = o_g * jnp.tanh(c)
        hs.append(h)

    ht_ref[...] = h
    ct_ref[...] = c

    # Classifier + log_softmax over the (lane-padded) vocab axis. Padded vocab
    # columns carry a -1e30 bias -> exp() underflows to 0; wrapper slices them off.
    hs_all = jnp.concatenate(hs, axis=0)                                    # (T, HP)
    logits = jnp.dot(hs_all, wcls_ref[...].astype(jnp.float32),
                     preferred_element_type=jnp.float32) + bcls_ref[...]    # (T, VP)
    m = jnp.max(logits, axis=1, keepdims=True)
    z = logits - m
    lse = jnp.log(jnp.sum(jnp.exp(z), axis=1, keepdims=True))
    out_ref[...] = z - lse


def prepare_decoder_params(params):
    """One-time parameter packing: lane-align, pre-sum biases, cast weights to bf16."""
    D = params['w_ih'].shape[0]
    H = params['w_hh'].shape[0]
    V = params['w_cls'].shape[1]
    DP, HP, VP = _round_up(D, 128), _round_up(H, 128), _round_up(V, 128)
    NEG = jnp.float32(-1e30)

    def pad_gate_cols(w, rows_to):            # (rows, 4H) -> (rows_to, 4*HP), zero padded
        rows = w.shape[0]
        w4 = w.astype(jnp.float32).reshape(rows, 4, H)
        out = jnp.zeros((rows_to, 4, HP), jnp.float32).at[:rows, :, :H].set(w4)
        return out.reshape(rows_to, 4 * HP)

    emb_p = jnp.zeros((params['embedding'].shape[0], DP), jnp.float32)
    emb_p = emb_p.at[:, :D].set(params['embedding'].astype(jnp.float32))    # stays f32 (rows are DMA'd)
    wih_p = pad_gate_cols(params['w_ih'], DP).astype(jnp.bfloat16)          # (DP, 4*HP) bf16
    whh_p = pad_gate_cols(params['w_hh'], HP).astype(jnp.bfloat16)          # (HP, 4*HP) bf16
    bias_p = pad_gate_cols(params['b_ih'] + params['b_hh'], 1)              # (1,  4*HP) f32
    wcls_p = jnp.zeros((HP, VP), jnp.float32).at[:H, :V].set(
        params['w_cls'].astype(jnp.float32)).astype(jnp.bfloat16)           # (HP, VP) bf16
    bcls_p = jnp.full((1, VP), NEG, jnp.float32).at[:, :V].set(params['b_cls'])

    prep = dict(emb_table=emb_p, w_ih=wih_p, w_hh=whh_p, bias=bias_p,
                w_cls=wcls_p, b_cls=bcls_p)
    dims = dict(D=D, H=H, V=V, DP=DP, HP=HP, VP=VP)
    return prep, dims


def make_decoder_forward(prep, dims):
    """Returns a jitted forward(token_ids, h0, c0) using the cached packed params."""
    H, V = dims['H'], dims['V']
    DP, HP, VP = dims['DP'], dims['HP'], dims['VP']

    @jax.jit
    def fwd(token_ids, h0, c0):
        # token_ids: (T,) int32; h0, c0: (1, 1, H) as in PyTorch (n_layers, batch, H)
        T = token_ids.shape[0]
        ids = token_ids.astype(jnp.int32)
        h0_p = jnp.zeros((1, HP), jnp.float32).at[:, :H].set(h0[0])
        c0_p = jnp.zeros((1, HP), jnp.float32).at[:, :H].set(c0[0])

        cost = pl.CostEstimate(
            flops=2 * T * DP * 4 * HP + 2 * T * HP * 4 * HP + 2 * T * HP * VP,
            transcendentals=T * (5 * HP + VP),
            bytes_accessed=(T * 4 + T * DP * 4 + 4 * (1 * HP * 4)
                            + DP * 4 * HP * 2 + HP * 4 * HP * 2 + 4 * HP * 4
                            + HP * VP * 2 + VP * 4 + T * VP * 4),
        )

        vmem = pl.BlockSpec(memory_space=pltpu.MemorySpace.VMEM)
        out_shapes = (jax.ShapeDtypeStruct((T, VP), jnp.float32),
                      jax.ShapeDtypeStruct((1, HP), jnp.float32),
                      jax.ShapeDtypeStruct((1, HP), jnp.float32))

        # Gridless single call: everything fits VMEM at these sizes, so no tiling/
        # pipeline is added (pure overhead for a serial T-step recurrence).
        log_probs_p, hT_p, cT_p = pl.pallas_call(
            decoder_lstm_kernel,
            out_shape=out_shapes,
            in_specs=[
                pl.BlockSpec(memory_space=pltpu.MemorySpace.SMEM),   # token ids
                pl.BlockSpec(memory_space=pl.ANY),                   # embedding table (HBM)
                vmem, vmem,                                          # h0, c0
                vmem, vmem, vmem,                                    # w_ih, w_hh, bias
                vmem, vmem,                                          # w_cls, b_cls
            ],
            out_specs=(vmem, vmem, vmem),
            scratch_shapes=[
                pltpu.VMEM((T, DP), jnp.float32),                    # gathered embedding rows
                pltpu.SemaphoreType.DMA((T,)),                       # one sem per row DMA
                pltpu.VMEM((HP, 4 * HP), jnp.float32),               # f32 copy of w_hh
            ],
            input_output_aliases={2: 1, 3: 2},                       # h0->hT, c0->cT buffers
            cost_estimate=cost,
        )(ids, prep['emb_table'], h0_p, c0_p,
          prep['w_ih'], prep['w_hh'], prep['bias'],
          prep['w_cls'], prep['b_cls'])

        log_probs = log_probs_p[:, :V]
        hT = hT_p[:, :H]
        cT = cT_p[:, :H]
        # hidden returned in PyTorch layout: (n_layers=1, batch=1, H)
        return log_probs, (hT[None], cT[None])

    return fwd


def reference_forward(params, inputs, h0, c0):
    """Pure-JAX reference for the same math (weights rounded to bf16 as stored by the kernel)."""
    rnd = lambda w: w.astype(jnp.bfloat16).astype(jnp.float32)
    emb = params['embedding'][inputs[0]].astype(jnp.float32)                # (T, D)
    H = params['w_hh'].shape[0]
    w_ih, w_hh, w_cls = rnd(params['w_ih']), rnd(params['w_hh']), rnd(params['w_cls'])
    bias = params['b_ih'] + params['b_hh']

    def step(carry, x_t):
        h, c = carry
        gates = x_t[None, :] @ w_ih + h @ w_hh + bias
        i_g = jax.nn.sigmoid(gates[:, 0:H])
        f_g = jax.nn.sigmoid(gates[:, H:2 * H])
        g_g = jnp.tanh(gates[:, 2 * H:3 * H])
        o_g = jax.nn.sigmoid(gates[:, 3 * H:4 * H])
        c = f_g * c + i_g * g_g
        h = o_g * jnp.tanh(c)
        return (h, c), h[0]

    (h_fin, c_fin), hs = lax.scan(step, (h0[0], c0[0]), emb)
    logits = hs @ w_cls + params['b_cls']
    log_probs = jax.nn.log_softmax(logits, axis=1)
    return log_probs, h_fin[None], c_fin[None]


if __name__ == "__main__":
    V, D, H, T = 64, 32, 32, 8          # vocab, input_dim, hidden_dim, seq_len (batch=1)
    key = jax.random.PRNGKey(0)
    ks = jax.random.split(key, 10)
    params = {
        'embedding': 0.1 * jax.random.normal(ks[0], (V, D), jnp.float32),
        'w_ih':      0.1 * jax.random.normal(ks[1], (D, 4 * H), jnp.float32),
        'w_hh':      0.1 * jax.random.normal(ks[2], (H, 4 * H), jnp.float32),
        'b_ih':      0.1 * jax.random.normal(ks[3], (1, 4 * H), jnp.float32),
        'b_hh':      0.1 * jax.random.normal(ks[4], (1, 4 * H), jnp.float32),
        'w_cls':     0.1 * jax.random.normal(ks[5], (H, V), jnp.float32),
        'b_cls':     0.1 * jax.random.normal(ks[6], (1, V), jnp.float32),
    }
    inputs = jax.random.randint(ks[7], (1, T), 0, V, jnp.int32)             # token ids
    h0 = 0.1 * jax.random.normal(ks[8], (1, 1, H), jnp.float32)             # decoder_state_vector
    c0 = 0.1 * jax.random.normal(ks[9], (1, 1, H), jnp.float32)             # decoder_context_vector

    # One-time parameter packing (padding + bf16 cast) -- cached, NOT per decode call.
    prep, dims = prepare_decoder_params(params)
    jax.block_until_ready(prep)
    fwd = make_decoder_forward(prep, dims)

    log_probs, (hT, cT) = fwd(inputs[0], h0, c0)
    jax.block_until_ready((log_probs, hT, cT))

    ref_lp, ref_h, ref_c = reference_forward(params, inputs, h0, c0)
    assert log_probs.shape == (T, V) and hT.shape == (1, 1, H) and cT.shape == (1, 1, H)
    assert jnp.allclose(log_probs, ref_lp, atol=1e-4, rtol=1e-4)
    assert jnp.allclose(hT, ref_h, atol=1e-4, rtol=1e-4)
    assert jnp.allclose(cT, ref_c, atol=1e-4, rtol=1e-4)

    print("KERNEL_OK")
</pallas_src>

<mosaic_0001>
module attributes {stable_mosaic.version = 11 : i64} {
  func.func @decoder_lstm_kernel(%arg0: memref<8xi32, #tpu.memory_space<smem>>, %arg1: memref<64x128xf32, #tpu.memory_space<any>>, %arg2: memref<1x128xf32, #tpu.memory_space<vmem>>, %arg3: memref<1x128xf32, #tpu.memory_space<vmem>>, %arg4: memref<128x512xbf16, #tpu.memory_space<vmem>>, %arg5: memref<128x512xbf16, #tpu.memory_space<vmem>>, %arg6: memref<1x512xf32, #tpu.memory_space<vmem>>, %arg7: memref<128x128xbf16, #tpu.memory_space<vmem>>, %arg8: memref<1x128xf32, #tpu.memory_space<vmem>>, %arg9: memref<8x128xf32, #tpu.memory_space<vmem>>, %arg10: memref<1x128xf32, #tpu.memory_space<vmem>>, %arg11: memref<1x128xf32, #tpu.memory_space<vmem>>, %arg12: memref<8x128xf32, #tpu.memory_space<vmem>>, %arg13: memref<8x!tpu.dma_semaphore, #tpu.memory_space<semaphore_mem>>, %arg14: memref<128x512xf32, #tpu.memory_space<vmem>>) attributes {dimension_semantics = [], scalar_prefetch = 0 : i64, scratch_operands = 3 : i64, tpu.core_type = #tpu.core_type<tc>} {
    %c0 = arith.constant 0 : index
    %0 = memref.load %arg0[%c0] : memref<8xi32, #tpu.memory_space<smem>>
    %c0_i32 = arith.constant 0 : i32
    %c0_i32_0 = arith.constant 0 : i32
    %c0_i32_1 = arith.constant 0 : i32
    %1 = tpu.memref_slice %arg1[%0, %c0_i32_1] : memref<64x128xf32, #tpu.memory_space<any>> -> memref<1x128xf32, #tpu.memory_space<any>>
    %2 = tpu.memref_squeeze %1 : memref<1x128xf32, #tpu.memory_space<any>> -> memref<128xf32, #tpu.memory_space<any>>
    %c0_i32_2 = arith.constant 0 : i32
    %3 = tpu.memref_slice %arg12[%c0_i32, %c0_i32_2] : memref<8x128xf32, #tpu.memory_space<vmem>> -> memref<1x128xf32, #tpu.memory_space<vmem>>
    %4 = tpu.memref_squeeze %3 : memref<1x128xf32, #tpu.memory_space<vmem>> -> memref<128xf32, #tpu.memory_space<vmem>>
    %5 = tpu.memref_slice %arg13[%c0_i32_0] : memref<8x!tpu.dma_semaphore, #tpu.memory_space<semaphore_mem>> -> memref<1x!tpu.dma_semaphore, #tpu.memory_space<semaphore_mem>>
    %6 = tpu.memref_squeeze %5 : memref<1x!tpu.dma_semaphore, #tpu.memory_space<semaphore_mem>> -> memref<!tpu.dma_semaphore, #tpu.memory_space<semaphore_mem>>
    tpu.enqueue_dma source(%2 : memref<128xf32, #tpu.memory_space<any>>) target(%4 : memref<128xf32, #tpu.memory_space<vmem>>) target_semaphore(%6 : memref<!tpu.dma_semaphore, #tpu.memory_space<semaphore_mem>>)
    %c1 = arith.constant 1 : index
    %7 = memref.load %arg0[%c1] : memref<8xi32, #tpu.memory_space<smem>>
    %c1_i32 = arith.constant 1 : i32
    %c1_i32_3 = arith.constant 1 : i32
    %c0_i32_4 = arith.constant 0 : i32
    %8 = tpu.memref_slice %arg1[%7, %c0_i32_4] : memref<64x128xf32, #tpu.memory_space<any>> -> memref<1x128xf32, #tpu.memory_space<any>>
    %9 = tpu.memref_squeeze %8 : memref<1x128xf32, #tpu.memory_space<any>> -> memref<128xf32, #tpu.memory_space<any>>
    %c0_i32_5 = arith.constant 0 : i32
    %10 = tpu.memref_slice %arg12[%c1_i32, %c0_i32_5] : memref<8x128xf32, #tpu.memory_space<vmem>> -> memref<1x128xf32, #tpu.memory_space<vmem>>
    %11 = tpu.memref_squeeze %10 : memref<1x128xf32, #tpu.memory_space<vmem>> -> memref<128xf32, #tpu.memory_space<vmem>>
    %12 = tpu.memref_slice %arg13[%c1_i32_3] : memref<8x!tpu.dma_semaphore, #tpu.memory_space<semaphore_mem>> -> memref<1x!tpu.dma_semaphore, #tpu.memory_space<semaphore_mem>>
    %13 = tpu.memref_squeeze %12 : memref<1x!tpu.dma_semaphore, #tpu.memory_space<semaphore_mem>> -> memref<!tpu.dma_semaphore, #tpu.memory_space<semaphore_mem>>
    tpu.enqueue_dma source(%9 : memref<128xf32, #tpu.memory_space<any>>) target(%11 : memref<128xf32, #tpu.memory_space<vmem>>) target_semaphore(%13 : memref<!tpu.dma_semaphore, #tpu.memory_space<semaphore_mem>>)
    %c2 = arith.constant 2 : index
    %14 = memref.load %arg0[%c2] : memref<8xi32, #tpu.memory_space<smem>>
    %c2_i32 = arith.constant 2 : i32
    %c2_i32_6 = arith.constant 2 : i32
    %c0_i32_7 = arith.constant 0 : i32
    %15 = tpu.memref_slice %arg1[%14, %c0_i32_7] : memref<64x128xf32, #tpu.memory_space<any>> -> memref<1x128xf32, #tpu.memory_space<any>>
    %16 = tpu.memref_squeeze %15 : memref<1x128xf32, #tpu.memory_space<any>> -> memref<128xf32, #tpu.memory_space<any>>
    %c0_i32_8 = arith.constant 0 : i32
    %17 = tpu.memref_slice %arg12[%c2_i32, %c0_i32_8] : memref<8x128xf32, #tpu.memory_space<vmem>> -> memref<1x128xf32, #tpu.memory_space<vmem>>
    %18 = tpu.memref_squeeze %17 : memref<1x128xf32, #tpu.memory_space<vmem>> -> memref<128xf32, #tpu.memory_space<vmem>>
    %19 = tpu.memref_slice %arg13[%c2_i32_6] : memref<8x!tpu.dma_semaphore, #tpu.memory_space<semaphore_mem>> -> memref<1x!tpu.dma_semaphore, #tpu.memory_space<semaphore_mem>>
    %20 = tpu.memref_squeeze %19 : memref<1x!tpu.dma_semaphore, #tpu.memory_space<semaphore_mem>> -> memref<!tpu.dma_semaphore, #tpu.memory_space<semaphore_mem>>
    tpu.enqueue_dma source(%16 : memref<128xf32, #tpu.memory_space<any>>) target(%18 : memref<128xf32, #tpu.memory_space<vmem>>) target_semaphore(%20 : memref<!tpu.dma_semaphore, #tpu.memory_space<semaphore_mem>>)
    %c3 = arith.constant 3 : index
    %21 = memref.load %arg0[%c3] : memref<8xi32, #tpu.memory_space<smem>>
    %c3_i32 = arith.constant 3 : i32
    %c3_i32_9 = arith.constant 3 : i32
    %c0_i32_10 = arith.constant 0 : i32
    %22 = tpu.memref_slice %arg1[%21, %c0_i32_10] : memref<64x128xf32, #tpu.memory_space<any>> -> memref<1x128xf32, #tpu.memory_space<any>>
    %23 = tpu.memref_squeeze %22 : memref<1x128xf32, #tpu.memory_space<any>> -> memref<128xf32, #tpu.memory_space<any>>
    %c0_i32_11 = arith.constant 0 : i32
    %24 = tpu.memref_slice %arg12[%c3_i32, %c0_i32_11] : memref<8x128xf32, #tpu.memory_space<vmem>> -> memref<1x128xf32, #tpu.memory_space<vmem>>
    %25 = tpu.memref_squeeze %24 : memref<1x128xf32, #tpu.memory_space<vmem>> -> memref<128xf32, #tpu.memory_space<vmem>>
    %26 = tpu.memref_slice %arg13[%c3_i32_9] : memref<8x!tpu.dma_semaphore, #tpu.memory_space<semaphore_mem>> -> memref<1x!tpu.dma_semaphore, #tpu.memory_space<semaphore_mem>>
    %27 = tpu.memref_squeeze %26 : memref<1x!tpu.dma_semaphore, #tpu.memory_space<semaphore_mem>> -> memref<!tpu.dma_semaphore, #tpu.memory_space<semaphore_mem>>
    tpu.enqueue_dma source(%23 : memref<128xf32, #tpu.memory_space<any>>) target(%25 : memref<128xf32, #tpu.memory_space<vmem>>) target_semaphore(%27 : memref<!tpu.dma_semaphore, #tpu.memory_space<semaphore_mem>>)
    %c4 = arith.constant 4 : index
    %28 = memref.load %arg0[%c4] : memref<8xi32, #tpu.memory_space<smem>>
    %c4_i32 = arith.constant 4 : i32
    %c4_i32_12 = arith.constant 4 : i32
    %c0_i32_13 = arith.constant 0 : i32
    %29 = tpu.memref_slice %arg1[%28, %c0_i32_13] : memref<64x128xf32, #tpu.memory_space<any>> -> memref<1x128xf32, #tpu.memory_space<any>>
    %30 = tpu.memref_squeeze %29 : memref<1x128xf32, #tpu.memory_space<any>> -> memref<128xf32, #tpu.memory_space<any>>
    %c0_i32_14 = arith.constant 0 : i32
    %31 = tpu.memref_slice %arg12[%c4_i32, %c0_i32_14] : memref<8x128xf32, #tpu.memory_space<vmem>> -> memref<1x128xf32, #tpu.memory_space<vmem>>
    %32 = tpu.memref_squeeze %31 : memref<1x128xf32, #tpu.memory_space<vmem>> -> memref<128xf32, #tpu.memory_space<vmem>>
    %33 = tpu.memref_slice %arg13[%c4_i32_12] : memref<8x!tpu.dma_semaphore, #tpu.memory_space<semaphore_mem>> -> memref<1x!tpu.dma_semaphore, #tpu.memory_space<semaphore_mem>>
    %34 = tpu.memref_squeeze %33 : memref<1x!tpu.dma_semaphore, #tpu.memory_space<semaphore_mem>> -> memref<!tpu.dma_semaphore, #tpu.memory_space<semaphore_mem>>
    tpu.enqueue_dma source(%30 : memref<128xf32, #tpu.memory_space<any>>) target(%32 : memref<128xf32, #tpu.memory_space<vmem>>) target_semaphore(%34 : memref<!tpu.dma_semaphore, #tpu.memory_space<semaphore_mem>>)
    %c5 = arith.constant 5 : index
    %35 = memref.load %arg0[%c5] : memref<8xi32, #tpu.memory_space<smem>>
    %c5_i32 = arith.constant 5 : i32
    %c5_i32_15 = arith.constant 5 : i32
    %c0_i32_16 = arith.constant 0 : i32
    %36 = tpu.memref_slice %arg1[%35, %c0_i32_16] : memref<64x128xf32, #tpu.memory_space<any>> -> memref<1x128xf32, #tpu.memory_space<any>>
    %37 = tpu.memref_squeeze %36 : memref<1x128xf32, #tpu.memory_space<any>> -> memref<128xf32, #tpu.memory_space<any>>
    %c0_i32_17 = arith.constant 0 : i32
    %38 = tpu.memref_slice %arg12[%c5_i32, %c0_i32_17] : memref<8x128xf32, #tpu.memory_space<vmem>> -> memref<1x128xf32, #tpu.memory_space<vmem>>
    %39 = tpu.memref_squeeze %38 : memref<1x128xf32, #tpu.memory_space<vmem>> -> memref<128xf32, #tpu.memory_space<vmem>>
    %40 = tpu.memref_slice %arg13[%c5_i32_15] : memref<8x!tpu.dma_semaphore, #tpu.memory_space<semaphore_mem>> -> memref<1x!tpu.dma_semaphore, #tpu.memory_space<semaphore_mem>>
    %41 = tpu.memref_squeeze %40 : memref<1x!tpu.dma_semaphore, #tpu.memory_space<semaphore_mem>> -> memref<!tpu.dma_semaphore, #tpu.memory_space<semaphore_mem>>
    tpu.enqueue_dma source(%37 : memref<128xf32, #tpu.memory_space<any>>) target(%39 : memref<128xf32, #tpu.memory_space<vmem>>) target_semaphore(%41 : memref<!tpu.dma_semaphore, #tpu.memory_space<semaphore_mem>>)
    %c6 = arith.constant 6 : index
    %42 = memref.load %arg0[%c6] : memref<8xi32, #tpu.memory_space<smem>>
    %c6_i32 = arith.constant 6 : i32
    %c6_i32_18 = arith.constant 6 : i32
    %c0_i32_19 = arith.constant 0 : i32
    %43 = tpu.memref_slice %arg1[%42, %c0_i32_19] : memref<64x128xf32, #tpu.memory_space<any>> -> memref<1x128xf32, #tpu.memory_space<any>>
    %44 = tpu.memref_squeeze %43 : memref<1x128xf32, #tpu.memory_space<any>> -> memref<128xf32, #tpu.memory_space<any>>
    %c0_i32_20 = arith.constant 0 : i32
    %45 = tpu.memref_slice %arg12[%c6_i32, %c0_i32_20] : memref<8x128xf32, #tpu.memory_space<vmem>> -> memref<1x128xf32, #tpu.memory_space<vmem>>
    %46 = tpu.memref_squeeze %45 : memref<1x128xf32, #tpu.memory_space<vmem>> -> memref<128xf32, #tpu.memory_space<vmem>>
    %47 = tpu.memref_slice %arg13[%c6_i32_18] : memref<8x!tpu.dma_semaphore, #tpu.memory_space<semaphore_mem>> -> memref<1x!tpu.dma_semaphore, #tpu.memory_space<semaphore_mem>>
    %48 = tpu.memref_squeeze %47 : memref<1x!tpu.dma_semaphore, #tpu.memory_space<semaphore_mem>> -> memref<!tpu.dma_semaphore, #tpu.memory_space<semaphore_mem>>
    tpu.enqueue_dma source(%44 : memref<128xf32, #tpu.memory_space<any>>) target(%46 : memref<128xf32, #tpu.memory_space<vmem>>) target_semaphore(%48 : memref<!tpu.dma_semaphore, #tpu.memory_space<semaphore_mem>>)
    %c7 = arith.constant 7 : index
    %49 = memref.load %arg0[%c7] : memref<8xi32, #tpu.memory_space<smem>>
    %c7_i32 = arith.constant 7 : i32
    %c7_i32_21 = arith.constant 7 : i32
    %c0_i32_22 = arith.constant 0 : i32
    %50 = tpu.memref_slice %arg1[%49, %c0_i32_22] : memref<64x128xf32, #tpu.memory_space<any>> -> memref<1x128xf32, #tpu.memory_space<any>>
    %51 = tpu.memref_squeeze %50 : memref<1x128xf32, #tpu.memory_space<any>> -> memref<128xf32, #tpu.memory_space<any>>
    %c0_i32_23 = arith.constant 0 : i32
    %52 = tpu.memref_slice %arg12[%c7_i32, %c0_i32_23] : memref<8x128xf32, #tpu.memory_space<vmem>> -> memref<1x128xf32, #tpu.memory_space<vmem>>
    %53 = tpu.memref_squeeze %52 : memref<1x128xf32, #tpu.memory_space<vmem>> -> memref<128xf32, #tpu.memory_space<vmem>>
    %54 = tpu.memref_slice %arg13[%c7_i32_21] : memref<8x!tpu.dma_semaphore, #tpu.memory_space<semaphore_mem>> -> memref<1x!tpu.dma_semaphore, #tpu.memory_space<semaphore_mem>>
    %55 = tpu.memref_squeeze %54 : memref<1x!tpu.dma_semaphore, #tpu.memory_space<semaphore_mem>> -> memref<!tpu.dma_semaphore, #tpu.memory_space<semaphore_mem>>
    tpu.enqueue_dma source(%51 : memref<128xf32, #tpu.memory_space<any>>) target(%53 : memref<128xf32, #tpu.memory_space<vmem>>) target_semaphore(%55 : memref<!tpu.dma_semaphore, #tpu.memory_space<semaphore_mem>>)
    %c0_24 = arith.constant 0 : index
    %c0_25 = arith.constant 0 : index
    %56 = vector.load %arg5[%c0_24, %c0_25] : memref<128x512xbf16, #tpu.memory_space<vmem>>, vector<128x512xbf16>
    %57 = arith.extf %56 : vector<128x512xbf16> to vector<128x512xf32>
    %c0_26 = arith.constant 0 : index
    %c0_27 = arith.constant 0 : index
    %58 = vector.load %arg14[%c0_26, %c0_27] : memref<128x512xf32, #tpu.memory_space<vmem>>, vector<128x512xf32>
    tpu.vector_store %arg14[%c0_26, %c0_27], %57 {strides = array<i32>} : memref<128x512xf32, #tpu.memory_space<vmem>>, vector<128x512xf32>,
    %c0_i32_28 = arith.constant 0 : i32
    %c0_i32_29 = arith.constant 0 : i32
    %c0_i32_30 = arith.constant 0 : i32
    %59 = tpu.memref_slice %arg1[%0, %c0_i32_30] : memref<64x128xf32, #tpu.memory_space<any>> -> memref<1x128xf32, #tpu.memory_space<any>>
    %60 = tpu.memref_squeeze %59 : memref<1x128xf32, #tpu.memory_space<any>> -> memref<128xf32, #tpu.memory_space<any>>
    %c0_i32_31 = arith.constant 0 : i32
    %61 = tpu.memref_slice %arg12[%c0_i32_28, %c0_i32_31] : memref<8x128xf32, #tpu.memory_space<vmem>> -> memref<1x128xf32, #tpu.memory_space<vmem>>
    %62 = tpu.memref_squeeze %61 : memref<1x128xf32, #tpu.memory_space<vmem>> -> memref<128xf32, #tpu.memory_space<vmem>>
    %63 = tpu.memref_slice %arg13[%c0_i32_29] : memref<8x!tpu.dma_semaphore, #tpu.memory_space<semaphore_mem>> -> memref<1x!tpu.dma_semaphore, #tpu.memory_space<semaphore_mem>>
    %64 = tpu.memref_squeeze %63 : memref<1x!tpu.dma_semaphore, #tpu.memory_space<semaphore_mem>> -> memref<!tpu.dma_semaphore, #tpu.memory_space<semaphore_mem>>
    tpu.wait_dma2 semaphore(%64 : memref<!tpu.dma_semaphore, #tpu.memory_space<semaphore_mem>>) src(%60 : memref<128xf32, #tpu.memory_space<any>>) dst(%62 : memref<128xf32, #tpu.memory_space<vmem>>)
    %c1_i32_32 = arith.constant 1 : i32
    %c1_i32_33 = arith.constant 1 : i32
    %c0_i32_34 = arith.constant 0 : i32
    %65 = tpu.memref_slice %arg1[%7, %c0_i32_34] : memref<64x128xf32, #tpu.memory_space<any>> -> memref<1x128xf32, #tpu.memory_space<any>>
    %66 = tpu.memref_squeeze %65 : memref<1x128xf32, #tpu.memory_space<any>> -> memref<128xf32, #tpu.memory_space<any>>
    %c0_i32_35 = arith.constant 0 : i32
    %67 = tpu.memref_slice %arg12[%c1_i32_32, %c0_i32_35] : memref<8x128xf32, #tpu.memory_space<vmem>> -> memref<1x128xf32, #tpu.memory_space<vmem>>
    %68 = tpu.memref_squeeze %67 : memref<1x128xf32, #tpu.memory_space<vmem>> -> memref<128xf32, #tpu.memory_space<vmem>>
    %69 = tpu.memref_slice %arg13[%c1_i32_33] : memref<8x!tpu.dma_semaphore, #tpu.memory_space<semaphore_mem>> -> memref<1x!tpu.dma_semaphore, #tpu.memory_space<semaphore_mem>>
    %70 = tpu.memref_squeeze %69 : memref<1x!tpu.dma_semaphore, #tpu.memory_space<semaphore_mem>> -> memref<!tpu.dma_semaphore, #tpu.memory_space<semaphore_mem>>
    tpu.wait_dma2 semaphore(%70 : memref<!tpu.dma_semaphore, #tpu.memory_space<semaphore_mem>>) src(%66 : memref<128xf32, #tpu.memory_space<any>>) dst(%68 : memref<128xf32, #tpu.memory_space<vmem>>)
    %c2_i32_36 = arith.constant 2 : i32
    %c2_i32_37 = arith.constant 2 : i32
    %c0_i32_38 = arith.constant 0 : i32
    %71 = tpu.memref_slice %arg1[%14, %c0_i32_38] : memref<64x128xf32, #tpu.memory_space<any>> -> memref<1x128xf32, #tpu.memory_space<any>>
    %72 = tpu.memref_squeeze %71 : memref<1x128xf32, #tpu.memory_space<any>> -> memref<128xf32, #tpu.memory_space<any>>
    %c0_i32_39 = arith.constant 0 : i32
    %73 = tpu.memref_slice %arg12[%c2_i32_36, %c0_i32_39] : memref<8x128xf32, #tpu.memory_space<vmem>> -> memref<1x128xf32, #tpu.memory_space<vmem>>
    %74 = tpu.memref_squeeze %73 : memref<1x128xf32, #tpu.memory_space<vmem>> -> memref<128xf32, #tpu.memory_space<vmem>>
    %75 = tpu.memref_slice %arg13[%c2_i32_37] : memref<8x!tpu.dma_semaphore, #tpu.memory_space<semaphore_mem>> -> memref<1x!tpu.dma_semaphore, #tpu.memory_space<semaphore_mem>>
    %76 = tpu.memref_squeeze %75 : memref<1x!tpu.dma_semaphore, #tpu.memory_space<semaphore_mem>> -> memref<!tpu.dma_semaphore, #tpu.memory_space<semaphore_mem>>
    tpu.wait_dma2 semaphore(%76 : memref<!tpu.dma_semaphore, #tpu.memory_space<semaphore_mem>>) src(%72 : memref<128xf32, #tpu.memory_space<any>>) dst(%74 : memref<128xf32, #tpu.memory_space<vmem>>)
    %c3_i32_40 = arith.constant 3 : i32
    %c3_i32_41 = arith.constant 3 : i32
    %c0_i32_42 = arith.constant 0 : i32
    %77 = tpu.memref_slice %arg1[%21, %c0_i32_42] : memref<64x128xf32, #tpu.memory_space<any>> -> memref<1x128xf32, #tpu.memory_space<any>>
    %78 = tpu.memref_squeeze %77 : memref<1x128xf32, #tpu.memory_space<any>> -> memref<128xf32, #tpu.memory_space<any>>
    %c0_i32_43 = arith.constant 0 : i32
    %79 = tpu.memref_slice %arg12[%c3_i32_40, %c0_i32_43] : memref<8x128xf32, #tpu.memory_space<vmem>> -> memref<1x128xf32, #tpu.memory_space<vmem>>
    %80 = tpu.memref_squeeze %79 : memref<1x128xf32, #tpu.memory_space<vmem>> -> memref<128xf32, #tpu.memory_space<vmem>>
    %81 = tpu.memref_slice %arg13[%c3_i32_41] : memref<8x!tpu.dma_semaphore, #tpu.memory_space<semaphore_mem>> -> memref<1x!tpu.dma_semaphore, #tpu.memory_space<semaphore_mem>>
    %82 = tpu.memref_squeeze %81 : memref<1x!tpu.dma_semaphore, #tpu.memory_space<semaphore_mem>> -> memref<!tpu.dma_semaphore, #tpu.memory_space<semaphore_mem>>
    tpu.wait_dma2 semaphore(%82 : memref<!tpu.dma_semaphore, #tpu.memory_space<semaphore_mem>>) src(%78 : memref<128xf32, #tpu.memory_space<any>>) dst(%80 : memref<128xf32, #tpu.memory_space<vmem>>)
    %c4_i32_44 = arith.constant 4 : i32
    %c4_i32_45 = arith.constant 4 : i32
    %c0_i32_46 = arith.constant 0 : i32
    %83 = tpu.memref_slice %arg1[%28, %c0_i32_46] : memref<64x128xf32, #tpu.memory_space<any>> -> memref<1x128xf32, #tpu.memory_space<any>>
    %84 = tpu.memref_squeeze %83 : memref<1x128xf32, #tpu.memory_space<any>> -> memref<128xf32, #tpu.memory_space<any>>
    %c0_i32_47 = arith.constant 0 : i32
    %85 = tpu.memref_slice %arg12[%c4_i32_44, %c0_i32_47] : memref<8x128xf32, #tpu.memory_space<vmem>> -> memref<1x128xf32, #tpu.memory_space<vmem>>
    %86 = tpu.memref_squeeze %85 : memref<1x128xf32, #tpu.memory_space<vmem>> -> memref<128xf32, #tpu.memory_space<vmem>>
    %87 = tpu.memref_slice %arg13[%c4_i32_45] : memref<8x!tpu.dma_semaphore, #tpu.memory_space<semaphore_mem>> -> memref<1x!tpu.dma_semaphore, #tpu.memory_space<semaphore_mem>>
    %88 = tpu.memref_squeeze %87 : memref<1x!tpu.dma_semaphore, #tpu.memory_space<semaphore_mem>> -> memref<!tpu.dma_semaphore, #tpu.memory_space<semaphore_mem>>
    tpu.wait_dma2 semaphore(%88 : memref<!tpu.dma_semaphore, #tpu.memory_space<semaphore_mem>>) src(%84 : memref<128xf32, #tpu.memory_space<any>>) dst(%86 : memref<128xf32, #tpu.memory_space<vmem>>)
    %c5_i32_48 = arith.constant 5 : i32
    %c5_i32_49 = arith.constant 5 : i32
    %c0_i32_50 = arith.constant 0 : i32
    %89 = tpu.memref_slice %arg1[%35, %c0_i32_50] : memref<64x128xf32, #tpu.memory_space<any>> -> memref<1x128xf32, #tpu.memory_space<any>>
    %90 = tpu.memref_squeeze %89 : memref<1x128xf32, #tpu.memory_space<any>> -> memref<128xf32, #tpu.memory_space<any>>
    %c0_i32_51 = arith.constant 0 : i32
    %91 = tpu.memref_slice %arg12[%c5_i32_48, %c0_i32_51] : memref<8x128xf32, #tpu.memory_space<vmem>> -> memref<1x128xf32, #tpu.memory_space<vmem>>
    %92 = tpu.memref_squeeze %91 : memref<1x128xf32, #tpu.memory_space<vmem>> -> memref<128xf32, #tpu.memory_space<vmem>>
    %93 = tpu.memref_slice %arg13[%c5_i32_49] : memref<8x!tpu.dma_semaphore, #tpu.memory_space<semaphore_mem>> -> memref<1x!tpu.dma_semaphore, #tpu.memory_space<semaphore_mem>>
    %94 = tpu.memref_squeeze %93 : memref<1x!tpu.dma_semaphore, #tpu.memory_space<semaphore_mem>> -> memref<!tpu.dma_semaphore, #tpu.memory_space<semaphore_mem>>
    tpu.wait_dma2 semaphore(%94 : memref<!tpu.dma_semaphore, #tpu.memory_space<semaphore_mem>>) src(%90 : memref<128xf32, #tpu.memory_space<any>>) dst(%92 : memref<128xf32, #tpu.memory_space<vmem>>)
    %c6_i32_52 = arith.constant 6 : i32
    %c6_i32_53 = arith.constant 6 : i32
    %c0_i32_54 = arith.constant 0 : i32
    %95 = tpu.memref_slice %arg1[%42, %c0_i32_54] : memref<64x128xf32, #tpu.memory_space<any>> -> memref<1x128xf32, #tpu.memory_space<any>>
    %96 = tpu.memref_squeeze %95 : memref<1x128xf32, #tpu.memory_space<any>> -> memref<128xf32, #tpu.memory_space<any>>
    %c0_i32_55 = arith.constant 0 : i32
    %97 = tpu.memref_slice %arg12[%c6_i32_52, %c0_i32_55] : memref<8x128xf32, #tpu.memory_space<vmem>> -> memref<1x128xf32, #tpu.memory_space<vmem>>
    %98 = tpu.memref_squeeze %97 : memref<1x128xf32, #tpu.memory_space<vmem>> -> memref<128xf32, #tpu.memory_space<vmem>>
    %99 = tpu.memref_slice %arg13[%c6_i32_53] : memref<8x!tpu.dma_semaphore, #tpu.memory_space<semaphore_mem>> -> memref<1x!tpu.dma_semaphore, #tpu.memory_space<semaphore_mem>>
    %100 = tpu.memref_squeeze %99 : memref<1x!tpu.dma_semaphore, #tpu.memory_space<semaphore_mem>> -> memref<!tpu.dma_semaphore, #tpu.memory_space<semaphore_mem>>
    tpu.wait_dma2 semaphore(%100 : memref<!tpu.dma_semaphore, #tpu.memory_space<semaphore_mem>>) src(%96 : memref<128xf32, #tpu.memory_space<any>>) dst(%98 : memref<128xf32, #tpu.memory_space<vmem>>)
    %c7_i32_56 = arith.constant 7 : i32
    %c7_i32_57 = arith.constant 7 : i32
    %c0_i32_58 = arith.constant 0 : i32
    %101 = tpu.memref_slice %arg1[%49, %c0_i32_58] : memref<64x128xf32, #tpu.memory_space<any>> -> memref<1x128xf32, #tpu.memory_space<any>>
    %102 = tpu.memref_squeeze %101 : memref<1x128xf32, #tpu.memory_space<any>> -> memref<128xf32, #tpu.memory_space<any>>
    %c0_i32_59 = arith.constant 0 : i32
    %103 = tpu.memref_slice %arg12[%c7_i32_56, %c0_i32_59] : memref<8x128xf32, #tpu.memory_space<vmem>> -> memref<1x128xf32, #tpu.memory_space<vmem>>
    %104 = tpu.memref_squeeze %103 : memref<1x128xf32, #tpu.memory_space<vmem>> -> memref<128xf32, #tpu.memory_space<vmem>>
    %105 = tpu.memref_slice %arg13[%c7_i32_57] : memref<8x!tpu.dma_semaphore, #tpu.memory_space<semaphore_mem>> -> memref<1x!tpu.dma_semaphore, #tpu.memory_space<semaphore_mem>>
    %106 = tpu.memref_squeeze %105 : memref<1x!tpu.dma_semaphore, #tpu.memory_space<semaphore_mem>> -> memref<!tpu.dma_semaphore, #tpu.memory_space<semaphore_mem>>
    tpu.wait_dma2 semaphore(%106 : memref<!tpu.dma_semaphore, #tpu.memory_space<semaphore_mem>>) src(%102 : memref<128xf32, #tpu.memory_space<any>>) dst(%104 : memref<128xf32, #tpu.memory_space<vmem>>)
    %c0_60 = arith.constant 0 : index
    %c0_61 = arith.constant 0 : index
    %107 = vector.load %arg12[%c0_60, %c0_61] : memref<8x128xf32, #tpu.memory_space<vmem>>, vector<8x128xf32>
    %c0_62 = arith.constant 0 : index
    %c0_63 = arith.constant 0 : index
    %108 = vector.load %arg4[%c0_62, %c0_63] : memref<128x512xbf16, #tpu.memory_space<vmem>>, vector<128x512xbf16>
    %109 = arith.extf %108 : vector<128x512xbf16> to vector<128x512xf32>
    %cst = arith.constant dense<0.000000e+00> : vector<8x512xf32>
    %110 = tpu.matmul %107, %109, %cst {dimension_numbers = #tpu.dot_dimension_numbers<[1], [0], [0], [1], [0, 0, 1, 1], [], []>} : vector<8x128xf32>, vector<128x512xf32>, vector<8x512xf32> -> vector<8x512xf32>
    %c0_64 = arith.constant 0 : index
    %c0_65 = arith.constant 0 : index
    %111 = vector.load %arg6[%c0_64, %c0_65] : memref<1x512xf32, #tpu.memory_space<vmem>>, vector<1x512xf32>
    %112 = vector.broadcast %111 : vector<1x512xf32> to vector<8x512xf32>
    %113 = arith.addf %110, %112 : vector<8x512xf32>
    %c0_66 = arith.constant 0 : index
    %c0_67 = arith.constant 0 : index
    %114 = vector.load %arg2[%c0_66, %c0_67] : memref<1x128xf32, #tpu.memory_space<vmem>>, vector<1x128xf32>
    %c0_68 = arith.constant 0 : index
    %c0_69 = arith.constant 0 : index
    %115 = vector.load %arg3[%c0_68, %c0_69] : memref<1x128xf32, #tpu.memory_space<vmem>>, vector<1x128xf32>
    %116 = vector.extract_strided_slice %113 {offsets = [0, 0], sizes = [1, 512], strides = [1, 1]} : vector<8x512xf32> to vector<1x512xf32>
    %c0_70 = arith.constant 0 : index
    %c0_71 = arith.constant 0 : index
    %117 = vector.load %arg14[%c0_70, %c0_71] : memref<128x512xf32, #tpu.memory_space<vmem>>, vector<128x512xf32>
    %cst_72 = arith.constant dense<0.000000e+00> : vector<1x512xf32>
    %118 = tpu.matmul %114, %117, %cst_72 {dimension_numbers = #tpu.dot_dimension_numbers<[1], [0], [0], [1], [0, 0, 1, 1], [], []>} : vector<1x128xf32>, vector<128x512xf32>, vector<1x512xf32> -> vector<1x512xf32>
    %119 = arith.addf %116, %118 : vector<1x512xf32>
    %120 = vector.extract_strided_slice %119 {offsets = [0, 0], sizes = [1, 128], strides = [1, 1]} : vector<1x512xf32> to vector<1x128xf32>
    %cst_73 = arith.constant 5.000000e-01 : f32
    %121 = vector.broadcast %cst_73 : f32 to vector<1x128xf32>
    %122 = arith.mulf %121, %120 : vector<1x128xf32>
    %123 = math.tanh %122 : vector<1x128xf32>
    %cst_74 = arith.constant 5.000000e-01 : f32
    %124 = vector.broadcast %cst_74 : f32 to vector<1x128xf32>
    %125 = arith.mulf %124, %123 : vector<1x128xf32>
    %cst_75 = arith.constant 5.000000e-01 : f32
    %126 = vector.broadcast %cst_75 : f32 to vector<1x128xf32>
    %127 = arith.addf %125, %126 : vector<1x128xf32>
    %128 = vector.extract_strided_slice %119 {offsets = [0, 128], sizes = [1, 128], strides = [1, 1]} : vector<1x512xf32> to vector<1x128xf32>
    %cst_76 = arith.constant 5.000000e-01 : f32
    %129 = vector.broadcast %cst_76 : f32 to vector<1x128xf32>
    %130 = arith.mulf %129, %128 : vector<1x128xf32>
    %131 = math.tanh %130 : vector<1x128xf32>
    %cst_77 = arith.constant 5.000000e-01 : f32
    %132 = vector.broadcast %cst_77 : f32 to vector<1x128xf32>
    %133 = arith.mulf %132, %131 : vector<1x128xf32>
    %cst_78 = arith.constant 5.000000e-01 : f32
    %134 = vector.broadcast %cst_78 : f32 to vector<1x128xf32>
    %135 = arith.addf %133, %134 : vector<1x128xf32>
    %136 = vector.extract_strided_slice %119 {offsets = [0, 256], sizes = [1, 128], strides = [1, 1]} : vector<1x512xf32> to vector<1x128xf32>
    %137 = math.tanh %136 : vector<1x128xf32>
    %138 = vector.extract_strided_slice %119 {offsets = [0, 384], sizes = [1, 128], strides = [1, 1]} : vector<1x512xf32> to vector<1x128xf32>
    %cst_79 = arith.constant 5.000000e-01 : f32
    %139 = vector.broadcast %cst_79 : f32 to vector<1x128xf32>
    %140 = arith.mulf %139, %138 : vector<1x128xf32>
    %141 = math.tanh %140 : vector<1x128xf32>
    %cst_80 = arith.constant 5.000000e-01 : f32
    %142 = vector.broadcast %cst_80 : f32 to vector<1x128xf32>
    %143 = arith.mulf %142, %141 : vector<1x128xf32>
    %cst_81 = arith.constant 5.000000e-01 : f32
    %144 = vector.broadcast %cst_81 : f32 to vector<1x128xf32>
    %145 = arith.addf %143, %144 : vector<1x128xf32>
    %146 = arith.mulf %135, %115 : vector<1x128xf32>
    %147 = arith.mulf %127, %137 : vector<1x128xf32>
    %148 = arith.addf %146, %147 : vector<1x128xf32>
    %149 = math.tanh %148 : vector<1x128xf32>
    %150 = arith.mulf %145, %149 : vector<1x128xf32>
    %151 = vector.extract_strided_slice %113 {offsets = [1, 0], sizes = [1, 512], strides = [1, 1]} : vector<8x512xf32> to vector<1x512xf32>
    %c0_82 = arith.constant 0 : index
    %c0_83 = arith.constant 0 : index
    %152 = vector.load %arg14[%c0_82, %c0_83] : memref<128x512xf32, #tpu.memory_space<vmem>>, vector<128x512xf32>
    %cst_84 = arith.constant dense<0.000000e+00> : vector<1x512xf32>
    %153 = tpu.matmul %150, %152, %cst_84 {dimension_numbers = #tpu.dot_dimension_numbers<[1], [0], [0], [1], [0, 0, 1, 1], [], []>} : vector<1x128xf32>, vector<128x512xf32>, vector<1x512xf32> -> vector<1x512xf32>
    %154 = arith.addf %151, %153 : vector<1x512xf32>
    %155 = vector.extract_strided_slice %154 {offsets = [0, 0], sizes = [1, 128], strides = [1, 1]} : vector<1x512xf32> to vector<1x128xf32>
    %cst_85 = arith.constant 5.000000e-01 : f32
    %156 = vector.broadcast %cst_85 : f32 to vector<1x128xf32>
    %157 = arith.mulf %156, %155 : vector<1x128xf32>
    %158 = math.tanh %157 : vector<1x128xf32>
    %cst_86 = arith.constant 5.000000e-01 : f32
    %159 = vector.broadcast %cst_86 : f32 to vector<1x128xf32>
    %160 = arith.mulf %159, %158 : vector<1x128xf32>
    %cst_87 = arith.constant 5.000000e-01 : f32
    %161 = vector.broadcast %cst_87 : f32 to vector<1x128xf32>
    %162 = arith.addf %160, %161 : vector<1x128xf32>
    %163 = vector.extract_strided_slice %154 {offsets = [0, 128], sizes = [1, 128], strides = [1, 1]} : vector<1x512xf32> to vector<1x128xf32>
    %cst_88 = arith.constant 5.000000e-01 : f32
    %164 = vector.broadcast %cst_88 : f32 to vector<1x128xf32>
    %165 = arith.mulf %164, %163 : vector<1x128xf32>
    %166 = math.tanh %165 : vector<1x128xf32>
    %cst_89 = arith.constant 5.000000e-01 : f32
    %167 = vector.broadcast %cst_89 : f32 to vector<1x128xf32>
    %168 = arith.mulf %167, %166 : vector<1x128xf32>
    %cst_90 = arith.constant 5.000000e-01 : f32
    %169 = vector.broadcast %cst_90 : f32 to vector<1x128xf32>
    %170 = arith.addf %168, %169 : vector<1x128xf32>
    %171 = vector.extract_strided_slice %154 {offsets = [0, 256], sizes = [1, 128], strides = [1, 1]} : vector<1x512xf32> to vector<1x128xf32>
    %172 = math.tanh %171 : vector<1x128xf32>
    %173 = vector.extract_strided_slice %154 {offsets = [0, 384], sizes = [1, 128], strides = [1, 1]} : vector<1x512xf32> to vector<1x128xf32>
    %cst_91 = arith.constant 5.000000e-01 : f32
    %174 = vector.broadcast %cst_91 : f32 to vector<1x128xf32>
    %175 = arith.mulf %174, %173 : vector<1x128xf32>
    %176 = math.tanh %175 : vector<1x128xf32>
    %cst_92 = arith.constant 5.000000e-01 : f32
    %177 = vector.broadcast %cst_92 : f32 to vector<1x128xf32>
    %178 = arith.mulf %177, %176 : vector<1x128xf32>
    %cst_93 = arith.constant 5.000000e-01 : f32
    %179 = vector.broadcast %cst_93 : f32 to vector<1x128xf32>
    %180 = arith.addf %178, %179 : vector<1x128xf32>
    %181 = arith.mulf %170, %148 : vector<1x128xf32>
    %182 = arith.mulf %162, %172 : vector<1x128xf32>
    %183 = arith.addf %181, %182 : vector<1x128xf32>
    %184 = math.tanh %183 : vector<1x128xf32>
    %185 = arith.mulf %180, %184 : vector<1x128xf32>
    %186 = vector.extract_strided_slice %113 {offsets = [2, 0], sizes = [1, 512], strides = [1, 1]} : vector<8x512xf32> to vector<1x512xf32>
    %c0_94 = arith.constant 0 : index
    %c0_95 = arith.constant 0 : index
    %187 = vector.load %arg14[%c0_94, %c0_95] : memref<128x512xf32, #tpu.memory_space<vmem>>, vector<128x512xf32>
    %cst_96 = arith.constant dense<0.000000e+00> : vector<1x512xf32>
    %188 = tpu.matmul %185, %187, %cst_96 {dimension_numbers = #tpu.dot_dimension_numbers<[1], [0], [0], [1], [0, 0, 1, 1], [], []>} : vector<1x128xf32>, vector<128x512xf32>, vector<1x512xf32> -> vector<1x512xf32>
    %189 = arith.addf %186, %188 : vector<1x512xf32>
    %190 = vector.extract_strided_slice %189 {offsets = [0, 0], sizes = [1, 128], strides = [1, 1]} : vector<1x512xf32> to vector<1x128xf32>
    %cst_97 = arith.constant 5.000000e-01 : f32
    %191 = vector.broadcast %cst_97 : f32 to vector<1x128xf32>
    %192 = arith.mulf %191, %190 : vector<1x128xf32>
    %193 = math.tanh %192 : vector<1x128xf32>
    %cst_98 = arith.constant 5.000000e-01 : f32
    %194 = vector.broadcast %cst_98 : f32 to vector<1x128xf32>
    %195 = arith.mulf %194, %193 : vector<1x128xf32>
    %cst_99 = arith.constant 5.000000e-01 : f32
    %196 = vector.broadcast %cst_99 : f32 to vector<1x128xf32>
    %197 = arith.addf %195, %196 : vector<1x128xf32>
    %198 = vector.extract_strided_slice %189 {offsets = [0, 128], sizes = [1, 128], strides = [1, 1]} : vector<1x512xf32> to vector<1x128xf32>
    %cst_100 = arith.constant 5.000000e-01 : f32
    %199 = vector.broadcast %cst_100 : f32 to vector<1x128xf32>
    %200 = arith.mulf %199, %198 : vector<1x128xf32>
    %201 = math.tanh %200 : vector<1x128xf32>
    %cst_101 = arith.constant 5.000000e-01 : f32
    %202 = vector.broadcast %cst_101 : f32 to vector<1x128xf32>
    %203 = arith.mulf %202, %201 : vector<1x128xf32>
    %cst_102 = arith.constant 5.000000e-01 : f32
    %204 = vector.broadcast %cst_102 : f32 to vector<1x128xf32>
    %205 = arith.addf %203, %204 : vector<1x128xf32>
    %206 = vector.extract_strided_slice %189 {offsets = [0, 256], sizes = [1, 128], strides = [1, 1]} : vector<1x512xf32> to vector<1x128xf32>
    %207 = math.tanh %206 : vector<1x128xf32>
    %208 = vector.extract_strided_slice %189 {offsets = [0, 384], sizes = [1, 128], strides = [1, 1]} : vector<1x512xf32> to vector<1x128xf32>
    %cst_103 = arith.constant 5.000000e-01 : f32
    %209 = vector.broadcast %cst_103 : f32 to vector<1x128xf32>
    %210 = arith.mulf %209, %208 : vector<1x128xf32>
    %211 = math.tanh %210 : vector<1x128xf32>
    %cst_104 = arith.constant 5.000000e-01 : f32
    %212 = vector.broadcast %cst_104 : f32 to vector<1x128xf32>
    %213 = arith.mulf %212, %211 : vector<1x128xf32>
    %cst_105 = arith.constant 5.000000e-01 : f32
    %214 = vector.broadcast %cst_105 : f32 to vector<1x128xf32>
    %215 = arith.addf %213, %214 : vector<1x128xf32>
    %216 = arith.mulf %205, %183 : vector<1x128xf32>
    %217 = arith.mulf %197, %207 : vector<1x128xf32>
    %218 = arith.addf %216, %217 : vector<1x128xf32>
    %219 = math.tanh %218 : vector<1x128xf32>
    %220 = arith.mulf %215, %219 : vector<1x128xf32>
    %221 = vector.extract_strided_slice %113 {offsets = [3, 0], sizes = [1, 512], strides = [1, 1]} : vector<8x512xf32> to vector<1x512xf32>
    %c0_106 = arith.constant 0 : index
    %c0_107 = arith.constant 0 : index
    %222 = vector.load %arg14[%c0_106, %c0_107] : memref<128x512xf32, #tpu.memory_space<vmem>>, vector<128x512xf32>
    %cst_108 = arith.constant dense<0.000000e+00> : vector<1x512xf32>
    %223 = tpu.matmul %220, %222, %cst_108 {dimension_numbers = #tpu.dot_dimension_numbers<[1], [0], [0], [1], [0, 0, 1, 1], [], []>} : vector<1x128xf32>, vector<128x512xf32>, vector<1x512xf32> -> vector<1x512xf32>
    %224 = arith.addf %221, %223 : vector<1x512xf32>
    %225 = vector.extract_strided_slice %224 {offsets = [0, 0], sizes = [1, 128], strides = [1, 1]} : vector<1x512xf32> to vector<1x128xf32>
    %cst_109 = arith.constant 5.000000e-01 : f32
    %226 = vector.broadcast %cst_109 : f32 to vector<1x128xf32>
    %227 = arith.mulf %226, %225 : vector<1x128xf32>
    %228 = math.tanh %227 : vector<1x128xf32>
    %cst_110 = arith.constant 5.000000e-01 : f32
    %229 = vector.broadcast %cst_110 : f32 to vector<1x128xf32>
    %230 = arith.mulf %229, %228 : vector<1x128xf32>
    %cst_111 = arith.constant 5.000000e-01 : f32
    %231 = vector.broadcast %cst_111 : f32 to vector<1x128xf32>
    %232 = arith.addf %230, %231 : vector<1x128xf32>
    %233 = vector.extract_strided_slice %224 {offsets = [0, 128], sizes = [1, 128], strides = [1, 1]} : vector<1x512xf32> to vector<1x128xf32>
    %cst_112 = arith.constant 5.000000e-01 : f32
    %234 = vector.broadcast %cst_112 : f32 to vector<1x128xf32>
    %235 = arith.mulf %234, %233 : vector<1x128xf32>
    %236 = math.tanh %235 : vector<1x128xf32>
    %cst_113 = arith.constant 5.000000e-01 : f32
    %237 = vector.broadcast %cst_113 : f32 to vector<1x128xf32>
    %238 = arith.mulf %237, %236 : vector<1x128xf32>
    %cst_114 = arith.constant 5.000000e-01 : f32
    %239 = vector.broadcast %cst_114 : f32 to vector<1x128xf32>
    %240 = arith.addf %238, %239 : vector<1x128xf32>
    %241 = vector.extract_strided_slice %224 {offsets = [0, 256], sizes = [1, 128], strides = [1, 1]} : vector<1x512xf32> to vector<1x128xf32>
    %242 = math.tanh %241 : vector<1x128xf32>
    %243 = vector.extract_strided_slice %224 {offsets = [0, 384], sizes = [1, 128], strides = [1, 1]} : vector<1x512xf32> to vector<1x128xf32>
    %cst_115 = arith.constant 5.000000e-01 : f32
    %244 = vector.broadcast %cst_115 : f32 to vector<1x128xf32>
    %245 = arith.mulf %244, %243 : vector<1x128xf32>
    %246 = math.tanh %245 : vector<1x128xf32>
    %cst_116 = arith.constant 5.000000e-01 : f32
    %247 = vector.broadcast %cst_116 : f32 to vector<1x128xf32>
    %248 = arith.mulf %247, %246 : vector<1x128xf32>
    %cst_117 = arith.constant 5.000000e-01 : f32
    %249 = vector.broadcast %cst_117 : f32 to vector<1x128xf32>
    %250 = arith.addf %248, %249 : vector<1x128xf32>
    %251 = arith.mulf %240, %218 : vector<1x128xf32>
    %252 = arith.mulf %232, %242 : vector<1x128xf32>
    %253 = arith.addf %251, %252 : vector<1x128xf32>
    %254 = math.tanh %253 : vector<1x128xf32>
    %255 = arith.mulf %250, %254 : vector<1x128xf32>
    %256 = vector.extract_strided_slice %113 {offsets = [4, 0], sizes = [1, 512], strides = [1, 1]} : vector<8x512xf32> to vector<1x512xf32>
    %c0_118 = arith.constant 0 : index
    %c0_119 = arith.constant 0 : index
    %257 = vector.load %arg14[%c0_118, %c0_119] : memref<128x512xf32, #tpu.memory_space<vmem>>, vector<128x512xf32>
    %cst_120 = arith.constant dense<0.000000e+00> : vector<1x512xf32>
    %258 = tpu.matmul %255, %257, %cst_120 {dimension_numbers = #tpu.dot_dimension_numbers<[1], [0], [0], [1], [0, 0, 1, 1], [], []>} : vector<1x128xf32>, vector<128x512xf32>, vector<1x512xf32> -> vector<1x512xf32>
    %259 = arith.addf %256, %258 : vector<1x512xf32>
    %260 = vector.extract_strided_slice %259 {offsets = [0, 0], sizes = [1, 128], strides = [1, 1]} : vector<1x512xf32> to vector<1x128xf32>
    %cst_121 = arith.constant 5.000000e-01 : f32
    %261 = vector.broadcast %cst_121 : f32 to vector<1x128xf32>
    %262 = arith.mulf %261, %260 : vector<1x128xf32>
    %263 = math.tanh %262 : vector<1x128xf32>
    %cst_122 = arith.constant 5.000000e-01 : f32
    %264 = vector.broadcast %cst_122 : f32 to vector<1x128xf32>
    %265 = arith.mulf %264, %263 : vector<1x128xf32>
    %cst_123 = arith.constant 5.000000e-01 : f32
    %266 = vector.broadcast %cst_123 : f32 to vector<1x128xf32>
    %267 = arith.addf %265, %266 : vector<1x128xf32>
    %268 = vector.extract_strided_slice %259 {offsets = [0, 128], sizes = [1, 128], strides = [1, 1]} : vector<1x512xf32> to vector<1x128xf32>
    %cst_124 = arith.constant 5.000000e-01 : f32
    %269 = vector.broadcast %cst_124 : f32 to vector<1x128xf32>
    %270 = arith.mulf %269, %268 : vector<1x128xf32>
    %271 = math.tanh %270 : vector<1x128xf32>
    %cst_125 = arith.constant 5.000000e-01 : f32
    %272 = vector.broadcast %cst_125 : f32 to vector<1x128xf32>
    %273 = arith.mulf %272, %271 : vector<1x128xf32>
    %cst_126 = arith.constant 5.000000e-01 : f32
    %274 = vector.broadcast %cst_126 : f32 to vector<1x128xf32>
    %275 = arith.addf %273, %274 : vector<1x128xf32>
    %276 = vector.extract_strided_slice %259 {offsets = [0, 256], sizes = [1, 128], strides = [1, 1]} : vector<1x512xf32> to vector<1x128xf32>
    %277 = math.tanh %276 : vector<1x128xf32>
    %278 = vector.extract_strided_slice %259 {offsets = [0, 384], sizes = [1, 128], strides = [1, 1]} : vector<1x512xf32> to vector<1x128xf32>
    %cst_127 = arith.constant 5.000000e-01 : f32
    %279 = vector.broadcast %cst_127 : f32 to vector<1x128xf32>
    %280 = arith.mulf %279, %278 : vector<1x128xf32>
    %281 = math.tanh %280 : vector<1x128xf32>
    %cst_128 = arith.constant 5.000000e-01 : f32
    %282 = vector.broadcast %cst_128 : f32 to vector<1x128xf32>
    %283 = arith.mulf %282, %281 : vector<1x128xf32>
    %cst_129 = arith.constant 5.000000e-01 : f32
    %284 = vector.broadcast %cst_129 : f32 to vector<1x128xf32>
    %285 = arith.addf %283, %284 : vector<1x128xf32>
    %286 = arith.mulf %275, %253 : vector<1x128xf32>
    %287 = arith.mulf %267, %277 : vector<1x128xf32>
    %288 = arith.addf %286, %287 : vector<1x128xf32>
    %289 = math.tanh %288 : vector<1x128xf32>
    %290 = arith.mulf %285, %289 : vector<1x128xf32>
    %291 = vector.extract_strided_slice %113 {offsets = [5, 0], sizes = [1, 512], strides = [1, 1]} : vector<8x512xf32> to vector<1x512xf32>
    %c0_130 = arith.constant 0 : index
    %c0_131 = arith.constant 0 : index
    %292 = vector.load %arg14[%c0_130, %c0_131] : memref<128x512xf32, #tpu.memory_space<vmem>>, vector<128x512xf32>
    %cst_132 = arith.constant dense<0.000000e+00> : vector<1x512xf32>
    %293 = tpu.matmul %290, %292, %cst_132 {dimension_numbers = #tpu.dot_dimension_numbers<[1], [0], [0], [1], [0, 0, 1, 1], [], []>} : vector<1x128xf32>, vector<128x512xf32>, vector<1x512xf32> -> vector<1x512xf32>
    %294 = arith.addf %291, %293 : vector<1x512xf32>
    %295 = vector.extract_strided_slice %294 {offsets = [0, 0], sizes = [1, 128], strides = [1, 1]} : vector<1x512xf32> to vector<1x128xf32>
    %cst_133 = arith.constant 5.000000e-01 : f32
    %296 = vector.broadcast %cst_133 : f32 to vector<1x128xf32>
    %297 = arith.mulf %296, %295 : vector<1x128xf32>
    %298 = math.tanh %297 : vector<1x128xf32>
    %cst_134 = arith.constant 5.000000e-01 : f32
    %299 = vector.broadcast %cst_134 : f32 to vector<1x128xf32>
    %300 = arith.mulf %299, %298 : vector<1x128xf32>
    %cst_135 = arith.constant 5.000000e-01 : f32
    %301 = vector.broadcast %cst_135 : f32 to vector<1x128xf32>
    %302 = arith.addf %300, %301 : vector<1x128xf32>
    %303 = vector.extract_strided_slice %294 {offsets = [0, 128], sizes = [1, 128], strides = [1, 1]} : vector<1x512xf32> to vector<1x128xf32>
    %cst_136 = arith.constant 5.000000e-01 : f32
    %304 = vector.broadcast %cst_136 : f32 to vector<1x128xf32>
    %305 = arith.mulf %304, %303 : vector<1x128xf32>
    %306 = math.tanh %305 : vector<1x128xf32>
    %cst_137 = arith.constant 5.000000e-01 : f32
    %307 = vector.broadcast %cst_137 : f32 to vector<1x128xf32>
    %308 = arith.mulf %307, %306 : vector<1x128xf32>
    %cst_138 = arith.constant 5.000000e-01 : f32
    %309 = vector.broadcast %cst_138 : f32 to vector<1x128xf32>
    %310 = arith.addf %308, %309 : vector<1x128xf32>
    %311 = vector.extract_strided_slice %294 {offsets = [0, 256], sizes = [1, 128], strides = [1, 1]} : vector<1x512xf32> to vector<1x128xf32>
    %312 = math.tanh %311 : vector<1x128xf32>
    %313 = vector.extract_strided_slice %294 {offsets = [0, 384], sizes = [1, 128], strides = [1, 1]} : vector<1x512xf32> to vector<1x128xf32>
    %cst_139 = arith.constant 5.000000e-01 : f32
    %314 = vector.broadcast %cst_139 : f32 to vector<1x128xf32>
    %315 = arith.mulf %314, %313 : vector<1x128xf32>
    %316 = math.tanh %315 : vector<1x128xf32>
    %cst_140 = arith.constant 5.000000e-01 : f32
    %317 = vector.broadcast %cst_140 : f32 to vector<1x128xf32>
    %318 = arith.mulf %317, %316 : vector<1x128xf32>
    %cst_141 = arith.constant 5.000000e-01 : f32
    %319 = vector.broadcast %cst_141 : f32 to vector<1x128xf32>
    %320 = arith.addf %318, %319 : vector<1x128xf32>
    %321 = arith.mulf %310, %288 : vector<1x128xf32>
    %322 = arith.mulf %302, %312 : vector<1x128xf32>
    %323 = arith.addf %321, %322 : vector<1x128xf32>
    %324 = math.tanh %323 : vector<1x128xf32>
    %325 = arith.mulf %320, %324 : vector<1x128xf32>
    %326 = vector.extract_strided_slice %113 {offsets = [6, 0], sizes = [1, 512], strides = [1, 1]} : vector<8x512xf32> to vector<1x512xf32>
    %c0_142 = arith.constant 0 : index
    %c0_143 = arith.constant 0 : index
    %327 = vector.load %arg14[%c0_142, %c0_143] : memref<128x512xf32, #tpu.memory_space<vmem>>, vector<128x512xf32>
    %cst_144 = arith.constant dense<0.000000e+00> : vector<1x512xf32>
    %328 = tpu.matmul %325, %327, %cst_144 {dimension_numbers = #tpu.dot_dimension_numbers<[1], [0], [0], [1], [0, 0, 1, 1], [], []>} : vector<1x128xf32>, vector<128x512xf32>, vector<1x512xf32> -> vector<1x512xf32>
    %329 = arith.addf %326, %328 : vector<1x512xf32>
    %330 = vector.extract_strided_slice %329 {offsets = [0, 0], sizes = [1, 128], strides = [1, 1]} : vector<1x512xf32> to vector<1x128xf32>
    %cst_145 = arith.constant 5.000000e-01 : f32
    %331 = vector.broadcast %cst_145 : f32 to vector<1x128xf32>
    %332 = arith.mulf %331, %330 : vector<1x128xf32>
    %333 = math.tanh %332 : vector<1x128xf32>
    %cst_146 = arith.constant 5.000000e-01 : f32
    %334 = vector.broadcast %cst_146 : f32 to vector<1x128xf32>
    %335 = arith.mulf %334, %333 : vector<1x128xf32>
    %cst_147 = arith.constant 5.000000e-01 : f32
    %336 = vector.broadcast %cst_147 : f32 to vector<1x128xf32>
    %337 = arith.addf %335, %336 : vector<1x128xf32>
    %338 = vector.extract_strided_slice %329 {offsets = [0, 128], sizes = [1, 128], strides = [1, 1]} : vector<1x512xf32> to vector<1x128xf32>
    %cst_148 = arith.constant 5.000000e-01 : f32
    %339 = vector.broadcast %cst_148 : f32 to vector<1x128xf32>
    %340 = arith.mulf %339, %338 : vector<1x128xf32>
    %341 = math.tanh %340 : vector<1x128xf32>
    %cst_149 = arith.constant 5.000000e-01 : f32
    %342 = vector.broadcast %cst_149 : f32 to vector<1x128xf32>
    %343 = arith.mulf %342, %341 : vector<1x128xf32>
    %cst_150 = arith.constant 5.000000e-01 : f32
    %344 = vector.broadcast %cst_150 : f32 to vector<1x128xf32>
    %345 = arith.addf %343, %344 : vector<1x128xf32>
    %346 = vector.extract_strided_slice %329 {offsets = [0, 256], sizes = [1, 128], strides = [1, 1]} : vector<1x512xf32> to vector<1x128xf32>
    %347 = math.tanh %346 : vector<1x128xf32>
    %348 = vector.extract_strided_slice %329 {offsets = [0, 384], sizes = [1, 128], strides = [1, 1]} : vector<1x512xf32> to vector<1x128xf32>
    %cst_151 = arith.constant 5.000000e-01 : f32
    %349 = vector.broadcast %cst_151 : f32 to vector<1x128xf32>
    %350 = arith.mulf %349, %348 : vector<1x128xf32>
    %351 = math.tanh %350 : vector<1x128xf32>
    %cst_152 = arith.constant 5.000000e-01 : f32
    %352 = vector.broadcast %cst_152 : f32 to vector<1x128xf32>
    %353 = arith.mulf %352, %351 : vector<1x128xf32>
    %cst_153 = arith.constant 5.000000e-01 : f32
    %354 = vector.broadcast %cst_153 : f32 to vector<1x128xf32>
    %355 = arith.addf %353, %354 : vector<1x128xf32>
    %356 = arith.mulf %345, %323 : vector<1x128xf32>
    %357 = arith.mulf %337, %347 : vector<1x128xf32>
    %358 = arith.addf %356, %357 : vector<1x128xf32>
    %359 = math.tanh %358 : vector<1x128xf32>
    %360 = arith.mulf %355, %359 : vector<1x128xf32>
    %361 = vector.extract_strided_slice %113 {offsets = [7, 0], sizes = [1, 512], strides = [1, 1]} : vector<8x512xf32> to vector<1x512xf32>
    %c0_154 = arith.constant 0 : index
    %c0_155 = arith.constant 0 : index
    %362 = vector.load %arg14[%c0_154, %c0_155] : memref<128x512xf32, #tpu.memory_space<vmem>>, vector<128x512xf32>
    %cst_156 = arith.constant dense<0.000000e+00> : vector<1x512xf32>
    %363 = tpu.matmul %360, %362, %cst_156 {dimension_numbers = #tpu.dot_dimension_numbers<[1], [0], [0], [1], [0, 0, 1, 1], [], []>} : vector<1x128xf32>, vector<128x512xf32>, vector<1x512xf32> -> vector<1x512xf32>
    %364 = arith.addf %361, %363 : vector<1x512xf32>
    %365 = vector.extract_strided_slice %364 {offsets = [0, 0], sizes = [1, 128], strides = [1, 1]} : vector<1x512xf32> to vector<1x128xf32>
    %cst_157 = arith.constant 5.000000e-01 : f32
    %366 = vector.broadcast %cst_157 : f32 to vector<1x128xf32>
    %367 = arith.mulf %366, %365 : vector<1x128xf32>
    %368 = math.tanh %367 : vector<1x128xf32>
    %cst_158 = arith.constant 5.000000e-01 : f32
    %369 = vector.broadcast %cst_158 : f32 to vector<1x128xf32>
    %370 = arith.mulf %369, %368 : vector<1x128xf32>
    %cst_159 = arith.constant 5.000000e-01 : f32
    %371 = vector.broadcast %cst_159 : f32 to vector<1x128xf32>
    %372 = arith.addf %370, %371 : vector<1x128xf32>
    %373 = vector.extract_strided_slice %364 {offsets = [0, 128], sizes = [1, 128], strides = [1, 1]} : vector<1x512xf32> to vector<1x128xf32>
    %cst_160 = arith.constant 5.000000e-01 : f32
    %374 = vector.broadcast %cst_160 : f32 to vector<1x128xf32>
    %375 = arith.mulf %374, %373 : vector<1x128xf32>
    %376 = math.tanh %375 : vector<1x128xf32>
    %cst_161 = arith.constant 5.000000e-01 : f32
    %377 = vector.broadcast %cst_161 : f32 to vector<1x128xf32>
    %378 = arith.mulf %377, %376 : vector<1x128xf32>
    %cst_162 = arith.constant 5.000000e-01 : f32
    %379 = vector.broadcast %cst_162 : f32 to vector<1x128xf32>
    %380 = arith.addf %378, %379 : vector<1x128xf32>
    %381 = vector.extract_strided_slice %364 {offsets = [0, 256], sizes = [1, 128], strides = [1, 1]} : vector<1x512xf32> to vector<1x128xf32>
    %382 = math.tanh %381 : vector<1x128xf32>
    %383 = vector.extract_strided_slice %364 {offsets = [0, 384], sizes = [1, 128], strides = [1, 1]} : vector<1x512xf32> to vector<1x128xf32>
    %cst_163 = arith.constant 5.000000e-01 : f32
    %384 = vector.broadcast %cst_163 : f32 to vector<1x128xf32>
    %385 = arith.mulf %384, %383 : vector<1x128xf32>
    %386 = math.tanh %385 : vector<1x128xf32>
    %cst_164 = arith.constant 5.000000e-01 : f32
    %387 = vector.broadcast %cst_164 : f32 to vector<1x128xf32>
    %388 = arith.mulf %387, %386 : vector<1x128xf32>
    %cst_165 = arith.constant 5.000000e-01 : f32
    %389 = vector.broadcast %cst_165 : f32 to vector<1x128xf32>
    %390 = arith.addf %388, %389 : vector<1x128xf32>
    %391 = arith.mulf %380, %358 : vector<1x128xf32>
    %392 = arith.mulf %372, %382 : vector<1x128xf32>
    %393 = arith.addf %391, %392 : vector<1x128xf32>
    %394 = math.tanh %393 : vector<1x128xf32>
    %395 = arith.mulf %390, %394 : vector<1x128xf32>
    %c0_166 = arith.constant 0 : index
    %c0_167 = arith.constant 0 : index
    %396 = vector.load %arg10[%c0_166, %c0_167] : memref<1x128xf32, #tpu.memory_space<vmem>>, vector<1x128xf32>
    tpu.vector_store %arg10[%c0_166, %c0_167], %395 {strides = array<i32>} : memref<1x128xf32, #tpu.memory_space<vmem>>, vector<1x128xf32>,
    %c0_168 = arith.constant 0 : index
    %c0_169 = arith.constant 0 : index
    %397 = vector.load %arg11[%c0_168, %c0_169] : memref<1x128xf32, #tpu.memory_space<vmem>>, vector<1x128xf32>
    tpu.vector_store %arg11[%c0_168, %c0_169], %393 {strides = array<i32>} : memref<1x128xf32, #tpu.memory_space<vmem>>, vector<1x128xf32>,
    %398 = tpu.concatenate %150, %185, %220, %255, %290, %325, %360, %395 in 0 : vector<1x128xf32>, vector<1x128xf32>, vector<1x128xf32>, vector<1x128xf32>, vector<1x128xf32>, vector<1x128xf32>, vector<1x128xf32>, vector<1x128xf32> -> vector<8x128xf32>
    %c0_170 = arith.constant 0 : index
    %c0_171 = arith.constant 0 : index
    %399 = vector.load %arg7[%c0_170, %c0_171] : memref<128x128xbf16, #tpu.memory_space<vmem>>, vector<128x128xbf16>
    %400 = arith.extf %399 : vector<128x128xbf16> to vector<128x128xf32>
    %cst_172 = arith.constant dense<0.000000e+00> : vector<8x128xf32>
    %401 = tpu.matmul %398, %400, %cst_172 {dimension_numbers = #tpu.dot_dimension_numbers<[1], [0], [0], [1], [0, 0, 1, 1], [], []>} : vector<8x128xf32>, vector<128x128xf32>, vector<8x128xf32> -> vector<8x128xf32>
    %c0_173 = arith.constant 0 : index
    %c0_174 = arith.constant 0 : index
    %402 = vector.load %arg8[%c0_173, %c0_174] : memref<1x128xf32, #tpu.memory_space<vmem>>, vector<1x128xf32>
    %403 = vector.broadcast %402 : vector<1x128xf32> to vector<8x128xf32>
    %404 = arith.addf %401, %403 : vector<8x128xf32>
    %cst_175 = arith.constant dense<0xFF800000> : vector<8xf32>
    %405 = vector.multi_reduction <maximumf>, %404, %cst_175 [1] : vector<8x128xf32> to vector<8xf32>
    %406 = vector.shape_cast %405 : vector<8xf32> to vector<8x1xf32>
    %407 = vector.broadcast %406 : vector<8x1xf32> to vector<8x128xf32>
    %408 = arith.subf %404, %407 : vector<8x128xf32>
    %409 = math.exp %408 : vector<8x128xf32>
    %cst_176 = arith.constant dense<0.000000e+00> : vector<8xf32>
    %410 = vector.multi_reduction <add>, %409, %cst_176 [1] : vector<8x128xf32> to vector<8xf32>
    %411 = vector.shape_cast %410 : vector<8xf32> to vector<8x1xf32>
    %412 = math.log %411 : vector<8x1xf32>
    %413 = vector.broadcast %412 : vector<8x1xf32> to vector<8x128xf32>
    %414 = arith.subf %408, %413 : vector<8x128xf32>
    %c0_177 = arith.constant 0 : index
    %c0_178 = arith.constant 0 : index
    %415 = vector.load %arg9[%c0_177, %c0_178] : memref<8x128xf32, #tpu.memory_space<vmem>>, vector<8x128xf32>
    tpu.vector_store %arg9[%c0_177, %c0_178], %414 {strides = array<i32>} : memref<8x128xf32, #tpu.memory_space<vmem>>, vector<8x128xf32>,
    return
  }
}

</mosaic_0001>

<llo_original>
// kernel: fwd.1
$region0: #{fwd.1}
  #allocation0 [shape = 'u32[]', space=smem, size = 0x4, offset = 0x4, fixed_abs, tag = 'smem constant byte address 0x4 - core index']
  #allocation1 [shape = 'u32[144,128]{1,0:T(1,128)}', space=vmem, size = 0x12000, scoped, tag = 'internal scratch']
  #allocation2 [shape = 'f32[8,128]{1,0:T(8,128)}', space=vmem, size = 0x1000, scoped, tag = 'scratch operand']
  #allocation3 [shape = 's32[8]{0}', space=sflag, size = 0x20, scoped, tag = 'scratch operand']
  #allocation4 [shape = 'f32[128,512]{1,0:T(8,128)}', space=vmem, size = 0x40000, scoped, tag = 'scratch operand']
  #allocation9 [shape = 's32[]', space=sflag, size = 0x4, offset = 0, fixed_abs, tag = 'sflag constant byte address 0x0 - dummy sync flag']
  #allocation10 [shape = 's32[]', space=sflag, size = 0x4, offset = 0, fixed_abs, tag = 'sflag constant byte address 0x0 - dummy sync flag']
  #allocation11 [shape = 's32[]', space=sflag, size = 0x4, offset = 0, fixed_abs, tag = 'sflag constant byte address 0x0 - dummy sync flag']
  #allocation12 [shape = 's32[]', space=sflag, size = 0x4, offset = 0, fixed_abs, tag = 'sflag constant byte address 0x0 - dummy sync flag']
  #allocation13 [shape = 's32[]', space=sflag, size = 0x4, offset = 0, fixed_abs, tag = 'sflag constant byte address 0x0 - dummy sync flag']
  #allocation14 [shape = 's32[]', space=sflag, size = 0x4, offset = 0, fixed_abs, tag = 'sflag constant byte address 0x0 - dummy sync flag']
  #allocation15 [shape = 's32[]', space=sflag, size = 0x4, offset = 0, fixed_abs, tag = 'sflag constant byte address 0x0 - dummy sync flag']
  #allocation16 [shape = 's32[]', space=sflag, size = 0x4, offset = 0, fixed_abs, tag = 'sflag constant byte address 0x0 - dummy sync flag']
  %s0 = inlined_call_operand.vmem [shape: s32[8], index: 0, kind: input, shape index: {}]
  %s1 = inlined_call_operand.vmem [shape: f32[64,128], index: 1, kind: input, shape index: {}]
  %s2 = inlined_call_operand.vmem [shape: f32[1,128], index: 2, kind: input, shape index: {}, may-alias: {2,10}]
  %s3 = inlined_call_operand.vmem [shape: f32[1,128], index: 3, kind: input, shape index: {}, may-alias: {3,11}]
  %s4 = inlined_call_operand.vmem [shape: bf16[128,512], index: 4, kind: input, shape index: {}]
  %s5 = inlined_call_operand.vmem [shape: bf16[128,512], index: 5, kind: input, shape index: {}]
  %s6 = inlined_call_operand.vmem [shape: f32[1,512], index: 6, kind: input, shape index: {}]
  %s7 = inlined_call_operand.vmem [shape: bf16[128,128], index: 7, kind: input, shape index: {}]
  %s8 = inlined_call_operand.vmem [shape: f32[1,128], index: 8, kind: input, shape index: {}]
  %s9 = inlined_call_operand.hbm [shape: f32[8,128], index: 9, kind: output, shape index: {0}]
  %s10 = inlined_call_operand.vmem [shape: f32[1,128], index: 10, kind: output, shape index: {1}, may-alias: {2,10}]
  %s11 = inlined_call_operand.vmem [shape: f32[1,128], index: 11, kind: output, shape index: {2}, may-alias: {3,11}]
  %12 = xla_tuple %s9, %s10, %s11
  %s13 = sld [smem:[#allocation0]]
  $region302: #{fwd.1} parent=0
    _
  %s15 = ssub.s32 1, %s13
  %s16 = scalar_select 0, %s15, %s13
  $region1: #{fwd.1} parent=0
    #allocation5 [shape = 'u8[512]{0}', space=smem, size = 0x200, scoped, tag = 'input window, operand 0, single buffered']
    #allocation6 [shape = 's32[1]{0}', space=sflag, size = 0x4, scoped, tag = 'scoped memory for fwd.1']
    #allocation7 [shape = 's32[1]{0}', space=sflag, size = 0x4, scoped, tag = 'scoped memory for fwd.1']
    #allocation8 [shape = 'u8[4096]{0}', space=vmem, size = 0x1000, scoped, tag = 'output window, operand 0, single buffered']
    %17 = vsyncpa [#allocation7], 0
    %18 = vsyncpa [#allocation6], 0
    // Predicated region
    $region2: #{fwd.1} parent=1 // pred_check
      _
    $region3: #{fwd.1} parent=1 // pred_check_branch
      %20 = sbr.rel (0) target = $region5
    $region4: #{fwd.1} parent=1 // pred_region
      %s22 = ssub.s32 16, 16
      %23 = vsyncadd [#allocation7], %s22
      %s25 = sshll.u32 %s0, 4
      %s26 = int_to_ptr.vmem [resolvable:$true] %s25
      %28 = dma.vmem_to_smem %s26, 16, [#allocation5], [#allocation7]
    $region5: #{fwd.1} parent=1 // pred_fallthru
      _
    // Predicated region
    $region6: #{fwd.1} parent=1 // pred_check
      _
    $region7: #{fwd.1} parent=1 // pred_check_branch
      %30 = sbr.rel (0) target = $region9
    $region8: #{fwd.1} parent=1 // pred_region
      _
    $region9: #{fwd.1} parent=1 // pred_fallthru
      _
    // Predicated region
    $region10: #{fwd.1} parent=1 // pred_check
      _
    $region11: #{fwd.1} parent=1 // pred_check_branch
      %32 = sbr.rel (0) target = $region13
    $region12: #{fwd.1} parent=1 // pred_region
      _
    $region13: #{fwd.1} parent=1 // pred_fallthru
      _
    // Predicated region
    $region14: #{fwd.1} parent=1 // pred_check
      _
    $region15: #{fwd.1} parent=1 // pred_check_branch
      %34 = sbr.rel (0) target = $region17
    $region16: #{fwd.1} parent=1 // pred_region
      _
    $region17: #{fwd.1} parent=1 // pred_fallthru
      _
    // Predicated region
    $region18: #{fwd.1} parent=1 // pred_check
      _
    $region19: #{fwd.1} parent=1 // pred_check_branch
      %36 = sbr.rel (0) target = $region21
    $region20: #{fwd.1} parent=1 // pred_region
      _
    $region21: #{fwd.1} parent=1 // pred_fallthru
      _
    // Predicated region
    $region22: #{fwd.1} parent=1 // pred_check
      _
    $region23: #{fwd.1} parent=1 // pred_check_branch
      %38 = sbr.rel (0) target = $region25
    $region24: #{fwd.1} parent=1 // pred_region
      _
    $region25: #{fwd.1} parent=1 // pred_fallthru
      _
    // Predicated region
    $region26: #{fwd.1} parent=1 // pred_check
      _
    $region27: #{fwd.1} parent=1 // pred_check_branch
      %40 = sbr.rel (0) target = $region29
    $region28: #{fwd.1} parent=1 // pred_region
      _
    $region29: #{fwd.1} parent=1 // pred_fallthru
      _
    // Predicated region
    $region30: #{fwd.1} parent=1 // pred_check
      _
    $region31: #{fwd.1} parent=1 // pred_check_branch
      %42 = sbr.rel (0) target = $region33
    $region32: #{fwd.1} parent=1 // pred_region
      _
    $region33: #{fwd.1} parent=1 // pred_fallthru
      _
    // Predicated region
    $region34: #{fwd.1} parent=1 // pred_check
      _
    $region35: #{fwd.1} parent=1 // pred_check_branch
      %44 = sbr.rel (0) target = $region37
    $region36: #{fwd.1} parent=1 // pred_region
      %45 = dma.done [#allocation7], 16
    $region37: #{fwd.1} parent=1 // pred_fallthru
      _
    %46 = sfence
    %s47 = sld [smem:[#allocation5]]
    %s48 = scalar_lea.vmem %s1, %s47
    %p50 = scmp.lt.u32.totalorder 1, 8
    %p51 = pneg %p50
    // Predicated region
    $region38: #{fwd.1} parent=1 // pred_check
      _
    $region39: #{fwd.1} parent=1 // pred_check_branch
      %53 = sbr.rel (%p50) target = $region41
    $region40: #{fwd.1} parent=1 // pred_region
      %s68 = sand.u32 1, 7
      %p69 = scmp.eq.s32.totalorder %s68, 0
      %p70 = pneg %p69
      // Predicated region
      $region53: #{fwd.1} parent=40 // pred_check
        _
      $region54: #{fwd.1} parent=40 // pred_check_branch
        %72 = sbr.rel (%p69) target = $region56
      $region55: #{fwd.1} parent=40 // pred_region
        %s73 = sand.u32 1, 7
        %s74 = ssub.s32 1, %s73
        %s75 = scalar_lea.vmem %s48, %s74
        %s76 = ssub.s32 1, %s73
        %s77 = scalar_lea.vmem [#allocation2], %s76
        %s78 = sshllo.u32 0, %s73
        loop: start=0, step=1, limit=1
        $region57: #{fwd.1} parent=55 // loop_pre_header
          _
        $region58: #{fwd.1} parent=55 // loop_header
          %s80 = sphi 0, %s84
          %p81 = scmp.ge.s32.totalorder %s80, 1
          %s85 = sphi %s75, %s75
          %s86 = sphi %s77, %s77
        $region59: #{fwd.1} parent=55 // loop_header_branch
          %83 = sbr.rel (%p81) target = $region63
        $region60: #{fwd.1} parent=55 // loop_body
          %v87 = vld [vmem:[%s85] sm:%s78]
          %88 = vst [vmem:[%s86] sm:%s78] %v87
        $region61: #{fwd.1} parent=55 // loop_footer
          %s84 = sadd.s32 1, %s80
        $region62: #{fwd.1} parent=55 // loop_footer_branch
          %79 = sbr.rel target = $region58
        $region63: #{fwd.1} parent=55 // loop_exit
          _
      $region56: #{fwd.1} parent=40 // pred_fallthru
        _
    $region41: #{fwd.1} parent=1 // pred_fallthru
      _
    // Predicated region
    $region42: #{fwd.1} parent=1 // pred_check
      %p54 = pneg %p50
    $region43: #{fwd.1} parent=1 // pred_check_branch
      %56 = sbr.rel (%p54) target = $region45
    $region44: #{fwd.1} parent=1 // pred_region
      %s57 = sshllo.u32 0, 1
      loop: start=0, step=1, limit=1
      $region46: #{fwd.1} parent=44 // loop_pre_header
        _
      $region47: #{fwd.1} parent=44 // loop_header
        %s59 = sphi 0, %s63
        %p60 = scmp.ge.s32.totalorder %s59, 1
        %s64 = sphi %s48, %s48
        %s65 = sphi [#allocation2], [#allocation2]
      $region48: #{fwd.1} parent=44 // loop_header_branch
        %62 = sbr.rel (%p60) target = $region52
      $region49: #{fwd.1} parent=44 // loop_body
        %v66 = vld [vmem:[%s64] sm:%s57]
        %67 = vst [vmem:[%s65] sm:%s57] %v66
      $region50: #{fwd.1} parent=44 // loop_footer
        %s63 = sadd.s32 1, %s59
      $region51: #{fwd.1} parent=44 // loop_footer_branch
        %58 = sbr.rel target = $region47
      $region52: #{fwd.1} parent=44 // loop_exit
        _
    $region45: #{fwd.1} parent=1 // pred_fallthru
      _
    // Predicated region
    $region64: #{fwd.1} parent=1 // pred_check
      _
    $region65: #{fwd.1} parent=1 // pred_check_branch
      %91 = sbr.rel (0) target = $region67
    $region66: #{fwd.1} parent=1 // pred_region
      %92 = vsyncadd [#allocation3], 16
    $region67: #{fwd.1} parent=1 // pred_fallthru
      _
    %s93 = sld [smem:[#allocation5 + $0x1]]
    %s94 = scalar_lea.vmem %s1, %s93
    %s95 = scalar_lea.vmem [#allocation2], 1
    %s96 = scalar_lea.sflag [#allocation3], 1
    %p98 = scmp.lt.u32.totalorder 1, 8
    %p99 = pneg %p98
    // Predicated region
    $region68: #{fwd.1} parent=1 // pred_check
      _
    $region69: #{fwd.1} parent=1 // pred_check_branch
      %101 = sbr.rel (%p98) target = $region71
    $region70: #{fwd.1} parent=1 // pred_region
      %s116 = sand.u32 1, 7
      %p117 = scmp.eq.s32.totalorder %s116, 0
      %p118 = pneg %p117
      // Predicated region
      $region83: #{fwd.1} parent=70 // pred_check
        _
      $region84: #{fwd.1} parent=70 // pred_check_branch
        %120 = sbr.rel (%p117) target = $region86
      $region85: #{fwd.1} parent=70 // pred_region
        %s121 = sand.u32 1, 7
        %s122 = ssub.s32 1, %s121
        %s123 = scalar_lea.vmem %s94, %s122
        %s124 = ssub.s32 1, %s121
        %s125 = scalar_lea.vmem %s95, %s124 [#allocation2]
        %s126 = sshllo.u32 0, %s121
        loop: start=0, step=1, limit=1
        $region87: #{fwd.1} parent=85 // loop_pre_header
          _
        $region88: #{fwd.1} parent=85 // loop_header
          %s128 = sphi 0, %s132
          %p129 = scmp.ge.s32.totalorder %s128, 1
          %s133 = sphi %s123, %s123
          %s134 = sphi %s125, %s125
        $region89: #{fwd.1} parent=85 // loop_header_branch
          %131 = sbr.rel (%p129) target = $region93
        $region90: #{fwd.1} parent=85 // loop_body
          %v135 = vld [vmem:[%s133] sm:%s126]
          %136 = vst [vmem:[%s134] sm:%s126] %v135
        $region91: #{fwd.1} parent=85 // loop_footer
          %s132 = sadd.s32 1, %s128
        $region92: #{fwd.1} parent=85 // loop_footer_branch
          %127 = sbr.rel target = $region88
        $region93: #{fwd.1} parent=85 // loop_exit
          _
      $region86: #{fwd.1} parent=70 // pred_fallthru
        _
    $region71: #{fwd.1} parent=1 // pred_fallthru
      _
    // Predicated region
    $region72: #{fwd.1} parent=1 // pred_check
      %p102 = pneg %p98
    $region73: #{fwd.1} parent=1 // pred_check_branch
      %104 = sbr.rel (%p102) target = $region75
    $region74: #{fwd.1} parent=1 // pred_region
      %s105 = sshllo.u32 0, 1
      loop: start=0, step=1, limit=1
      $region76: #{fwd.1} parent=74 // loop_pre_header
        _
      $region77: #{fwd.1} parent=74 // loop_header
        %s107 = sphi 0, %s111
        %p108 = scmp.ge.s32.totalorder %s107, 1
        %s112 = sphi %s94, %s94
        %s113 = sphi %s95, %s95
      $region78: #{fwd.1} parent=74 // loop_header_branch
        %110 = sbr.rel (%p108) target = $region82
      $region79: #{fwd.1} parent=74 // loop_body
        %v114 = vld [vmem:[%s112] sm:%s105]
        %115 = vst [vmem:[%s113] sm:%s105] %v114
      $region80: #{fwd.1} parent=74 // loop_footer
        %s111 = sadd.s32 1, %s107
      $region81: #{fwd.1} parent=74 // loop_footer_branch
        %106 = sbr.rel target = $region77
      $region82: #{fwd.1} parent=74 // loop_exit
        _
    $region75: #{fwd.1} parent=1 // pred_fallthru
      _
    // Predicated region
    $region94: #{fwd.1} parent=1 // pred_check
      _
    $region95: #{fwd.1} parent=1 // pred_check_branch
      %139 = sbr.rel (0) target = $region97
    $region96: #{fwd.1} parent=1 // pred_region
      %140 = vsyncadd %s96, 16
    $region97: #{fwd.1} parent=1 // pred_fallthru
      _
    %s141 = sld [smem:[#allocation5 + $0x2]]
    %s142 = scalar_lea.vmem %s1, %s141
    %s143 = scalar_lea.vmem [#allocation2], 2
    %s144 = scalar_lea.sflag [#allocation3], 2
    %p146 = scmp.lt.u32.totalorder 1, 8
    %p147 = pneg %p146
    // Predicated region
    $region98: #{fwd.1} parent=1 // pred_check
      _
    $region99: #{fwd.1} parent=1 // pred_check_branch
      %149 = sbr.rel (%p146) target = $region101
    $region100: #{fwd.1} parent=1 // pred_region
      %s164 = sand.u32 1, 7
      %p165 = scmp.eq.s32.totalorder %s164, 0
      %p166 = pneg %p165
      // Predicated region
      $region113: #{fwd.1} parent=100 // pred_check
        _
      $region114: #{fwd.1} parent=100 // pred_check_branch
        %168 = sbr.rel (%p165) target = $region116
      $region115: #{fwd.1} parent=100 // pred_region
        %s169 = sand.u32 1, 7
        %s170 = ssub.s32 1, %s169
        %s171 = scalar_lea.vmem %s142, %s170
        %s172 = ssub.s32 1, %s169
        %s173 = scalar_lea.vmem %s143, %s172 [#allocation2]
        %s174 = sshllo.u32 0, %s169
        loop: start=0, step=1, limit=1
        $region117: #{fwd.1} parent=115 // loop_pre_header
          _
        $region118: #{fwd.1} parent=115 // loop_header
          %s176 = sphi 0, %s180
          %p177 = scmp.ge.s32.totalorder %s176, 1
          %s181 = sphi %s171, %s171
          %s182 = sphi %s173, %s173
        $region119: #{fwd.1} parent=115 // loop_header_branch
          %179 = sbr.rel (%p177) target = $region123
        $region120: #{fwd.1} parent=115 // loop_body
          %v183 = vld [vmem:[%s181] sm:%s174]
          %184 = vst [vmem:[%s182] sm:%s174] %v183
        $region121: #{fwd.1} parent=115 // loop_footer
          %s180 = sadd.s32 1, %s176
        $region122: #{fwd.1} parent=115 // loop_footer_branch
          %175 = sbr.rel target = $region118
        $region123: #{fwd.1} parent=115 // loop_exit
          _
      $region116: #{fwd.1} parent=100 // pred_fallthru
        _
    $region101: #{fwd.1} parent=1 // pred_fallthru
      _
    // Predicated region
    $region102: #{fwd.1} parent=1 // pred_check
      %p150 = pneg %p146
    $region103: #{fwd.1} parent=1 // pred_check_branch
      %152 = sbr.rel (%p150) target = $region105
    $region104: #{fwd.1} parent=1 // pred_region
      %s153 = sshllo.u32 0, 1
      loop: start=0, step=1, limit=1
      $region106: #{fwd.1} parent=104 // loop_pre_header
        _
      $region107: #{fwd.1} parent=104 // loop_header
        %s155 = sphi 0, %s159
        %p156 = scmp.ge.s32.totalorder %s155, 1
        %s160 = sphi %s142, %s142
        %s161 = sphi %s143, %s143
      $region108: #{fwd.1} parent=104 // loop_header_branch
        %158 = sbr.rel (%p156) target = $region112
      $region109: #{fwd.1} parent=104 // loop_body
        %v162 = vld [vmem:[%s160] sm:%s153]
        %163 = vst [vmem:[%s161] sm:%s153] %v162
      $region110: #{fwd.1} parent=104 // loop_footer
        %s159 = sadd.s32 1, %s155
      $region111: #{fwd.1} parent=104 // loop_footer_branch
        %154 = sbr.rel target = $region107
      $region112: #{fwd.1} parent=104 // loop_exit
        _
    $region105: #{fwd.1} parent=1 // pred_fallthru
      _
    // Predicated region
    $region124: #{fwd.1} parent=1 // pred_check
      _
    $region125: #{fwd.1} parent=1 // pred_check_branch
      %187 = sbr.rel (0) target = $region127
    $region126: #{fwd.1} parent=1 // pred_region
      %188 = vsyncadd %s144, 16
    $region127: #{fwd.1} parent=1 // pred_fallthru
      _
    %s189 = sld [smem:[#allocation5 + $0x3]]
    %s190 = scalar_lea.vmem %s1, %s189
    %s191 = scalar_lea.vmem [#allocation2], 3
    %s192 = scalar_lea.sflag [#allocation3], 3
    %p194 = scmp.lt.u32.totalorder 1, 8
    %p195 = pneg %p194
    // Predicated region
    $region128: #{fwd.1} parent=1 // pred_check
      _
    $region129: #{fwd.1} parent=1 // pred_check_branch
      %197 = sbr.rel (%p194) target = $region131
    $region130: #{fwd.1} parent=1 // pred_region
      %s212 = sand.u32 1, 7
      %p213 = scmp.eq.s32.totalorder %s212, 0
      %p214 = pneg %p213
      // Predicated region
      $region143: #{fwd.1} parent=130 // pred_check
        _
      $region144: #{fwd.1} parent=130 // pred_check_branch
        %216 = sbr.rel (%p213) target = $region146
      $region145: #{fwd.1} parent=130 // pred_region
        %s217 = sand.u32 1, 7
        %s218 = ssub.s32 1, %s217
        %s219 = scalar_lea.vmem %s190, %s218
        %s220 = ssub.s32 1, %s217
        %s221 = scalar_lea.vmem %s191, %s220 [#allocation2]
        %s222 = sshllo.u32 0, %s217
        loop: start=0, step=1, limit=1
        $region147: #{fwd.1} parent=145 // loop_pre_header
          _
        $region148: #{fwd.1} parent=145 // loop_header
          %s224 = sphi 0, %s228
          %p225 = scmp.ge.s32.totalorder %s224, 1
          %s229 = sphi %s219, %s219
          %s230 = sphi %s221, %s221
        $region149: #{fwd.1} parent=145 // loop_header_branch
          %227 = sbr.rel (%p225) target = $region153
        $region150: #{fwd.1} parent=145 // loop_body
          %v231 = vld [vmem:[%s229] sm:%s222]
          %232 = vst [vmem:[%s230] sm:%s222] %v231
        $region151: #{fwd.1} parent=145 // loop_footer
          %s228 = sadd.s32 1, %s224
        $region152: #{fwd.1} parent=145 // loop_footer_branch
          %223 = sbr.rel target = $region148
        $region153: #{fwd.1} parent=145 // loop_exit
          _
      $region146: #{fwd.1} parent=130 // pred_fallthru
        _
    $region131: #{fwd.1} parent=1 // pred_fallthru
      _
    // Predicated region
    $region132: #{fwd.1} parent=1 // pred_check
      %p198 = pneg %p194
    $region133: #{fwd.1} parent=1 // pred_check_branch
      %200 = sbr.rel (%p198) target = $region135
    $region134: #{fwd.1} parent=1 // pred_region
      %s201 = sshllo.u32 0, 1
      loop: start=0, step=1, limit=1
      $region136: #{fwd.1} parent=134 // loop_pre_header
        _
      $region137: #{fwd.1} parent=134 // loop_header
        %s203 = sphi 0, %s207
        %p204 = scmp.ge.s32.totalorder %s203, 1
        %s208 = sphi %s190, %s190
        %s209 = sphi %s191, %s191
      $region138: #{fwd.1} parent=134 // loop_header_branch
        %206 = sbr.rel (%p204) target = $region142
      $region139: #{fwd.1} parent=134 // loop_body
        %v210 = vld [vmem:[%s208] sm:%s201]
        %211 = vst [vmem:[%s209] sm:%s201] %v210
      $region140: #{fwd.1} parent=134 // loop_footer
        %s207 = sadd.s32 1, %s203
      $region141: #{fwd.1} parent=134 // loop_footer_branch
        %202 = sbr.rel target = $region137
      $region142: #{fwd.1} parent=134 // loop_exit
        _
    $region135: #{fwd.1} parent=1 // pred_fallthru
      _
    // Predicated region
    $region154: #{fwd.1} parent=1 // pred_check
      _
    $region155: #{fwd.1} parent=1 // pred_check_branch
      %235 = sbr.rel (0) target = $region157
    $region156: #{fwd.1} parent=1 // pred_region
      %236 = vsyncadd %s192, 16
    $region157: #{fwd.1} parent=1 // pred_fallthru
      _
    %s237 = sld [smem:[#allocation5 + $0x4]]
    %s238 = scalar_lea.vmem %s1, %s237
    %s239 = scalar_lea.vmem [#allocation2], 4
    %s240 = scalar_lea.sflag [#allocation3], 4
    %p242 = scmp.lt.u32.totalorder 1, 8
    %p243 = pneg %p242
    // Predicated region
    $region158: #{fwd.1} parent=1 // pred_check
      _
    $region159: #{fwd.1} parent=1 // pred_check_branch
      %245 = sbr.rel (%p242) target = $region161
    $region160: #{fwd.1} parent=1 // pred_region
      %s260 = sand.u32 1, 7
      %p261 = scmp.eq.s32.totalorder %s260, 0
      %p262 = pneg %p261
      // Predicated region
      $region173: #{fwd.1} parent=160 // pred_check
        _
      $region174: #{fwd.1} parent=160 // pred_check_branch
        %264 = sbr.rel (%p261) target = $region176
      $region175: #{fwd.1} parent=160 // pred_region
        %s265 = sand.u32 1, 7
        %s266 = ssub.s32 1, %s265
        %s267 = scalar_lea.vmem %s238, %s266
        %s268 = ssub.s32 1, %s265
        %s269 = scalar_lea.vmem %s239, %s268 [#allocation2]
        %s270 = sshllo.u32 0, %s265
        loop: start=0, step=1, limit=1
        $region177: #{fwd.1} parent=175 // loop_pre_header
          _
        $region178: #{fwd.1} parent=175 // loop_header
          %s272 = sphi 0, %s276
          %p273 = scmp.ge.s32.totalorder %s272, 1
          %s277 = sphi %s267, %s267
          %s278 = sphi %s269, %s269
        $region179: #{fwd.1} parent=175 // loop_header_branch
          %275 = sbr.rel (%p273) target = $region183
        $region180: #{fwd.1} parent=175 // loop_body
          %v279 = vld [vmem:[%s277] sm:%s270]
          %280 = vst [vmem:[%s278] sm:%s270] %v279
        $region181: #{fwd.1} parent=175 // loop_footer
          %s276 = sadd.s32 1, %s272
        $region182: #{fwd.1} parent=175 // loop_footer_branch
          %271 = sbr.rel target = $region178
        $region183: #{fwd.1} parent=175 // loop_exit
          _
      $region176: #{fwd.1} parent=160 // pred_fallthru
        _
    $region161: #{fwd.1} parent=1 // pred_fallthru
      _
    // Predicated region
    $region162: #{fwd.1} parent=1 // pred_check
      %p246 = pneg %p242
    $region163: #{fwd.1} parent=1 // pred_check_branch
      %248 = sbr.rel (%p246) target = $region165
    $region164: #{fwd.1} parent=1 // pred_region
      %s249 = sshllo.u32 0, 1
      loop: start=0, step=1, limit=1
      $region166: #{fwd.1} parent=164 // loop_pre_header
        _
      $region167: #{fwd.1} parent=164 // loop_header
        %s251 = sphi 0, %s255
        %p252 = scmp.ge.s32.totalorder %s251, 1
        %s256 = sphi %s238, %s238
        %s257 = sphi %s239, %s239
      $region168: #{fwd.1} parent=164 // loop_header_branch
        %254 = sbr.rel (%p252) target = $region172
      $region169: #{fwd.1} parent=164 // loop_body
        %v258 = vld [vmem:[%s256] sm:%s249]
        %259 = vst [vmem:[%s257] sm:%s249] %v258
      $region170: #{fwd.1} parent=164 // loop_footer
        %s255 = sadd.s32 1, %s251
      $region171: #{fwd.1} parent=164 // loop_footer_branch
        %250 = sbr.rel target = $region167
      $region172: #{fwd.1} parent=164 // loop_exit
        _
    $region165: #{fwd.1} parent=1 // pred_fallthru
      _
    // Predicated region
    $region184: #{fwd.1} parent=1 // pred_check
      _
    $region185: #{fwd.1} parent=1 // pred_check_branch
      %283 = sbr.rel (0) target = $region187
    $region186: #{fwd.1} parent=1 // pred_region
      %284 = vsyncadd %s240, 16
    $region187: #{fwd.1} parent=1 // pred_fallthru
      _
    %s285 = sld [smem:[#allocation5 + $0x5]]
    %s286 = scalar_lea.vmem %s1, %s285
    %s287 = scalar_lea.vmem [#allocation2], 5
    %s288 = scalar_lea.sflag [#allocation3], 5
    %p290 = scmp.lt.u32.totalorder 1, 8
    %p291 = pneg %p290
    // Predicated region
    $region188: #{fwd.1} parent=1 // pred_check
      _
    $region189: #{fwd.1} parent=1 // pred_check_branch
      %293 = sbr.rel (%p290) target = $region191
    $region190: #{fwd.1} parent=1 // pred_region
      %s308 = sand.u32 1, 7
      %p309 = scmp.eq.s32.totalorder %s308, 0
      %p310 = pneg %p309
      // Predicated region
      $region203: #{fwd.1} parent=190 // pred_check
        _
      $region204: #{fwd.1} parent=190 // pred_check_branch
        %312 = sbr.rel (%p309) target = $region206
      $region205: #{fwd.1} parent=190 // pred_region
        %s313 = sand.u32 1, 7
        %s314 = ssub.s32 1, %s313
        %s315 = scalar_lea.vmem %s286, %s314
        %s316 = ssub.s32 1, %s313
        %s317 = scalar_lea.vmem %s287, %s316 [#allocation2]
        %s318 = sshllo.u32 0, %s313
        loop: start=0, step=1, limit=1
        $region207: #{fwd.1} parent=205 // loop_pre_header
          _
        $region208: #{fwd.1} parent=205 // loop_header
          %s320 = sphi 0, %s324
          %p321 = scmp.ge.s32.totalorder %s320, 1
          %s325 = sphi %s315, %s315
          %s326 = sphi %s317, %s317
        $region209: #{fwd.1} parent=205 // loop_header_branch
          %323 = sbr.rel (%p321) target = $region213
        $region210: #{fwd.1} parent=205 // loop_body
          %v327 = vld [vmem:[%s325] sm:%s318]
          %328 = vst [vmem:[%s326] sm:%s318] %v327
        $region211: #{fwd.1} parent=205 // loop_footer
          %s324 = sadd.s32 1, %s320
        $region212: #{fwd.1} parent=205 // loop_footer_branch
          %319 = sbr.rel target = $region208
        $region213: #{fwd.1} parent=205 // loop_exit
          _
      $region206: #{fwd.1} parent=190 // pred_fallthru
        _
    $region191: #{fwd.1} parent=1 // pred_fallthru
      _
    // Predicated region
    $region192: #{fwd.1} parent=1 // pred_check
      %p294 = pneg %p290
    $region193: #{fwd.1} parent=1 // pred_check_branch
      %296 = sbr.rel (%p294) target = $region195
    $region194: #{fwd.1} parent=1 // pred_region
      %s297 = sshllo.u32 0, 1
      loop: start=0, step=1, limit=1
      $region196: #{fwd.1} parent=194 // loop_pre_header
        _
      $region197: #{fwd.1} parent=194 // loop_header
        %s299 = sphi 0, %s303
        %p300 = scmp.ge.s32.totalorder %s299, 1
        %s304 = sphi %s286, %s286
        %s305 = sphi %s287, %s287
      $region198: #{fwd.1} parent=194 // loop_header_branch
        %302 = sbr.rel (%p300) target = $region202
      $region199: #{fwd.1} parent=194 // loop_body
        %v306 = vld [vmem:[%s304] sm:%s297]
        %307 = vst [vmem:[%s305] sm:%s297] %v306
      $region200: #{fwd.1} parent=194 // loop_footer
        %s303 = sadd.s32 1, %s299
      $region201: #{fwd.1} parent=194 // loop_footer_branch
        %298 = sbr.rel target = $region197
      $region202: #{fwd.1} parent=194 // loop_exit
        _
    $region195: #{fwd.1} parent=1 // pred_fallthru
      _
    // Predicated region
    $region214: #{fwd.1} parent=1 // pred_check
      _
    $region215: #{fwd.1} parent=1 // pred_check_branch
      %331 = sbr.rel (0) target = $region217
    $region216: #{fwd.1} parent=1 // pred_region
      %332 = vsyncadd %s288, 16
    $region217: #{fwd.1} parent=1 // pred_fallthru
      _
    %s333 = sld [smem:[#allocation5 + $0x6]]
    %s334 = scalar_lea.vmem %s1, %s333
    %s335 = scalar_lea.vmem [#allocation2], 6
    %s336 = scalar_lea.sflag [#allocation3], 6
    %p338 = scmp.lt.u32.totalorder 1, 8
    %p339 = pneg %p338
    // Predicated region
    $region218: #{fwd.1} parent=1 // pred_check
      _
    $region219: #{fwd.1} parent=1 // pred_check_branch
      %341 = sbr.rel (%p338) target = $region221
    $region220: #{fwd.1} parent=1 // pred_region
      %s356 = sand.u32 1, 7
      %p357 = scmp.eq.s32.totalorder %s356, 0
      %p358 = pneg %p357
      // Predicated region
      $region233: #{fwd.1} parent=220 // pred_check
        _
      $region234: #{fwd.1} parent=220 // pred_check_branch
        %360 = sbr.rel (%p357) target = $region236
      $region235: #{fwd.1} parent=220 // pred_region
        %s361 = sand.u32 1, 7
        %s362 = ssub.s32 1, %s361
        %s363 = scalar_lea.vmem %s334, %s362
        %s364 = ssub.s32 1, %s361
        %s365 = scalar_lea.vmem %s335, %s364 [#allocation2]
        %s366 = sshllo.u32 0, %s361
        loop: start=0, step=1, limit=1
        $region237: #{fwd.1} parent=235 // loop_pre_header
          _
        $region238: #{fwd.1} parent=235 // loop_header
          %s368 = sphi 0, %s372
          %p369 = scmp.ge.s32.totalorder %s368, 1
          %s373 = sphi %s363, %s363
          %s374 = sphi %s365, %s365
        $region239: #{fwd.1} parent=235 // loop_header_branch
          %371 = sbr.rel (%p369) target = $region243
        $region240: #{fwd.1} parent=235 // loop_body
          %v375 = vld [vmem:[%s373] sm:%s366]
          %376 = vst [vmem:[%s374] sm:%s366] %v375
        $region241: #{fwd.1} parent=235 // loop_footer
          %s372 = sadd.s32 1, %s368
        $region242: #{fwd.1} parent=235 // loop_footer_branch
          %367 = sbr.rel target = $region238
        $region243: #{fwd.1} parent=235 // loop_exit
          _
      $region236: #{fwd.1} parent=220 // pred_fallthru
        _
    $region221: #{fwd.1} parent=1 // pred_fallthru
      _
    // Predicated region
    $region222: #{fwd.1} parent=1 // pred_check
      %p342 = pneg %p338
    $region223: #{fwd.1} parent=1 // pred_check_branch
      %344 = sbr.rel (%p342) target = $region225
    $region224: #{fwd.1} parent=1 // pred_region
      %s345 = sshllo.u32 0, 1
      loop: start=0, step=1, limit=1
      $region226: #{fwd.1} parent=224 // loop_pre_header
        _
      $region227: #{fwd.1} parent=224 // loop_header
        %s347 = sphi 0, %s351
        %p348 = scmp.ge.s32.totalorder %s347, 1
        %s352 = sphi %s334, %s334
        %s353 = sphi %s335, %s335
      $region228: #{fwd.1} parent=224 // loop_header_branch
        %350 = sbr.rel (%p348) target = $region232
      $region229: #{fwd.1} parent=224 // loop_body
        %v354 = vld [vmem:[%s352] sm:%s345]
        %355 = vst [vmem:[%s353] sm:%s345] %v354
      $region230: #{fwd.1} parent=224 // loop_footer
        %s351 = sadd.s32 1, %s347
      $region231: #{fwd.1} parent=224 // loop_footer_branch
        %346 = sbr.rel target = $region227
      $region232: #{fwd.1} parent=224 // loop_exit
        _
    $region225: #{fwd.1} parent=1 // pred_fallthru
      _
    // Predicated region
    $region244: #{fwd.1} parent=1 // pred_check
      _
    $region245: #{fwd.1} parent=1 // pred_check_branch
      %379 = sbr.rel (0) target = $region247
    $region246: #{fwd.1} parent=1 // pred_region
      %380 = vsyncadd %s336, 16
    $region247: #{fwd.1} parent=1 // pred_fallthru
      _
    %s381 = sld [smem:[#allocation5 + $0x7]]
    %s382 = scalar_lea.vmem %s1, %s381
    %s383 = scalar_lea.vmem [#allocation2], 7
    %s384 = scalar_lea.sflag [#allocation3], 7
    %p386 = scmp.lt.u32.totalorder 1, 8
    %p387 = pneg %p386
    // Predicated region
    $region248: #{fwd.1} parent=1 // pred_check
      _
    $region249: #{fwd.1} parent=1 // pred_check_branch
      %389 = sbr.rel (%p386) target = $region251
    $region250: #{fwd.1} parent=1 // pred_region
      %s404 = sand.u32 1, 7
      %p405 = scmp.eq.s32.totalorder %s404, 0
      %p406 = pneg %p405
      // Predicated region
      $region263: #{fwd.1} parent=250 // pred_check
        _
      $region264: #{fwd.1} parent=250 // pred_check_branch
        %408 = sbr.rel (%p405) target = $region266
      $region265: #{fwd.1} parent=250 // pred_region
        %s409 = sand.u32 1, 7
        %s410 = ssub.s32 1, %s409
        %s411 = scalar_lea.vmem %s382, %s410
        %s412 = ssub.s32 1, %s409
        %s413 = scalar_lea.vmem %s383, %s412 [#allocation2]
        %s414 = sshllo.u32 0, %s409
        loop: start=0, step=1, limit=1
        $region267: #{fwd.1} parent=265 // loop_pre_header
          _
        $region268: #{fwd.1} parent=265 // loop_header
          %s416 = sphi 0, %s420
          %p417 = scmp.ge.s32.totalorder %s416, 1
          %s421 = sphi %s411, %s411
          %s422 = sphi %s413, %s413
        $region269: #{fwd.1} parent=265 // loop_header_branch
          %419 = sbr.rel (%p417) target = $region273
        $region270: #{fwd.1} parent=265 // loop_body
          %v423 = vld [vmem:[%s421] sm:%s414]
          %424 = vst [vmem:[%s422] sm:%s414] %v423
        $region271: #{fwd.1} parent=265 // loop_footer
          %s420 = sadd.s32 1, %s416
        $region272: #{fwd.1} parent=265 // loop_footer_branch
          %415 = sbr.rel target = $region268
        $region273: #{fwd.1} parent=265 // loop_exit
          _
      $region266: #{fwd.1} parent=250 // pred_fallthru
        _
    $region251: #{fwd.1} parent=1 // pred_fallthru
      _
    // Predicated region
    $region252: #{fwd.1} parent=1 // pred_check
      %p390 = pneg %p386
    $region253: #{fwd.1} parent=1 // pred_check_branch
      %392 = sbr.rel (%p390) target = $region255
    $region254: #{fwd.1} parent=1 // pred_region
      %s393 = sshllo.u32 0, 1
      loop: start=0, step=1, limit=1
      $region256: #{fwd.1} parent=254 // loop_pre_header
        _
      $region257: #{fwd.1} parent=254 // loop_header
        %s395 = sphi 0, %s399
        %p396 = scmp.ge.s32.totalorder %s395, 1
        %s400 = sphi %s382, %s382
        %s401 = sphi %s383, %s383
      $region258: #{fwd.1} parent=254 // loop_header_branch
        %398 = sbr.rel (%p396) target = $region262
      $region259: #{fwd.1} parent=254 // loop_body
        %v402 = vld [vmem:[%s400] sm:%s393]
        %403 = vst [vmem:[%s401] sm:%s393] %v402
      $region260: #{fwd.1} parent=254 // loop_footer
        %s399 = sadd.s32 1, %s395
      $region261: #{fwd.1} parent=254 // loop_footer_branch
        %394 = sbr.rel target = $region257
      $region262: #{fwd.1} parent=254 // loop_exit
        _
    $region255: #{fwd.1} parent=1 // pred_fallthru
      _
    // Predicated region
    $region274: #{fwd.1} parent=1 // pred_check
      _
    $region275: #{fwd.1} parent=1 // pred_check_branch
      %427 = sbr.rel (0) target = $region277
    $region276: #{fwd.1} parent=1 // pred_region
      %428 = vsyncadd %s384, 16
    $region277: #{fwd.1} parent=1 // pred_fallthru
      _
    %v429 = vld [vmem:[%s5] sm:$0xff]
    %v430 = vld [vmem:[%s5 + $0x8] sm:$0xff]
    %v431 = vld [vmem:[%s5 + $0x10] sm:$0xff]
    %v432 = vld [vmem:[%s5 + $0x18] sm:$0xff]
    %v433 = vld [vmem:[%s5 + $0x20] sm:$0xff]
    %v434 = vld [vmem:[%s5 + $0x28] sm:$0xff]
    %v435 = vld [vmem:[%s5 + $0x30] sm:$0xff]
    %v436 = vld [vmem:[%s5 + $0x38] sm:$0xff]
    %v437 = vld [vmem:[%s5 + $0x40] sm:$0xff]
    %v438 = vld [vmem:[%s5 + $0x48] sm:$0xff]
    %v439 = vld [vmem:[%s5 + $0x50] sm:$0xff]
    %v440 = vld [vmem:[%s5 + $0x58] sm:$0xff]
    %v441 = vld [vmem:[%s5 + $0x60] sm:$0xff]
    %v442 = vld [vmem:[%s5 + $0x68] sm:$0xff]
    %v443 = vld [vmem:[%s5 + $0x70] sm:$0xff]
    %v444 = vld [vmem:[%s5 + $0x78] sm:$0xff]
    %v445 = vld [vmem:[%s5 + $0x80] sm:$0xff]
    %v446 = vld [vmem:[%s5 + $0x88] sm:$0xff]
    %v447 = vld [vmem:[%s5 + $0x90] sm:$0xff]
    %v448 = vld [vmem:[%s5 + $0x98] sm:$0xff]
    %v449 = vld [vmem:[%s5 + $0xa0] sm:$0xff]
    %v450 = vld [vmem:[%s5 + $0xa8] sm:$0xff]
    %v451 = vld [vmem:[%s5 + $0xb0] sm:$0xff]
    %v452 = vld [vmem:[%s5 + $0xb8] sm:$0xff]
    %v453 = vld [vmem:[%s5 + $0xc0] sm:$0xff]
    %v454 = vld [vmem:[%s5 + $0xc8] sm:$0xff]
    %v455 = vld [vmem:[%s5 + $0xd0] sm:$0xff]
    %v456 = vld [vmem:[%s5 + $0xd8] sm:$0xff]
    %v457 = vld [vmem:[%s5 + $0xe0] sm:$0xff]
    %v458 = vld [vmem:[%s5 + $0xe8] sm:$0xff]
    %v459 = vld [vmem:[%s5 + $0xf0] sm:$0xff]
    %v460 = vld [vmem:[%s5 + $0xf8] sm:$0xff]
    %v461 = vunpack.c.l.bf16 %v429
    %v462 = vunpack.c.h.bf16 %v429
    %v463 = vunpack.c.l.bf16 %v430
    %v464 = vunpack.c.h.bf16 %v430
    %v465 = vunpack.c.l.bf16 %v431
    %v466 = vunpack.c.h.bf16 %v431
    %v467 = vunpack.c.l.bf16 %v432
    %v468 = vunpack.c.h.bf16 %v432
    %v469 = vunpack.c.l.bf16 %v433
    %v470 = vunpack.c.h.bf16 %v433
    %v471 = vunpack.c.l.bf16 %v434
    %v472 = vunpack.c.h.bf16 %v434
    %v473 = vunpack.c.l.bf16 %v435
    %v474 = vunpack.c.h.bf16 %v435
    %v475 = vunpack.c.l.bf16 %v436
    %v476 = vunpack.c.h.bf16 %v436
    %v477 = vunpack.c.l.bf16 %v437
    %v478 = vunpack.c.h.bf16 %v437
    %v479 = vunpack.c.l.bf16 %v438
    %v480 = vunpack.c.h.bf16 %v438
    %v481 = vunpack.c.l.bf16 %v439
    %v482 = vunpack.c.h.bf16 %v439
    %v483 = vunpack.c.l.bf16 %v440
    %v484 = vunpack.c.h.bf16 %v440
    %v485 = vunpack.c.l.bf16 %v441
    %v486 = vunpack.c.h.bf16 %v441
    %v487 = vunpack.c.l.bf16 %v442
    %v488 = vunpack.c.h.bf16 %v442
    %v489 = vunpack.c.l.bf16 %v443
    %v490 = vunpack.c.h.bf16 %v443
    %v491 = vunpack.c.l.bf16 %v444
    %v492 = vunpack.c.h.bf16 %v444
    %v493 = vunpack.c.l.bf16 %v445
    %v494 = vunpack.c.h.bf16 %v445
    %v495 = vunpack.c.l.bf16 %v446
    %v496 = vunpack.c.h.bf16 %v446
    %v497 = vunpack.c.l.bf16 %v447
    %v498 = vunpack.c.h.bf16 %v447
    %v499 = vunpack.c.l.bf16 %v448
    %v500 = vunpack.c.h.bf16 %v448
    %v501 = vunpack.c.l.bf16 %v449
    %v502 = vunpack.c.h.bf16 %v449
    %v503 = vunpack.c.l.bf16 %v450
    %v504 = vunpack.c.h.bf16 %v450
    %v505 = vunpack.c.l.bf16 %v451
    %v506 = vunpack.c.h.bf16 %v451
    %v507 = vunpack.c.l.bf16 %v452
    %v508 = vunpack.c.h.bf16 %v452
    %v509 = vunpack.c.l.bf16 %v453
    %v510 = vunpack.c.h.bf16 %v453
    %v511 = vunpack.c.l.bf16 %v454
    %v512 = vunpack.c.h.bf16 %v454
    %v513 = vunpack.c.l.bf16 %v455
    %v514 = vunpack.c.h.bf16 %v455
    %v515 = vunpack.c.l.bf16 %v456
    %v516 = vunpack.c.h.bf16 %v456
    %v517 = vunpack.c.l.bf16 %v457
    %v518 = vunpack.c.h.bf16 %v457
    %v519 = vunpack.c.l.bf16 %v458
    %v520 = vunpack.c.h.bf16 %v458
    %v521 = vunpack.c.l.bf16 %v459
    %v522 = vunpack.c.h.bf16 %v459
    %v523 = vunpack.c.l.bf16 %v460
    %v524 = vunpack.c.h.bf16 %v460
    %525 = vst [vmem:[#allocation4] sm:$0xff] %v461
    %526 = vst [vmem:[#allocation4 + $0x8] sm:$0xff] %v462
    %527 = vst [vmem:[#allocation4 + $0x10] sm:$0xff] %v463
    %528 = vst [vmem:[#allocation4 + $0x18] sm:$0xff] %v464
    %529 = vst [vmem:[#allocation4 + $0x20] sm:$0xff] %v465
    %530 = vst [vmem:[#allocation4 + $0x28] sm:$0xff] %v466
    %531 = vst [vmem:[#allocation4 + $0x30] sm:$0xff] %v467
    %532 = vst [vmem:[#allocation4 + $0x38] sm:$0xff] %v468
    %533 = vst [vmem:[#allocation4 + $0x40] sm:$0xff] %v469
    %534 = vst [vmem:[#allocation4 + $0x48] sm:$0xff] %v470
    %535 = vst [vmem:[#allocation4 + $0x50] sm:$0xff] %v471
    %536 = vst [vmem:[#allocation4 + $0x58] sm:$0xff] %v472
    %537 = vst [vmem:[#allocation4 + $0x60] sm:$0xff] %v473
    %538 = vst [vmem:[#allocation4 + $0x68] sm:$0xff] %v474
    %539 = vst [vmem:[#allocation4 + $0x70] sm:$0xff] %v475
    %540 = vst [vmem:[#allocation4 + $0x78] sm:$0xff] %v476
    %541 = vst [vmem:[#allocation4 + $0x80] sm:$0xff] %v477
    %542 = vst [vmem:[#allocation4 + $0x88] sm:$0xff] %v478
    %543 = vst [vmem:[#allocation4 + $0x90] sm:$0xff] %v479
    %544 = vst [vmem:[#allocation4 + $0x98] sm:$0xff] %v480
    %545 = vst [vmem:[#allocation4 + $0xa0] sm:$0xff] %v481
    %546 = vst [vmem:[#allocation4 + $0xa8] sm:$0xff] %v482
    %547 = vst [vmem:[#allocation4 + $0xb0] sm:$0xff] %v483
    %548 = vst [vmem:[#allocation4 + $0xb8] sm:$0xff] %v484
    %549 = vst [vmem:[#allocation4 + $0xc0] sm:$0xff] %v485
    %550 = vst [vmem:[#allocation4 + $0xc8] sm:$0xff] %v486
    %551 = vst [vmem:[#allocation4 + $0xd0] sm:$0xff] %v487
    %552 = vst [vmem:[#allocation4 + $0xd8] sm:$0xff] %v488
    %553 = vst [vmem:[#allocation4 + $0xe0] sm:$0xff] %v489
    %554 = vst [vmem:[#allocation4 + $0xe8] sm:$0xff] %v490
    %555 = vst [vmem:[#allocation4 + $0xf0] sm:$0xff] %v491
    %556 = vst [vmem:[#allocation4 + $0xf8] sm:$0xff] %v492
    %557 = vst [vmem:[#allocation4 + $0x100] sm:$0xff] %v493
    %558 = vst [vmem:[#allocation4 + $0x108] sm:$0xff] %v494
    %559 = vst [vmem:[#allocation4 + $0x110] sm:$0xff] %v495
    %560 = vst [vmem:[#allocation4 + $0x118] sm:$0xff] %v496
    %561 = vst [vmem:[#allocation4 + $0x120] sm:$0xff] %v497
    %562 = vst [vmem:[#allocation4 + $0x128] sm:$0xff] %v498
    %563 = vst [vmem:[#allocation4 + $0x130] sm:$0xff] %v499
    %564 = vst [vmem:[#allocation4 + $0x138] sm:$0xff] %v500
    %565 = vst [vmem:[#allocation4 + $0x140] sm:$0xff] %v501
    %566 = vst [vmem:[#allocation4 + $0x148] sm:$0xff] %v502
    %567 = vst [vmem:[#allocation4 + $0x150] sm:$0xff] %v503
    %568 = vst [vmem:[#allocation4 + $0x158] sm:$0xff] %v504
    %569 = vst [vmem:[#allocation4 + $0x160] sm:$0xff] %v505
    %570 = vst [vmem:[#allocation4 + $0x168] sm:$0xff] %v506
    %571 = vst [vmem:[#allocation4 + $0x170] sm:$0xff] %v507
    %572 = vst [vmem:[#allocation4 + $0x178] sm:$0xff] %v508
    %573 = vst [vmem:[#allocation4 + $0x180] sm:$0xff] %v509
    %574 = vst [vmem:[#allocation4 + $0x188] sm:$0xff] %v510
    %575 = vst [vmem:[#allocation4 + $0x190] sm:$0xff] %v511
    %576 = vst [vmem:[#allocation4 + $0x198] sm:$0xff] %v512
    %577 = vst [vmem:[#allocation4 + $0x1a0] sm:$0xff] %v513
    %578 = vst [vmem:[#allocation4 + $0x1a8] sm:$0xff] %v514
    %579 = vst [vmem:[#allocation4 + $0x1b0] sm:$0xff] %v515
    %580 = vst [vmem:[#allocation4 + $0x1b8] sm:$0xff] %v516
    %581 = vst [vmem:[#allocation4 + $0x1c0] sm:$0xff] %v517
    %582 = vst [vmem:[#allocation4 + $0x1c8] sm:$0xff] %v518
    %583 = vst [vmem:[#allocation4 + $0x1d0] sm:$0xff] %v519
    %584 = vst [vmem:[#allocation4 + $0x1d8] sm:$0xff] %v520
    %585 = vst [vmem:[#allocation4 + $0x1e0] sm:$0xff] %v521
    %586 = vst [vmem:[#allocation4 + $0x1e8] sm:$0xff] %v522
    %587 = vst [vmem:[#allocation4 + $0x1f0] sm:$0xff] %v523
    %588 = vst [vmem:[#allocation4 + $0x1f8] sm:$0xff] %v524
    %590 = dma.done [#allocation3], 16
    %592 = dma.done %s96, 16
    %594 = dma.done %s144, 16
    %596 = dma.done %s192, 16
    %598 = dma.done %s240, 16
    %600 = dma.done %s288, 16
    %602 = dma.done %s336, 16
    %604 = dma.done %s384, 16
    %v605 = vld [vmem:[#allocation2] sm:$0xff]
    %v606 = vld [vmem:[%s4] sm:$0xff]
    %v607 = vld [vmem:[%s4 + $0x8] sm:$0xff]
    %v608 = vld [vmem:[%s4 + $0x10] sm:$0xff]
    %v609 = vld [vmem:[%s4 + $0x18] sm:$0xff]
    %v610 = vld [vmem:[%s4 + $0x20] sm:$0xff]
    %v611 = vld [vmem:[%s4 + $0x28] sm:$0xff]
    %v612 = vld [vmem:[%s4 + $0x30] sm:$0xff]
    %v613 = vld [vmem:[%s4 + $0x38] sm:$0xff]
    %v614 = vld [vmem:[%s4 + $0x40] sm:$0xff]
    %v615 = vld [vmem:[%s4 + $0x48] sm:$0xff]
    %v616 = vld [vmem:[%s4 + $0x50] sm:$0xff]
    %v617 = vld [vmem:[%s4 + $0x58] sm:$0xff]
    %v618 = vld [vmem:[%s4 + $0x60] sm:$0xff]
    %v619 = vld [vmem:[%s4 + $0x68] sm:$0xff]
    %v620 = vld [vmem:[%s4 + $0x70] sm:$0xff]
    %v621 = vld [vmem:[%s4 + $0x78] sm:$0xff]
    %v622 = vld [vmem:[%s4 + $0x80] sm:$0xff]
    %v623 = vld [vmem:[%s4 + $0x88] sm:$0xff]
    %v624 = vld [vmem:[%s4 + $0x90] sm:$0xff]
    %v625 = vld [vmem:[%s4 + $0x98] sm:$0xff]
    %v626 = vld [vmem:[%s4 + $0xa0] sm:$0xff]
    %v627 = vld [vmem:[%s4 + $0xa8] sm:$0xff]
    %v628 = vld [vmem:[%s4 + $0xb0] sm:$0xff]
    %v629 = vld [vmem:[%s4 + $0xb8] sm:$0xff]
    %v630 = vld [vmem:[%s4 + $0xc0] sm:$0xff]
    %v631 = vld [vmem:[%s4 + $0xc8] sm:$0xff]
    %v632 = vld [vmem:[%s4 + $0xd0] sm:$0xff]
    %v633 = vld [vmem:[%s4 + $0xd8] sm:$0xff]
    %v634 = vld [vmem:[%s4 + $0xe0] sm:$0xff]
    %v635 = vld [vmem:[%s4 + $0xe8] sm:$0xff]
    %v636 = vld [vmem:[%s4 + $0xf0] sm:$0xff]
    %v637 = vld [vmem:[%s4 + $0xf8] sm:$0xff]
    %v638 = vunpack.c.l.bf16 %v606
    %v639 = vunpack.c.h.bf16 %v606
    %v640 = vunpack.c.l.bf16 %v607
    %v641 = vunpack.c.h.bf16 %v607
    %v642 = vunpack.c.l.bf16 %v608
    %v643 = vunpack.c.h.bf16 %v608
    %v644 = vunpack.c.l.bf16 %v609
    %v645 = vunpack.c.h.bf16 %v609
    %v646 = vunpack.c.l.bf16 %v610
    %v647 = vunpack.c.h.bf16 %v610
    %v648 = vunpack.c.l.bf16 %v611
    %v649 = vunpack.c.h.bf16 %v611
    %v650 = vunpack.c.l.bf16 %v612
    %v651 = vunpack.c.h.bf16 %v612
    %v652 = vunpack.c.l.bf16 %v613
    %v653 = vunpack.c.h.bf16 %v613
    %v654 = vunpack.c.l.bf16 %v614
    %v655 = vunpack.c.h.bf16 %v614
    %v656 = vunpack.c.l.bf16 %v615
    %v657 = vunpack.c.h.bf16 %v615
    %v658 = vunpack.c.l.bf16 %v616
    %v659 = vunpack.c.h.bf16 %v616
    %v660 = vunpack.c.l.bf16 %v617
    %v661 = vunpack.c.h.bf16 %v617
    %v662 = vunpack.c.l.bf16 %v618
    %v663 = vunpack.c.h.bf16 %v618
    %v664 = vunpack.c.l.bf16 %v619
    %v665 = vunpack.c.h.bf16 %v619
    %v666 = vunpack.c.l.bf16 %v620
    %v667 = vunpack.c.h.bf16 %v620
    %v668 = vunpack.c.l.bf16 %v621
    %v669 = vunpack.c.h.bf16 %v621
    %v670 = vunpack.c.l.bf16 %v622
    %v671 = vunpack.c.h.bf16 %v622
    %v672 = vunpack.c.l.bf16 %v623
    %v673 = vunpack.c.h.bf16 %v623
    %v674 = vunpack.c.l.bf16 %v624
    %v675 = vunpack.c.h.bf16 %v624
    %v676 = vunpack.c.l.bf16 %v625
    %v677 = vunpack.c.h.bf16 %v625
    %v678 = vunpack.c.l.bf16 %v626
    %v679 = vunpack.c.h.bf16 %v626
    %v680 = vunpack.c.l.bf16 %v627
    %v681 = vunpack.c.h.bf16 %v627
    %v682 = vunpack.c.l.bf16 %v628
    %v683 = vunpack.c.h.bf16 %v628
    %v684 = vunpack.c.l.bf16 %v629
    %v685 = vunpack.c.h.bf16 %v629
    %v686 = vunpack.c.l.bf16 %v630
    %v687 = vunpack.c.h.bf16 %v630
    %v688 = vunpack.c.l.bf16 %v631
    %v689 = vunpack.c.h.bf16 %v631
    %v690 = vunpack.c.l.bf16 %v632
    %v691 = vunpack.c.h.bf16 %v632
    %v692 = vunpack.c.l.bf16 %v633
    %v693 = vunpack.c.h.bf16 %v633
    %v694 = vunpack.c.l.bf16 %v634
    %v695 = vunpack.c.h.bf16 %v634
    %v696 = vunpack.c.l.bf16 %v635
    %v697 = vunpack.c.h.bf16 %v635
    %v698 = vunpack.c.l.bf16 %v636
    %v699 = vunpack.c.h.bf16 %v636
    %v700 = vunpack.c.l.bf16 %v637
    %v701 = vunpack.c.h.bf16 %v637
    %v702 = vld [vmem:[%s6] sm:$0xf]
    %v704 = vlaneseq
    %v705 = vshrl.u32 %v704, 7
    %v706 = vsub.s32 0, %v705
    %v707 = vrot.slane %v702, %v706
    %v708 = vlaneseq
    %v709 = vshrl.u32 %v708, 7
    %v710 = vsub.s32 1, %v709
    %v711 = vrot.slane %v702, %v710
    %v712 = vlaneseq
    %v713 = vshrl.u32 %v712, 7
    %v714 = vsub.s32 2, %v713
    %v715 = vrot.slane %v702, %v714
    %v716 = vlaneseq
    %v717 = vshrl.u32 %v716, 7
    %v718 = vsub.s32 3, %v717
    %v719 = vrot.slane %v702, %v718
    %724 = vmatprep.subr.mxu0 %v639
    %725 = vmatpush1.msra.mxu0 %v638
    %726 = vmatprep.subr.mxu0 %v643
    %727 = vmatpush1.msra.mxu0 %v642
    %728 = vmatprep.subr.mxu0 %v647
    %729 = vmatpush1.msra.mxu0 %v646
    %730 = vmatprep.subr.mxu0 %v651
    %731 = vmatpush1.msra.mxu0 %v650
    %732 = vmatprep.subr.mxu0 %v655
    %733 = vmatpush1.msra.mxu0 %v654
    %734 = vmatprep.subr.mxu0 %v659
    %735 = vmatpush1.msra.mxu0 %v658
    %736 = vmatprep.subr.mxu0 %v663
    %737 = vmatpush1.msra.mxu0 %v662
    %738 = vmatprep.subr.mxu0 %v667
    %739 = vmatpush1.msra.mxu0 %v666
    %740 = vmatprep.subr.mxu0 %v671
    %741 = vmatpush1.msra.mxu0 %v670
    %742 = vmatprep.subr.mxu0 %v675
    %743 = vmatpush1.msra.mxu0 %v674
    %744 = vmatprep.subr.mxu0 %v679
    %745 = vmatpush1.msra.mxu0 %v678
    %746 = vmatprep.subr.mxu0 %v683
    %747 = vmatpush1.msra.mxu0 %v682
    %748 = vmatprep.subr.mxu0 %v687
    %749 = vmatpush1.msra.mxu0 %v686
    %750 = vmatprep.subr.mxu0 %v691
    %751 = vmatpush1.msra.mxu0 %v690
    %752 = vmatprep.subr.mxu0 %v695
    %753 = vmatpush1.msra.mxu0 %v694
    %754 = vmatprep.subr.mxu0 %v699
    %755 = vmatpush1.msra.mxu0 %v698
    %756 = vmatprep.subr.mxu0 0.0
    %757 = vmatpush1.msra.mxu0 0.0
    %758 = vmatprep.subr.mxu0 0.0
    %759 = vmatpush1.msra.mxu0 0.0
    %760 = vmatprep.subr.mxu0 0.0
    %761 = vmatpush1.msra.mxu0 0.0
    %762 = vmatprep.subr.mxu0 0.0
    %763 = vmatpush1.msra.mxu0 0.0
    %764 = vmatprep.subr.mxu0 0.0
    %765 = vmatpush1.msra.mxu0 0.0
    %766 = vmatprep.subr.mxu0 0.0
    %767 = vmatpush1.msra.mxu0 0.0
    %768 = vmatprep.subr.mxu0 0.0
    %769 = vmatpush1.msra.mxu0 0.0
    %770 = vmatprep.subr.mxu0 0.0
    %771 = vmatpush1.msra.mxu0 0.0
    %772 = vmatprep.subr.mxu0 0.0
    %773 = vmatpush1.msra.mxu0 0.0
    %774 = vmatprep.subr.mxu0 0.0
    %775 = vmatpush1.msra.mxu0 0.0
    %776 = vmatprep.subr.mxu0 0.0
    %777 = vmatpush1.msra.mxu0 0.0
    %778 = vmatprep.subr.mxu0 0.0
    %779 = vmatpush1.msra.mxu0 0.0
    %780 = vmatprep.subr.mxu0 0.0
    %781 = vmatpush1.msra.mxu0 0.0
    %782 = vmatprep.subr.mxu0 0.0
    %783 = vmatpush1.msra.mxu0 0.0
    %784 = vmatprep.subr.mxu0 0.0
    %785 = vmatpush1.msra.mxu0 0.0
    %786 = vmatprep.subr.mxu0 0.0
    %787 = vmatpush1.msra.mxu0 0.0
    %788 = vmatprep.mubr.f32.mxu0 0.0
    %789 = vmatmul.mubr.f32.gmra.mrb[0].mxu0 %v605
    %v790 = vpop.f32.mrb[0].mxu0
    %v791 = vadd.f32 %v707, %v790
    %v792 = vpop.f32.mrb[0].mxu0
    %v793 = vadd.f32 %v711, %v792
    %794 = vdwg.mxu0
    %795 = vmatprep.subr.mxu0 %v641
    %796 = vmatpush1.msra.mxu0 %v640
    %797 = vmatprep.subr.mxu0 %v645
    %798 = vmatpush1.msra.mxu0 %v644
    %799 = vmatprep.subr.mxu0 %v649
    %800 = vmatpush1.msra.mxu0 %v648
    %801 = vmatprep.subr.mxu0 %v653
    %802 = vmatpush1.msra.mxu0 %v652
    %803 = vmatprep.subr.mxu0 %v657
    %804 = vmatpush1.msra.mxu0 %v656
    %805 = vmatprep.subr.mxu0 %v661
    %806 = vmatpush1.msra.mxu0 %v660
    %807 = vmatprep.subr.mxu0 %v665
    %808 = vmatpush1.msra.mxu0 %v664
    %809 = vmatprep.subr.mxu0 %v669
    %810 = vmatpush1.msra.mxu0 %v668
    %811 = vmatprep.subr.mxu0 %v673
    %812 = vmatpush1.msra.mxu0 %v672
    %813 = vmatprep.subr.mxu0 %v677
    %814 = vmatpush1.msra.mxu0 %v676
    %815 = vmatprep.subr.mxu0 %v681
    %816 = vmatpush1.msra.mxu0 %v680
    %817 = vmatprep.subr.mxu0 %v685
    %818 = vmatpush1.msra.mxu0 %v684
    %819 = vmatprep.subr.mxu0 %v689
    %820 = vmatpush1.msra.mxu0 %v688
    %821 = vmatprep.subr.mxu0 %v693
    %822 = vmatpush1.msra.mxu0 %v692
    %823 = vmatprep.subr.mxu0 %v697
    %824 = vmatpush1.msra.mxu0 %v696
    %825 = vmatprep.subr.mxu0 %v701
    %826 = vmatpush1.msra.mxu0 %v700
    %827 = vmatprep.subr.mxu0 0.0
    %828 = vmatpush1.msra.mxu0 0.0
    %829 = vmatprep.subr.mxu0 0.0
    %830 = vmatpush1.msra.mxu0 0.0
    %831 = vmatprep.subr.mxu0 0.0
    %832 = vmatpush1.msra.mxu0 0.0
    %833 = vmatprep.subr.mxu0 0.0
    %834 = vmatpush1.msra.mxu0 0.0
    %835 = vmatprep.subr.mxu0 0.0
    %836 = vmatpush1.msra.mxu0 0.0
    %837 = vmatprep.subr.mxu0 0.0
    %838 = vmatpush1.msra.mxu0 0.0
    %839 = vmatprep.subr.mxu0 0.0
    %840 = vmatpush1.msra.mxu0 0.0
    %841 = vmatprep.subr.mxu0 0.0
    %842 = vmatpush1.msra.mxu0 0.0
    %843 = vmatprep.subr.mxu0 0.0
    %844 = vmatpush1.msra.mxu0 0.0
    %845 = vmatprep.subr.mxu0 0.0
    %846 = vmatpush1.msra.mxu0 0.0
    %847 = vmatprep.subr.mxu0 0.0
    %848 = vmatpush1.msra.mxu0 0.0
    %849 = vmatprep.subr.mxu0 0.0
    %850 = vmatpush1.msra.mxu0 0.0
    %851 = vmatprep.subr.mxu0 0.0
    %852 = vmatpush1.msra.mxu0 0.0
    %853 = vmatprep.subr.mxu0 0.0
    %854 = vmatpush1.msra.mxu0 0.0
    %855 = vmatprep.subr.mxu0 0.0
    %856 = vmatpush1.msra.mxu0 0.0
    %857 = vmatprep.subr.mxu0 0.0
    %858 = vmatpush1.msra.mxu0 0.0
    %859 = vmatprep.mubr.f32.mxu0 0.0
    %860 = vmatmul.mubr.f32.gmra.mrb[0].mxu0 %v605
    %v861 = vpop.f32.mrb[0].mxu0
    %v862 = vadd.f32 %v715, %v861
    %v863 = vpop.f32.mrb[0].mxu0
    %v864 = vadd.f32 %v719, %v863
    %865 = vdwg.mxu0
    %v866 = vld [vmem:[%s2] sm:$0x1]
    %v867 = vld [vmem:[%s3] sm:$0x1]
    %v868 = vld [vmem:[#allocation4] sm:$0xff]
    %v869 = vld [vmem:[#allocation4 + $0x8] sm:$0xff]
    %v870 = vld [vmem:[#allocation4 + $0x10] sm:$0xff]
    %v871 = vld [vmem:[#allocation4 + $0x18] sm:$0xff]
    %v872 = vld [vmem:[#allocation4 + $0x20] sm:$0xff]
    %v873 = vld [vmem:[#allocation4 + $0x28] sm:$0xff]
    %v874 = vld [vmem:[#allocation4 + $0x30] sm:$0xff]
    %v875 = vld [vmem:[#allocation4 + $0x38] sm:$0xff]
    %v876 = vld [vmem:[#allocation4 + $0x40] sm:$0xff]
    %v877 = vld [vmem:[#allocation4 + $0x48] sm:$0xff]
    %v878 = vld [vmem:[#allocation4 + $0x50] sm:$0xff]
    %v879 = vld [vmem:[#allocation4 + $0x58] sm:$0xff]
    %v880 = vld [vmem:[#allocation4 + $0x60] sm:$0xff]
    %v881 = vld [vmem:[#allocation4 + $0x68] sm:$0xff]
    %v882 = vld [vmem:[#allocation4 + $0x70] sm:$0xff]
    %v883 = vld [vmem:[#allocation4 + $0x78] sm:$0xff]
    %v884 = vld [vmem:[#allocation4 + $0x80] sm:$0xff]
    %v885 = vld [vmem:[#allocation4 + $0x88] sm:$0xff]
    %v886 = vld [vmem:[#allocation4 + $0x90] sm:$0xff]
    %v887 = vld [vmem:[#allocation4 + $0x98] sm:$0xff]
    %v888 = vld [vmem:[#allocation4 + $0xa0] sm:$0xff]
    %v889 = vld [vmem:[#allocation4 + $0xa8] sm:$0xff]
    %v890 = vld [vmem:[#allocation4 + $0xb0] sm:$0xff]
    %v891 = vld [vmem:[#allocation4 + $0xb8] sm:$0xff]
    %v892 = vld [vmem:[#allocation4 + $0xc0] sm:$0xff]
    %v893 = vld [vmem:[#allocation4 + $0xc8] sm:$0xff]
    %v894 = vld [vmem:[#allocation4 + $0xd0] sm:$0xff]
    %v895 = vld [vmem:[#allocation4 + $0xd8] sm:$0xff]
    %v896 = vld [vmem:[#allocation4 + $0xe0] sm:$0xff]
    %v897 = vld [vmem:[#allocation4 + $0xe8] sm:$0xff]
    %v898 = vld [vmem:[#allocation4 + $0xf0] sm:$0xff]
    %v899 = vld [vmem:[#allocation4 + $0xf8] sm:$0xff]
    %v900 = vld [vmem:[#allocation4 + $0x100] sm:$0xff]
    %v901 = vld [vmem:[#allocation4 + $0x108] sm:$0xff]
    %v902 = vld [vmem:[#allocation4 + $0x110] sm:$0xff]
    %v903 = vld [vmem:[#allocation4 + $0x118] sm:$0xff]
    %v904 = vld [vmem:[#allocation4 + $0x120] sm:$0xff]
    %v905 = vld [vmem:[#allocation4 + $0x128] sm:$0xff]
    %v906 = vld [vmem:[#allocation4 + $0x130] sm:$0xff]
    %v907 = vld [vmem:[#allocation4 + $0x138] sm:$0xff]
    %v908 = vld [vmem:[#allocation4 + $0x140] sm:$0xff]
    %v909 = vld [vmem:[#allocation4 + $0x148] sm:$0xff]
    %v910 = vld [vmem:[#allocation4 + $0x150] sm:$0xff]
    %v911 = vld [vmem:[#allocation4 + $0x158] sm:$0xff]
    %v912 = vld [vmem:[#allocation4 + $0x160] sm:$0xff]
    %v913 = vld [vmem:[#allocation4 + $0x168] sm:$0xff]
    %v914 = vld [vmem:[#allocation4 + $0x170] sm:$0xff]
    %v915 = vld [vmem:[#allocation4 + $0x178] sm:$0xff]
    %v916 = vld [vmem:[#allocation4 + $0x180] sm:$0xff]
    %v917 = vld [vmem:[#allocation4 + $0x188] sm:$0xff]
    %v918 = vld [vmem:[#allocation4 + $0x190] sm:$0xff]
    %v919 = vld [vmem:[#allocation4 + $0x198] sm:$0xff]
    %v920 = vld [vmem:[#allocation4 + $0x1a0] sm:$0xff]
    %v921 = vld [vmem:[#allocation4 + $0x1a8] sm:$0xff]
    %v922 = vld [vmem:[#allocation4 + $0x1b0] sm:$0xff]
    %v923 = vld [vmem:[#allocation4 + $0x1b8] sm:$0xff]
    %v924 = vld [vmem:[#allocation4 + $0x1c0] sm:$0xff]
    %v925 = vld [vmem:[#allocation4 + $0x1c8] sm:$0xff]
    %v926 = vld [vmem:[#allocation4 + $0x1d0] sm:$0xff]
    %v927 = vld [vmem:[#allocation4 + $0x1d8] sm:$0xff]
    %v928 = vld [vmem:[#allocation4 + $0x1e0] sm:$0xff]
    %v929 = vld [vmem:[#allocation4 + $0x1e8] sm:$0xff]
    %v930 = vld [vmem:[#allocation4 + $0x1f0] sm:$0xff]
    %v931 = vld [vmem:[#allocation4 + $0x1f8] sm:$0xff]
    %932 = vmatprep.subr.mxu0 %v869
    %933 = vmatpush1.msra.mxu0 %v868
    %934 = vmatprep.subr.mxu0 %v873
    %935 = vmatpush1.msra.mxu0 %v872
    %936 = vmatprep.subr.mxu0 %v877
    %937 = vmatpush1.msra.mxu0 %v876
    %938 = vmatprep.subr.mxu0 %v881
    %939 = vmatpush1.msra.mxu0 %v880
    %940 = vmatprep.subr.mxu0 %v885
    %941 = vmatpush1.msra.mxu0 %v884
    %942 = vmatprep.subr.mxu0 %v889
    %943 = vmatpush1.msra.mxu0 %v888
    %944 = vmatprep.subr.mxu0 %v893
    %945 = vmatpush1.msra.mxu0 %v892
    %946 = vmatprep.subr.mxu0 %v897
    %947 = vmatpush1.msra.mxu0 %v896
    %948 = vmatprep.subr.mxu0 %v901
    %949 = vmatpush1.msra.mxu0 %v900
    %950 = vmatprep.subr.mxu0 %v905
    %951 = vmatpush1.msra.mxu0 %v904
    %952 = vmatprep.subr.mxu0 %v909
    %953 = vmatpush1.msra.mxu0 %v908
    %954 = vmatprep.subr.mxu0 %v913
    %955 = vmatpush1.msra.mxu0 %v912
    %956 = vmatprep.subr.mxu0 %v917
    %957 = vmatpush1.msra.mxu0 %v916
    %958 = vmatprep.subr.mxu0 %v921
    %959 = vmatpush1.msra.mxu0 %v920
    %960 = vmatprep.subr.mxu0 %v925
    %961 = vmatpush1.msra.mxu0 %v924
    %962 = vmatprep.subr.mxu0 %v929
    %963 = vmatpush1.msra.mxu0 %v928
    %964 = vmatprep.subr.mxu0 0.0
    %965 = vmatpush1.msra.mxu0 0.0
    %966 = vmatprep.subr.mxu0 0.0
    %967 = vmatpush1.msra.mxu0 0.0
    %968 = vmatprep.subr.mxu0 0.0
    %969 = vmatpush1.msra.mxu0 0.0
    %970 = vmatprep.subr.mxu0 0.0
    %971 = vmatpush1.msra.mxu0 0.0
    %972 = vmatprep.subr.mxu0 0.0
    %973 = vmatpush1.msra.mxu0 0.0
    %974 = vmatprep.subr.mxu0 0.0
    %975 = vmatpush1.msra.mxu0 0.0
    %976 = vmatprep.subr.mxu0 0.0
    %977 = vmatpush1.msra.mxu0 0.0
    %978 = vmatprep.subr.mxu0 0.0
    %979 = vmatpush1.msra.mxu0 0.0
    %980 = vmatprep.subr.mxu0 0.0
    %981 = vmatpush1.msra.mxu0 0.0
    %982 = vmatprep.subr.mxu0 0.0
    %983 = vmatpush1.msra.mxu0 0.0
    %984 = vmatprep.subr.mxu0 0.0
    %985 = vmatpush1.msra.mxu0 0.0
    %986 = vmatprep.subr.mxu0 0.0
    %987 = vmatpush1.msra.mxu0 0.0
    %988 = vmatprep.subr.mxu0 0.0
    %989 = vmatpush1.msra.mxu0 0.0
    %990 = vmatprep.subr.mxu0 0.0
    %991 = vmatpush1.msra.mxu0 0.0
    %992 = vmatprep.subr.mxu0 0.0
    %993 = vmatpush1.msra.mxu0 0.0
    %994 = vmatprep.subr.mxu0 0.0
    %995 = vmatpush1.msra.mxu0 0.0
    %996 = vmatprep.mubr.f32.mxu0 0.0
    %997 = vmatmul.mubr.f32.gmra.mrb[0].mxu0 %v866
    %v998 = vpop.f32.mrb[0].mxu0
    %v999 = vadd.f32 0.0, %v998
    %v1000 = vpop.f32.mrb[0].mxu0
    %v1001 = vadd.f32 0.0, %v1000
    %1002 = vdwg.mxu0
    %1003 = vmatprep.subr.mxu0 %v871
    %1004 = vmatpush1.msra.mxu0 %v870
    %1005 = vmatprep.subr.mxu0 %v875
    %1006 = vmatpush1.msra.mxu0 %v874
    %1007 = vmatprep.subr.mxu0 %v879
    %1008 = vmatpush1.msra.mxu0 %v878
    %1009 = vmatprep.subr.mxu0 %v883
    %1010 = vmatpush1.msra.mxu0 %v882
    %1011 = vmatprep.subr.mxu0 %v887
    %1012 = vmatpush1.msra.mxu0 %v886
    %1013 = vmatprep.subr.mxu0 %v891
    %1014 = vmatpush1.msra.mxu0 %v890
    %1015 = vmatprep.subr.mxu0 %v895
    %1016 = vmatpush1.msra.mxu0 %v894
    %1017 = vmatprep.subr.mxu0 %v899
    %1018 = vmatpush1.msra.mxu0 %v898
    %1019 = vmatprep.subr.mxu0 %v903
    %1020 = vmatpush1.msra.mxu0 %v902
    %1021 = vmatprep.subr.mxu0 %v907
    %1022 = vmatpush1.msra.mxu0 %v906
    %1023 = vmatprep.subr.mxu0 %v911
    %1024 = vmatpush1.msra.mxu0 %v910
    %1025 = vmatprep.subr.mxu0 %v915
    %1026 = vmatpush1.msra.mxu0 %v914
    %1027 = vmatprep.subr.mxu0 %v919
    %1028 = vmatpush1.msra.mxu0 %v918
    %1029 = vmatprep.subr.mxu0 %v923
    %1030 = vmatpush1.msra.mxu0 %v922
    %1031 = vmatprep.subr.mxu0 %v927
    %1032 = vmatpush1.msra.mxu0 %v926
    %1033 = vmatprep.subr.mxu0 %v931
    %1034 = vmatpush1.msra.mxu0 %v930
    %1035 = vmatprep.subr.mxu0 0.0
    %1036 = vmatpush1.msra.mxu0 0.0
    %1037 = vmatprep.subr.mxu0 0.0
    %1038 = vmatpush1.msra.mxu0 0.0
    %1039 = vmatprep.subr.mxu0 0.0
    %1040 = vmatpush1.msra.mxu0 0.0
    %1041 = vmatprep.subr.mxu0 0.0
    %1042 = vmatpush1.msra.mxu0 0.0
    %1043 = vmatprep.subr.mxu0 0.0
    %1044 = vmatpush1.msra.mxu0 0.0
    %1045 = vmatprep.subr.mxu0 0.0
    %1046 = vmatpush1.msra.mxu0 0.0
    %1047 = vmatprep.subr.mxu0 0.0
    %1048 = vmatpush1.msra.mxu0 0.0
    %1049 = vmatprep.subr.mxu0 0.0
    %1050 = vmatpush1.msra.mxu0 0.0
    %1051 = vmatprep.subr.mxu0 0.0
    %1052 = vmatpush1.msra.mxu0 0.0
    %1053 = vmatprep.subr.mxu0 0.0
    %1054 = vmatpush1.msra.mxu0 0.0
    %1055 = vmatprep.subr.mxu0 0.0
    %1056 = vmatpush1.msra.mxu0 0.0
    %1057 = vmatprep.subr.mxu0 0.0
    %1058 = vmatpush1.msra.mxu0 0.0
    %1059 = vmatprep.subr.mxu0 0.0
    %1060 = vmatpush1.msra.mxu0 0.0
    %1061 = vmatprep.subr.mxu0 0.0
    %1062 = vmatpush1.msra.mxu0 0.0
    %1063 = vmatprep.subr.mxu0 0.0
    %1064 = vmatpush1.msra.mxu0 0.0
    %1065 = vmatprep.subr.mxu0 0.0
    %1066 = vmatpush1.msra.mxu0 0.0
    %1067 = vmatprep.mubr.f32.mxu0 0.0
    %1068 = vmatmul.mubr.f32.gmra.mrb[0].mxu0 %v866
    %v1069 = vpop.f32.mrb[0].mxu0
    %v1070 = vadd.f32 0.0, %v1069
    %v1071 = vpop.f32.mrb[0].mxu0
    %v1072 = vadd.f32 0.0, %v1071
    %1073 = vdwg.mxu0
    %v1074 = vadd.f32 %v791, %v999
    %v1075 = vadd.f32 %v793, %v1001
    %v1076 = vadd.f32 %v862, %v1070
    %v1077 = vadd.f32 %v864, %v1072
    %v1078 = vmul.f32 %v1074, 0.5
    %v1079 = vtanh.pop %v1078
    %v1080 = vmul.f32 %v1079, 0.5
    %v1081 = vadd.f32 %v1080, 0.5
    %v1082 = vmul.f32 %v1075, 0.5
    %v1083 = vtanh.pop %v1082
    %v1084 = vmul.f32 %v1083, 0.5
    %v1085 = vadd.f32 %v1084, 0.5
    %v1086 = vtanh.pop %v1076
    %v1087 = vmul.f32 %v1077, 0.5
    %v1088 = vtanh.pop %v1087
    %v1089 = vmul.f32 %v1088, 0.5
    %v1090 = vadd.f32 %v1089, 0.5
    %v1091 = vmul.f32 %v1085, %v867
    %v1092 = vmul.f32 %v1081, %v1086
    %v1093 = vadd.f32 %v1091, %v1092
    %v1094 = vtanh.pop %v1093
    %v1095 = vmul.f32 %v1090, %v1094
    %1096 = vmatprep.subr.mxu0 %v869
    %1097 = vmatpush1.msra.mxu0 %v868
    %1098 = vmatprep.subr.mxu0 %v873
    %1099 = vmatpush1.msra.mxu0 %v872
    %1100 = vmatprep.subr.mxu0 %v877
    %1101 = vmatpush1.msra.mxu0 %v876
    %1102 = vmatprep.subr.mxu0 %v881
    %1103 = vmatpush1.msra.mxu0 %v880
    %1104 = vmatprep.subr.mxu0 %v885
    %1105 = vmatpush1.msra.mxu0 %v884
    %1106 = vmatprep.subr.mxu0 %v889
    %1107 = vmatpush1.msra.mxu0 %v888
    %1108 = vmatprep.subr.mxu0 %v893
    %1109 = vmatpush1.msra.mxu0 %v892
    %1110 = vmatprep.subr.mxu0 %v897
    %1111 = vmatpush1.msra.mxu0 %v896
    %1112 = vmatprep.subr.mxu0 %v901
    %1113 = vmatpush1.msra.mxu0 %v900
    %1114 = vmatprep.subr.mxu0 %v905
    %1115 = vmatpush1.msra.mxu0 %v904
    %1116 = vmatprep.subr.mxu0 %v909
    %1117 = vmatpush1.msra.mxu0 %v908
    %1118 = vmatprep.subr.mxu0 %v913
    %1119 = vmatpush1.msra.mxu0 %v912
    %1120 = vmatprep.subr.mxu0 %v917
    %1121 = vmatpush1.msra.mxu0 %v916
    %1122 = vmatprep.subr.mxu0 %v921
    %1123 = vmatpush1.msra.mxu0 %v920
    %1124 = vmatprep.subr.mxu0 %v925
    %1125 = vmatpush1.msra.mxu0 %v924
    %1126 = vmatprep.subr.mxu0 %v929
    %1127 = vmatpush1.msra.mxu0 %v928
    %1128 = vmatprep.subr.mxu0 0.0
    %1129 = vmatpush1.msra.mxu0 0.0
    %1130 = vmatprep.subr.mxu0 0.0
    %1131 = vmatpush1.msra.mxu0 0.0
    %1132 = vmatprep.subr.mxu0 0.0
    %1133 = vmatpush1.msra.mxu0 0.0
    %1134 = vmatprep.subr.mxu0 0.0
    %1135 = vmatpush1.msra.mxu0 0.0
    %1136 = vmatprep.subr.mxu0 0.0
    %1137 = vmatpush1.msra.mxu0 0.0
    %1138 = vmatprep.subr.mxu0 0.0
    %1139 = vmatpush1.msra.mxu0 0.0
    %1140 = vmatprep.subr.mxu0 0.0
    %1141 = vmatpush1.msra.mxu0 0.0
    %1142 = vmatprep.subr.mxu0 0.0
    %1143 = vmatpush1.msra.mxu0 0.0
    %1144 = vmatprep.subr.mxu0 0.0
    %1145 = vmatpush1.msra.mxu0 0.0
    %1146 = vmatprep.subr.mxu0 0.0
    %1147 = vmatpush1.msra.mxu0 0.0
    %1148 = vmatprep.subr.mxu0 0.0
    %1149 = vmatpush1.msra.mxu0 0.0
    %1150 = vmatprep.subr.mxu0 0.0
    %1151 = vmatpush1.msra.mxu0 0.0
    %1152 = vmatprep.subr.mxu0 0.0
    %1153 = vmatpush1.msra.mxu0 0.0
    %1154 = vmatprep.subr.mxu0 0.0
    %1155 = vmatpush1.msra.mxu0 0.0
    %1156 = vmatprep.subr.mxu0 0.0
    %1157 = vmatpush1.msra.mxu0 0.0
    %1158 = vmatprep.subr.mxu0 0.0
    %1159 = vmatpush1.msra.mxu0 0.0
    %1160 = vmatprep.mubr.f32.mxu0 0.0
    %1161 = vmatmul.mubr.f32.gmra.mrb[0].mxu0 %v1095
    %v1162 = vpop.f32.mrb[0].mxu0
    %v1163 = vadd.f32 0.0, %v1162
    %v1164 = vpop.f32.mrb[0].mxu0
    %v1165 = vadd.f32 0.0, %v1164
    %1166 = vdwg.mxu0
    %1167 = vmatprep.subr.mxu0 %v871
    %1168 = vmatpush1.msra.mxu0 %v870
    %1169 = vmatprep.subr.mxu0 %v875
    %1170 = vmatpush1.msra.mxu0 %v874
    %1171 = vmatprep.subr.mxu0 %v879
    %1172 = vmatpush1.msra.mxu0 %v878
    %1173 = vmatprep.subr.mxu0 %v883
    %1174 = vmatpush1.msra.mxu0 %v882
    %1175 = vmatprep.subr.mxu0 %v887
    %1176 = vmatpush1.msra.mxu0 %v886
    %1177 = vmatprep.subr.mxu0 %v891
    %1178 = vmatpush1.msra.mxu0 %v890
    %1179 = vmatprep.subr.mxu0 %v895
    %1180 = vmatpush1.msra.mxu0 %v894
    %1181 = vmatprep.subr.mxu0 %v899
    %1182 = vmatpush1.msra.mxu0 %v898
    %1183 = vmatprep.subr.mxu0 %v903
    %1184 = vmatpush1.msra.mxu0 %v902
    %1185 = vmatprep.subr.mxu0 %v907
    %1186 = vmatpush1.msra.mxu0 %v906
    %1187 = vmatprep.subr.mxu0 %v911
    %1188 = vmatpush1.msra.mxu0 %v910
    %1189 = vmatprep.subr.mxu0 %v915
    %1190 = vmatpush1.msra.mxu0 %v914
    %1191 = vmatprep.subr.mxu0 %v919
    %1192 = vmatpush1.msra.mxu0 %v918
    %1193 = vmatprep.subr.mxu0 %v923
    %1194 = vmatpush1.msra.mxu0 %v922
    %1195 = vmatprep.subr.mxu0 %v927
    %1196 = vmatpush1.msra.mxu0 %v926
    %1197 = vmatprep.subr.mxu0 %v931
    %1198 = vmatpush1.msra.mxu0 %v930
    %1199 = vmatprep.subr.mxu0 0.0
    %1200 = vmatpush1.msra.mxu0 0.0
    %1201 = vmatprep.subr.mxu0 0.0
    %1202 = vmatpush1.msra.mxu0 0.0
    %1203 = vmatprep.subr.mxu0 0.0
    %1204 = vmatpush1.msra.mxu0 0.0
    %1205 = vmatprep.subr.mxu0 0.0
    %1206 = vmatpush1.msra.mxu0 0.0
    %1207 = vmatprep.subr.mxu0 0.0
    %1208 = vmatpush1.msra.mxu0 0.0
    %1209 = vmatprep.subr.mxu0 0.0
    %1210 = vmatpush1.msra.mxu0 0.0
    %1211 = vmatprep.subr.mxu0 0.0
    %1212 = vmatpush1.msra.mxu0 0.0
    %1213 = vmatprep.subr.mxu0 0.0
    %1214 = vmatpush1.msra.mxu0 0.0
    %1215 = vmatprep.subr.mxu0 0.0
    %1216 = vmatpush1.msra.mxu0 0.0
    %1217 = vmatprep.subr.mxu0 0.0
    %1218 = vmatpush1.msra.mxu0 0.0
    %1219 = vmatprep.subr.mxu0 0.0
    %1220 = vmatpush1.msra.mxu0 0.0
    %1221 = vmatprep.subr.mxu0 0.0
    %1222 = vmatpush1.msra.mxu0 0.0
    %1223 = vmatprep.subr.mxu0 0.0
    %1224 = vmatpush1.msra.mxu0 0.0
    %1225 = vmatprep.subr.mxu0 0.0
    %1226 = vmatpush1.msra.mxu0 0.0
    %1227 = vmatprep.subr.mxu0 0.0
    %1228 = vmatpush1.msra.mxu0 0.0
    %1229 = vmatprep.subr.mxu0 0.0
    %1230 = vmatpush1.msra.mxu0 0.0
    %1231 = vmatprep.mubr.f32.mxu0 0.0
    %1232 = vmatmul.mubr.f32.gmra.mrb[0].mxu0 %v1095
    %v1233 = vpop.f32.mrb[0].mxu0
    %v1234 = vadd.f32 0.0, %v1233
    %v1235 = vpop.f32.mrb[0].mxu0
    %v1236 = vadd.f32 0.0, %v1235
    %1237 = vdwg.mxu0
    %v1242 = vrot.slane %v1163, 7
    %v1243 = vrot.slane %v1165, 7
    %v1244 = vrot.slane %v1234, 7
    %v1245 = vrot.slane %v1236, 7
    %v1250 = vadd.f32 %v791, %v1242
    %v1251 = vadd.f32 %v793, %v1243
    %v1252 = vadd.f32 %v862, %v1244
    %v1253 = vadd.f32 %v864, %v1245
    %v1254 = vmul.f32 %v1250, 0.5
    %v1255 = vtanh.pop %v1254
    %v1256 = vmul.f32 %v1255, 0.5
    %v1257 = vadd.f32 %v1256, 0.5
    %v1258 = vmul.f32 %v1251, 0.5
    %v1259 = vtanh.pop %v1258
    %v1260 = vmul.f32 %v1259, 0.5
    %v1261 = vadd.f32 %v1260, 0.5
    %v1262 = vtanh.pop %v1252
    %v1263 = vmul.f32 %v1253, 0.5
    %v1264 = vtanh.pop %v1263
    %v1265 = vmul.f32 %v1264, 0.5
    %v1266 = vadd.f32 %v1265, 0.5
    %v1268 = vrot.slane %v1093, 7
    %v1270 = vmul.f32 %v1261, %v1268
    %v1271 = vmul.f32 %v1257, %v1262
    %v1272 = vadd.f32 %v1270, %v1271
    %v1273 = vtanh.pop %v1272
    %v1274 = vmul.f32 %v1266, %v1273
    %v1276 = vrot.slane %v1274, 1
    %1278 = vmatprep.subr.mxu0 %v869
    %1279 = vmatpush1.msra.mxu0 %v868
    %1280 = vmatprep.subr.mxu0 %v873
    %1281 = vmatpush1.msra.mxu0 %v872
    %1282 = vmatprep.subr.mxu0 %v877
    %1283 = vmatpush1.msra.mxu0 %v876
    %1284 = vmatprep.subr.mxu0 %v881
    %1285 = vmatpush1.msra.mxu0 %v880
    %1286 = vmatprep.subr.mxu0 %v885
    %1287 = vmatpush1.msra.mxu0 %v884
    %1288 = vmatprep.subr.mxu0 %v889
    %1289 = vmatpush1.msra.mxu0 %v888
    %1290 = vmatprep.subr.mxu0 %v893
    %1291 = vmatpush1.msra.mxu0 %v892
    %1292 = vmatprep.subr.mxu0 %v897
    %1293 = vmatpush1.msra.mxu0 %v896
    %1294 = vmatprep.subr.mxu0 %v901
    %1295 = vmatpush1.msra.mxu0 %v900
    %1296 = vmatprep.subr.mxu0 %v905
    %1297 = vmatpush1.msra.mxu0 %v904
    %1298 = vmatprep.subr.mxu0 %v909
    %1299 = vmatpush1.msra.mxu0 %v908
    %1300 = vmatprep.subr.mxu0 %v913
    %1301 = vmatpush1.msra.mxu0 %v912
    %1302 = vmatprep.subr.mxu0 %v917
    %1303 = vmatpush1.msra.mxu0 %v916
    %1304 = vmatprep.subr.mxu0 %v921
    %1305 = vmatpush1.msra.mxu0 %v920
    %1306 = vmatprep.subr.mxu0 %v925
    %1307 = vmatpush1.msra.mxu0 %v924
    %1308 = vmatprep.subr.mxu0 %v929
    %1309 = vmatpush1.msra.mxu0 %v928
    %1310 = vmatprep.subr.mxu0 0.0
    %1311 = vmatpush1.msra.mxu0 0.0
    %1312 = vmatprep.subr.mxu0 0.0
    %1313 = vmatpush1.msra.mxu0 0.0
    %1314 = vmatprep.subr.mxu0 0.0
    %1315 = vmatpush1.msra.mxu0 0.0
    %1316 = vmatprep.subr.mxu0 0.0
    %1317 = vmatpush1.msra.mxu0 0.0
    %1318 = vmatprep.subr.mxu0 0.0
    %1319 = vmatpush1.msra.mxu0 0.0
    %1320 = vmatprep.subr.mxu0 0.0
    %1321 = vmatpush1.msra.mxu0 0.0
    %1322 = vmatprep.subr.mxu0 0.0
    %1323 = vmatpush1.msra.mxu0 0.0
    %1324 = vmatprep.subr.mxu0 0.0
    %1325 = vmatpush1.msra.mxu0 0.0
    %1326 = vmatprep.subr.mxu0 0.0
    %1327 = vmatpush1.msra.mxu0 0.0
    %1328 = vmatprep.subr.mxu0 0.0
    %1329 = vmatpush1.msra.mxu0 0.0
    %1330 = vmatprep.subr.mxu0 0.0
    %1331 = vmatpush1.msra.mxu0 0.0
    %1332 = vmatprep.subr.mxu0 0.0
    %1333 = vmatpush1.msra.mxu0 0.0
    %1334 = vmatprep.subr.mxu0 0.0
    %1335 = vmatpush1.msra.mxu0 0.0
    %1336 = vmatprep.subr.mxu0 0.0
    %1337 = vmatpush1.msra.mxu0 0.0
    %1338 = vmatprep.subr.mxu0 0.0
    %1339 = vmatpush1.msra.mxu0 0.0
    %1340 = vmatprep.subr.mxu0 0.0
    %1341 = vmatpush1.msra.mxu0 0.0
    %1342 = vmatprep.mubr.f32.mxu0 0.0
    %1343 = vmatmul.mubr.f32.gmra.mrb[0].mxu0 %v1276
    %v1344 = vpop.f32.mrb[0].mxu0
    %v1345 = vadd.f32 0.0, %v1344
    %v1346 = vpop.f32.mrb[0].mxu0
    %v1347 = vadd.f32 0.0, %v1346
    %1348 = vdwg.mxu0
    %1349 = vmatprep.subr.mxu0 %v871
    %1350 = vmatpush1.msra.mxu0 %v870
    %1351 = vmatprep.subr.mxu0 %v875
    %1352 = vmatpush1.msra.mxu0 %v874
    %1353 = vmatprep.subr.mxu0 %v879
    %1354 = vmatpush1.msra.mxu0 %v878
    %1355 = vmatprep.subr.mxu0 %v883
    %1356 = vmatpush1.msra.mxu0 %v882
    %1357 = vmatprep.subr.mxu0 %v887
    %1358 = vmatpush1.msra.mxu0 %v886
    %1359 = vmatprep.subr.mxu0 %v891
    %1360 = vmatpush1.msra.mxu0 %v890
    %1361 = vmatprep.subr.mxu0 %v895
    %1362 = vmatpush1.msra.mxu0 %v894
    %1363 = vmatprep.subr.mxu0 %v899
    %1364 = vmatpush1.msra.mxu0 %v898
    %1365 = vmatprep.subr.mxu0 %v903
    %1366 = vmatpush1.msra.mxu0 %v902
    %1367 = vmatprep.subr.mxu0 %v907
    %1368 = vmatpush1.msra.mxu0 %v906
    %1369 = vmatprep.subr.mxu0 %v911
    %1370 = vmatpush1.msra.mxu0 %v910
    %1371 = vmatprep.subr.mxu0 %v915
    %1372 = vmatpush1.msra.mxu0 %v914
    %1373 = vmatprep.subr.mxu0 %v919
    %1374 = vmatpush1.msra.mxu0 %v918
    %1375 = vmatprep.subr.mxu0 %v923
    %1376 = vmatpush1.msra.mxu0 %v922
    %1377 = vmatprep.subr.mxu0 %v927
    %1378 = vmatpush1.msra.mxu0 %v926
    %1379 = vmatprep.subr.mxu0 %v931
    %1380 = vmatpush1.msra.mxu0 %v930
    %1381 = vmatprep.subr.mxu0 0.0
    %1382 = vmatpush1.msra.mxu0 0.0
    %1383 = vmatprep.subr.mxu0 0.0
    %1384 = vmatpush1.msra.mxu0 0.0
    %1385 = vmatprep.subr.mxu0 0.0
    %1386 = vmatpush1.msra.mxu0 0.0
    %1387 = vmatprep.subr.mxu0 0.0
    %1388 = vmatpush1.msra.mxu0 0.0
    %1389 = vmatprep.subr.mxu0 0.0
    %1390 = vmatpush1.msra.mxu0 0.0
    %1391 = vmatprep.subr.mxu0 0.0
    %1392 = vmatpush1.msra.mxu0 0.0
    %1393 = vmatprep.subr.mxu0 0.0
    %1394 = vmatpush1.msra.mxu0 0.0
    %1395 = vmatprep.subr.mxu0 0.0
    %1396 = vmatpush1.msra.mxu0 0.0
    %1397 = vmatprep.subr.mxu0 0.0
    %1398 = vmatpush1.msra.mxu0 0.0
    %1399 = vmatprep.subr.mxu0 0.0
    %1400 = vmatpush1.msra.mxu0 0.0
    %1401 = vmatprep.subr.mxu0 0.0
    %1402 = vmatpush1.msra.mxu0 0.0
    %1403 = vmatprep.subr.mxu0 0.0
    %1404 = vmatpush1.msra.mxu0 0.0
    %1405 = vmatprep.subr.mxu0 0.0
    %1406 = vmatpush1.msra.mxu0 0.0
    %1407 = vmatprep.subr.mxu0 0.0
    %1408 = vmatpush1.msra.mxu0 0.0
    %1409 = vmatprep.subr.mxu0 0.0
    %1410 = vmatpush1.msra.mxu0 0.0
    %1411 = vmatprep.subr.mxu0 0.0
    %1412 = vmatpush1.msra.mxu0 0.0
    %1413 = vmatprep.mubr.f32.mxu0 0.0
    %1414 = vmatmul.mubr.f32.gmra.mrb[0].mxu0 %v1276
    %v1415 = vpop.f32.mrb[0].mxu0
    %v1416 = vadd.f32 0.0, %v1415
    %v1417 = vpop.f32.mrb[0].mxu0
    %v1418 = vadd.f32 0.0, %v1417
    %1419 = vdwg.mxu0
    %v1424 = vrot.slane %v1345, 6
    %v1425 = vrot.slane %v1347, 6
    %v1426 = vrot.slane %v1416, 6
    %v1427 = vrot.slane %v1418, 6
    %v1432 = vadd.f32 %v791, %v1424
    %v1433 = vadd.f32 %v793, %v1425
    %v1434 = vadd.f32 %v862, %v1426
    %v1435 = vadd.f32 %v864, %v1427
    %v1436 = vmul.f32 %v1432, 0.5
    %v1437 = vtanh.pop %v1436
    %v1438 = vmul.f32 %v1437, 0.5
    %v1439 = vadd.f32 %v1438, 0.5
    %v1440 = vmul.f32 %v1433, 0.5
    %v1441 = vtanh.pop %v1440
    %v1442 = vmul.f32 %v1441, 0.5
    %v1443 = vadd.f32 %v1442, 0.5
    %v1444 = vtanh.pop %v1434
    %v1445 = vmul.f32 %v1435, 0.5
    %v1446 = vtanh.pop %v1445
    %v1447 = vmul.f32 %v1446, 0.5
    %v1448 = vadd.f32 %v1447, 0.5
    %v1450 = vrot.slane %v1272, 7
    %v1452 = vmul.f32 %v1443, %v1450
    %v1453 = vmul.f32 %v1439, %v1444
    %v1454 = vadd.f32 %v1452, %v1453
    %v1455 = vtanh.pop %v1454
    %v1456 = vmul.f32 %v1448, %v1455
    %v1458 = vrot.slane %v1456, 2
    %1460 = vmatprep.subr.mxu0 %v869
    %1461 = vmatpush1.msra.mxu0 %v868
    %1462 = vmatprep.subr.mxu0 %v873
    %1463 = vmatpush1.msra.mxu0 %v872
    %1464 = vmatprep.subr.mxu0 %v877
    %1465 = vmatpush1.msra.mxu0 %v876
    %1466 = vmatprep.subr.mxu0 %v881
    %1467 = vmatpush1.msra.mxu0 %v880
    %1468 = vmatprep.subr.mxu0 %v885
    %1469 = vmatpush1.msra.mxu0 %v884
    %1470 = vmatprep.subr.mxu0 %v889
    %1471 = vmatpush1.msra.mxu0 %v888
    %1472 = vmatprep.subr.mxu0 %v893
    %1473 = vmatpush1.msra.mxu0 %v892
    %1474 = vmatprep.subr.mxu0 %v897
    %1475 = vmatpush1.msra.mxu0 %v896
    %1476 = vmatprep.subr.mxu0 %v901
    %1477 = vmatpush1.msra.mxu0 %v900
    %1478 = vmatprep.subr.mxu0 %v905
    %1479 = vmatpush1.msra.mxu0 %v904
    %1480 = vmatprep.subr.mxu0 %v909
    %1481 = vmatpush1.msra.mxu0 %v908
    %1482 = vmatprep.subr.mxu0 %v913
    %1483 = vmatpush1.msra.mxu0 %v912
    %1484 = vmatprep.subr.mxu0 %v917
    %1485 = vmatpush1.msra.mxu0 %v916
    %1486 = vmatprep.subr.mxu0 %v921
    %1487 = vmatpush1.msra.mxu0 %v920
    %1488 = vmatprep.subr.mxu0 %v925
    %1489 = vmatpush1.msra.mxu0 %v924
    %1490 = vmatprep.subr.mxu0 %v929
    %1491 = vmatpush1.msra.mxu0 %v928
    %1492 = vmatprep.subr.mxu0 0.0
    %1493 = vmatpush1.msra.mxu0 0.0
    %1494 = vmatprep.subr.mxu0 0.0
    %1495 = vmatpush1.msra.mxu0 0.0
    %1496 = vmatprep.subr.mxu0 0.0
    %1497 = vmatpush1.msra.mxu0 0.0
    %1498 = vmatprep.subr.mxu0 0.0
    %1499 = vmatpush1.msra.mxu0 0.0
    %1500 = vmatprep.subr.mxu0 0.0
    %1501 = vmatpush1.msra.mxu0 0.0
    %1502 = vmatprep.subr.mxu0 0.0
    %1503 = vmatpush1.msra.mxu0 0.0
    %1504 = vmatprep.subr.mxu0 0.0
    %1505 = vmatpush1.msra.mxu0 0.0
    %1506 = vmatprep.subr.mxu0 0.0
    %1507 = vmatpush1.msra.mxu0 0.0
    %1508 = vmatprep.subr.mxu0 0.0
    %1509 = vmatpush1.msra.mxu0 0.0
    %1510 = vmatprep.subr.mxu0 0.0
    %1511 = vmatpush1.msra.mxu0 0.0
    %1512 = vmatprep.subr.mxu0 0.0
    %1513 = vmatpush1.msra.mxu0 0.0
    %1514 = vmatprep.subr.mxu0 0.0
    %1515 = vmatpush1.msra.mxu0 0.0
    %1516 = vmatprep.subr.mxu0 0.0
    %1517 = vmatpush1.msra.mxu0 0.0
    %1518 = vmatprep.subr.mxu0 0.0
    %1519 = vmatpush1.msra.mxu0 0.0
    %1520 = vmatprep.subr.mxu0 0.0
    %1521 = vmatpush1.msra.mxu0 0.0
    %1522 = vmatprep.subr.mxu0 0.0
    %1523 = vmatpush1.msra.mxu0 0.0
    %1524 = vmatprep.mubr.f32.mxu0 0.0
    %1525 = vmatmul.mubr.f32.gmra.mrb[0].mxu0 %v1458
    %v1526 = vpop.f32.mrb[0].mxu0
    %v1527 = vadd.f32 0.0, %v1526
    %v1528 = vpop.f32.mrb[0].mxu0
    %v1529 = vadd.f32 0.0, %v1528
    %1530 = vdwg.mxu0
    %1531 = vmatprep.subr.mxu0 %v871
    %1532 = vmatpush1.msra.mxu0 %v870
    %1533 = vmatprep.subr.mxu0 %v875
    %1534 = vmatpush1.msra.mxu0 %v874
    %1535 = vmatprep.subr.mxu0 %v879
    %1536 = vmatpush1.msra.mxu0 %v878
    %1537 = vmatprep.subr.mxu0 %v883
    %1538 = vmatpush1.msra.mxu0 %v882
    %1539 = vmatprep.subr.mxu0 %v887
    %1540 = vmatpush1.msra.mxu0 %v886
    %1541 = vmatprep.subr.mxu0 %v891
    %1542 = vmatpush1.msra.mxu0 %v890
    %1543 = vmatprep.subr.mxu0 %v895
    %1544 = vmatpush1.msra.mxu0 %v894
    %1545 = vmatprep.subr.mxu0 %v899
    %1546 = vmatpush1.msra.mxu0 %v898
    %1547 = vmatprep.subr.mxu0 %v903
    %1548 = vmatpush1.msra.mxu0 %v902
    %1549 = vmatprep.subr.mxu0 %v907
    %1550 = vmatpush1.msra.mxu0 %v906
    %1551 = vmatprep.subr.mxu0 %v911
    %1552 = vmatpush1.msra.mxu0 %v910
    %1553 = vmatprep.subr.mxu0 %v915
    %1554 = vmatpush1.msra.mxu0 %v914
    %1555 = vmatprep.subr.mxu0 %v919
    %1556 = vmatpush1.msra.mxu0 %v918
    %1557 = vmatprep.subr.mxu0 %v923
    %1558 = vmatpush1.msra.mxu0 %v922
    %1559 = vmatprep.subr.mxu0 %v927
    %1560 = vmatpush1.msra.mxu0 %v926
    %1561 = vmatprep.subr.mxu0 %v931
    %1562 = vmatpush1.msra.mxu0 %v930
    %1563 = vmatprep.subr.mxu0 0.0
    %1564 = vmatpush1.msra.mxu0 0.0
    %1565 = vmatprep.subr.mxu0 0.0
    %1566 = vmatpush1.msra.mxu0 0.0
    %1567 = vmatprep.subr.mxu0 0.0
    %1568 = vmatpush1.msra.mxu0 0.0
    %1569 = vmatprep.subr.mxu0 0.0
    %1570 = vmatpush1.msra.mxu0 0.0
    %1571 = vmatprep.subr.mxu0 0.0
    %1572 = vmatpush1.msra.mxu0 0.0
    %1573 = vmatprep.subr.mxu0 0.0
    %1574 = vmatpush1.msra.mxu0 0.0
    %1575 = vmatprep.subr.mxu0 0.0
    %1576 = vmatpush1.msra.mxu0 0.0
    %1577 = vmatprep.subr.mxu0 0.0
    %1578 = vmatpush1.msra.mxu0 0.0
    %1579 = vmatprep.subr.mxu0 0.0
    %1580 = vmatpush1.msra.mxu0 0.0
    %1581 = vmatprep.subr.mxu0 0.0
    %1582 = vmatpush1.msra.mxu0 0.0
    %1583 = vmatprep.subr.mxu0 0.0
    %1584 = vmatpush1.msra.mxu0 0.0
    %1585 = vmatprep.subr.mxu0 0.0
    %1586 = vmatpush1.msra.mxu0 0.0
    %1587 = vmatprep.subr.mxu0 0.0
    %1588 = vmatpush1.msra.mxu0 0.0
    %1589 = vmatprep.subr.mxu0 0.0
    %1590 = vmatpush1.msra.mxu0 0.0
    %1591 = vmatprep.subr.mxu0 0.0
    %1592 = vmatpush1.msra.mxu0 0.0
    %1593 = vmatprep.subr.mxu0 0.0
    %1594 = vmatpush1.msra.mxu0 0.0
    %1595 = vmatprep.mubr.f32.mxu0 0.0
    %1596 = vmatmul.mubr.f32.gmra.mrb[0].mxu0 %v1458
    %v1597 = vpop.f32.mrb[0].mxu0
    %v1598 = vadd.f32 0.0, %v1597
    %v1599 = vpop.f32.mrb[0].mxu0
    %v1600 = vadd.f32 0.0, %v1599
    %1601 = vdwg.mxu0
    %v1606 = vrot.slane %v1527, 5
    %v1607 = vrot.slane %v1529, 5
    %v1608 = vrot.slane %v1598, 5
    %v1609 = vrot.slane %v1600, 5
    %v1614 = vadd.f32 %v791, %v1606
    %v1615 = vadd.f32 %v793, %v1607
    %v1616 = vadd.f32 %v862, %v1608
    %v1617 = vadd.f32 %v864, %v1609
    %v1618 = vmul.f32 %v1614, 0.5
    %v1619 = vtanh.pop %v1618
    %v1620 = vmul.f32 %v1619, 0.5
    %v1621 = vadd.f32 %v1620, 0.5
    %v1622 = vmul.f32 %v1615, 0.5
    %v1623 = vtanh.pop %v1622
    %v1624 = vmul.f32 %v1623, 0.5
    %v1625 = vadd.f32 %v1624, 0.5
    %v1626 = vtanh.pop %v1616
    %v1627 = vmul.f32 %v1617, 0.5
    %v1628 = vtanh.pop %v1627
    %v1629 = vmul.f32 %v1628, 0.5
    %v1630 = vadd.f32 %v1629, 0.5
    %v1632 = vrot.slane %v1454, 7
    %v1634 = vmul.f32 %v1625, %v1632
    %v1635 = vmul.f32 %v1621, %v1626
    %v1636 = vadd.f32 %v1634, %v1635
    %v1637 = vtanh.pop %v1636
    %v1638 = vmul.f32 %v1630, %v1637
    %v1640 = vrot.slane %v1638, 3
    %1642 = vmatprep.subr.mxu0 %v869
    %1643 = vmatpush1.msra.mxu0 %v868
    %1644 = vmatprep.subr.mxu0 %v873
    %1645 = vmatpush1.msra.mxu0 %v872
    %1646 = vmatprep.subr.mxu0 %v877
    %1647 = vmatpush1.msra.mxu0 %v876
    %1648 = vmatprep.subr.mxu0 %v881
    %1649 = vmatpush1.msra.mxu0 %v880
    %1650 = vmatprep.subr.mxu0 %v885
    %1651 = vmatpush1.msra.mxu0 %v884
    %1652 = vmatprep.subr.mxu0 %v889
    %1653 = vmatpush1.msra.mxu0 %v888
    %1654 = vmatprep.subr.mxu0 %v893
    %1655 = vmatpush1.msra.mxu0 %v892
    %1656 = vmatprep.subr.mxu0 %v897
    %1657 = vmatpush1.msra.mxu0 %v896
    %1658 = vmatprep.subr.mxu0 %v901
    %1659 = vmatpush1.msra.mxu0 %v900
    %1660 = vmatprep.subr.mxu0 %v905
    %1661 = vmatpush1.msra.mxu0 %v904
    %1662 = vmatprep.subr.mxu0 %v909
    %1663 = vmatpush1.msra.mxu0 %v908
    %1664 = vmatprep.subr.mxu0 %v913
    %1665 = vmatpush1.msra.mxu0 %v912
    %1666 = vmatprep.subr.mxu0 %v917
    %1667 = vmatpush1.msra.mxu0 %v916
    %1668 = vmatprep.subr.mxu0 %v921
    %1669 = vmatpush1.msra.mxu0 %v920
    %1670 = vmatprep.subr.mxu0 %v925
    %1671 = vmatpush1.msra.mxu0 %v924
    %1672 = vmatprep.subr.mxu0 %v929
    %1673 = vmatpush1.msra.mxu0 %v928
    %1674 = vmatprep.subr.mxu0 0.0
    %1675 = vmatpush1.msra.mxu0 0.0
    %1676 = vmatprep.subr.mxu0 0.0
    %1677 = vmatpush1.msra.mxu0 0.0
    %1678 = vmatprep.subr.mxu0 0.0
    %1679 = vmatpush1.msra.mxu0 0.0
    %1680 = vmatprep.subr.mxu0 0.0
    %1681 = vmatpush1.msra.mxu0 0.0
    %1682 = vmatprep.subr.mxu0 0.0
    %1683 = vmatpush1.msra.mxu0 0.0
    %1684 = vmatprep.subr.mxu0 0.0
    %1685 = vmatpush1.msra.mxu0 0.0
    %1686 = vmatprep.subr.mxu0 0.0
    %1687 = vmatpush1.msra.mxu0 0.0
    %1688 = vmatprep.subr.mxu0 0.0
    %1689 = vmatpush1.msra.mxu0 0.0
    %1690 = vmatprep.subr.mxu0 0.0
    %1691 = vmatpush1.msra.mxu0 0.0
    %1692 = vmatprep.subr.mxu0 0.0
    %1693 = vmatpush1.msra.mxu0 0.0
    %1694 = vmatprep.subr.mxu0 0.0
    %1695 = vmatpush1.msra.mxu0 0.0
    %1696 = vmatprep.subr.mxu0 0.0
    %1697 = vmatpush1.msra.mxu0 0.0
    %1698 = vmatprep.subr.mxu0 0.0
    %1699 = vmatpush1.msra.mxu0 0.0
    %1700 = vmatprep.subr.mxu0 0.0
    %1701 = vmatpush1.msra.mxu0 0.0
    %1702 = vmatprep.subr.mxu0 0.0
    %1703 = vmatpush1.msra.mxu0 0.0
    %1704 = vmatprep.subr.mxu0 0.0
    %1705 = vmatpush1.msra.mxu0 0.0
    %1706 = vmatprep.mubr.f32.mxu0 0.0
    %1707 = vmatmul.mubr.f32.gmra.mrb[0].mxu0 %v1640
    %v1708 = vpop.f32.mrb[0].mxu0
    %v1709 = vadd.f32 0.0, %v1708
    %v1710 = vpop.f32.mrb[0].mxu0
    %v1711 = vadd.f32 0.0, %v1710
    %1712 = vdwg.mxu0
    %1713 = vmatprep.subr.mxu0 %v871
    %1714 = vmatpush1.msra.mxu0 %v870
    %1715 = vmatprep.subr.mxu0 %v875
    %1716 = vmatpush1.msra.mxu0 %v874
    %1717 = vmatprep.subr.mxu0 %v879
    %1718 = vmatpush1.msra.mxu0 %v878
    %1719 = vmatprep.subr.mxu0 %v883
    %1720 = vmatpush1.msra.mxu0 %v882
    %1721 = vmatprep.subr.mxu0 %v887
    %1722 = vmatpush1.msra.mxu0 %v886
    %1723 = vmatprep.subr.mxu0 %v891
    %1724 = vmatpush1.msra.mxu0 %v890
    %1725 = vmatprep.subr.mxu0 %v895
    %1726 = vmatpush1.msra.mxu0 %v894
    %1727 = vmatprep.subr.mxu0 %v899
    %1728 = vmatpush1.msra.mxu0 %v898
    %1729 = vmatprep.subr.mxu0 %v903
    %1730 = vmatpush1.msra.mxu0 %v902
    %1731 = vmatprep.subr.mxu0 %v907
    %1732 = vmatpush1.msra.mxu0 %v906
    %1733 = vmatprep.subr.mxu0 %v911
    %1734 = vmatpush1.msra.mxu0 %v910
    %1735 = vmatprep.subr.mxu0 %v915
    %1736 = vmatpush1.msra.mxu0 %v914
    %1737 = vmatprep.subr.mxu0 %v919
    %1738 = vmatpush1.msra.mxu0 %v918
    %1739 = vmatprep.subr.mxu0 %v923
    %1740 = vmatpush1.msra.mxu0 %v922
    %1741 = vmatprep.subr.mxu0 %v927
    %1742 = vmatpush1.msra.mxu0 %v926
    %1743 = vmatprep.subr.mxu0 %v931
    %1744 = vmatpush1.msra.mxu0 %v930
    %1745 = vmatprep.subr.mxu0 0.0
    %1746 = vmatpush1.msra.mxu0 0.0
    %1747 = vmatprep.subr.mxu0 0.0
    %1748 = vmatpush1.msra.mxu0 0.0
    %1749 = vmatprep.subr.mxu0 0.0
    %1750 = vmatpush1.msra.mxu0 0.0
    %1751 = vmatprep.subr.mxu0 0.0
    %1752 = vmatpush1.msra.mxu0 0.0
    %1753 = vmatprep.subr.mxu0 0.0
    %1754 = vmatpush1.msra.mxu0 0.0
    %1755 = vmatprep.subr.mxu0 0.0
    %1756 = vmatpush1.msra.mxu0 0.0
    %1757 = vmatprep.subr.mxu0 0.0
    %1758 = vmatpush1.msra.mxu0 0.0
    %1759 = vmatprep.subr.mxu0 0.0
    %1760 = vmatpush1.msra.mxu0 0.0
    %1761 = vmatprep.subr.mxu0 0.0
    %1762 = vmatpush1.msra.mxu0 0.0
    %1763 = vmatprep.subr.mxu0 0.0
    %1764 = vmatpush1.msra.mxu0 0.0
    %1765 = vmatprep.subr.mxu0 0.0
    %1766 = vmatpush1.msra.mxu0 0.0
    %1767 = vmatprep.subr.mxu0 0.0
    %1768 = vmatpush1.msra.mxu0 0.0
    %1769 = vmatprep.subr.mxu0 0.0
    %1770 = vmatpush1.msra.mxu0 0.0
    %1771 = vmatprep.subr.mxu0 0.0
    %1772 = vmatpush1.msra.mxu0 0.0
    %1773 = vmatprep.subr.mxu0 0.0
    %1774 = vmatpush1.msra.mxu0 0.0
    %1775 = vmatprep.subr.mxu0 0.0
    %1776 = vmatpush1.msra.mxu0 0.0
    %1777 = vmatprep.mubr.f32.mxu0 0.0
    %1778 = vmatmul.mubr.f32.gmra.mrb[0].mxu0 %v1640
    %v1779 = vpop.f32.mrb[0].mxu0
    %v1780 = vadd.f32 0.0, %v1779
    %v1781 = vpop.f32.mrb[0].mxu0
    %v1782 = vadd.f32 0.0, %v1781
    %1783 = vdwg.mxu0
    %v1788 = vrot.slane %v1709, 4
    %v1789 = vrot.slane %v1711, 4
    %v1790 = vrot.slane %v1780, 4
    %v1791 = vrot.slane %v1782, 4
    %v1796 = vadd.f32 %v791, %v1788
    %v1797 = vadd.f32 %v793, %v1789
    %v1798 = vadd.f32 %v862, %v1790
    %v1799 = vadd.f32 %v864, %v1791
    %v1800 = vmul.f32 %v1796, 0.5
    %v1801 = vtanh.pop %v1800
    %v1802 = vmul.f32 %v1801, 0.5
    %v1803 = vadd.f32 %v1802, 0.5
    %v1804 = vmul.f32 %v1797, 0.5
    %v1805 = vtanh.pop %v1804
    %v1806 = vmul.f32 %v1805, 0.5
    %v1807 = vadd.f32 %v1806, 0.5
    %v1808 = vtanh.pop %v1798
    %v1809 = vmul.f32 %v1799, 0.5
    %v1810 = vtanh.pop %v1809
    %v1811 = vmul.f32 %v1810, 0.5
    %v1812 = vadd.f32 %v1811, 0.5
    %v1814 = vrot.slane %v1636, 7
    %v1816 = vmul.f32 %v1807, %v1814
    %v1817 = vmul.f32 %v1803, %v1808
    %v1818 = vadd.f32 %v1816, %v1817
    %v1819 = vtanh.pop %v1818
    %v1820 = vmul.f32 %v1812, %v1819
    %v1822 = vrot.slane %v1820, 4
    %1824 = vmatprep.subr.mxu0 %v869
    %1825 = vmatpush1.msra.mxu0 %v868
    %1826 = vmatprep.subr.mxu0 %v873
    %1827 = vmatpush1.msra.mxu0 %v872
    %1828 = vmatprep.subr.mxu0 %v877
    %1829 = vmatpush1.msra.mxu0 %v876
    %1830 = vmatprep.subr.mxu0 %v881
    %1831 = vmatpush1.msra.mxu0 %v880
    %1832 = vmatprep.subr.mxu0 %v885
    %1833 = vmatpush1.msra.mxu0 %v884
    %1834 = vmatprep.subr.mxu0 %v889
    %1835 = vmatpush1.msra.mxu0 %v888
    %1836 = vmatprep.subr.mxu0 %v893
    %1837 = vmatpush1.msra.mxu0 %v892
    %1838 = vmatprep.subr.mxu0 %v897
    %1839 = vmatpush1.msra.mxu0 %v896
    %1840 = vmatprep.subr.mxu0 %v901
    %1841 = vmatpush1.msra.mxu0 %v900
    %1842 = vmatprep.subr.mxu0 %v905
    %1843 = vmatpush1.msra.mxu0 %v904
    %1844 = vmatprep.subr.mxu0 %v909
    %1845 = vmatpush1.msra.mxu0 %v908
    %1846 = vmatprep.subr.mxu0 %v913
    %1847 = vmatpush1.msra.mxu0 %v912
    %1848 = vmatprep.subr.mxu0 %v917
    %1849 = vmatpush1.msra.mxu0 %v916
    %1850 = vmatprep.subr.mxu0 %v921
    %1851 = vmatpush1.msra.mxu0 %v920
    %1852 = vmatprep.subr.mxu0 %v925
    %1853 = vmatpush1.msra.mxu0 %v924
    %1854 = vmatprep.subr.mxu0 %v929
    %1855 = vmatpush1.msra.mxu0 %v928
    %1856 = vmatprep.subr.mxu0 0.0
    %1857 = vmatpush1.msra.mxu0 0.0
    %1858 = vmatprep.subr.mxu0 0.0
    %1859 = vmatpush1.msra.mxu0 0.0
    %1860 = vmatprep.subr.mxu0 0.0
    %1861 = vmatpush1.msra.mxu0 0.0
    %1862 = vmatprep.subr.mxu0 0.0
    %1863 = vmatpush1.msra.mxu0 0.0
    %1864 = vmatprep.subr.mxu0 0.0
    %1865 = vmatpush1.msra.mxu0 0.0
    %1866 = vmatprep.subr.mxu0 0.0
    %1867 = vmatpush1.msra.mxu0 0.0
    %1868 = vmatprep.subr.mxu0 0.0
    %1869 = vmatpush1.msra.mxu0 0.0
    %1870 = vmatprep.subr.mxu0 0.0
    %1871 = vmatpush1.msra.mxu0 0.0
    %1872 = vmatprep.subr.mxu0 0.0
    %1873 = vmatpush1.msra.mxu0 0.0
    %1874 = vmatprep.subr.mxu0 0.0
    %1875 = vmatpush1.msra.mxu0 0.0
    %1876 = vmatprep.subr.mxu0 0.0
    %1877 = vmatpush1.msra.mxu0 0.0
    %1878 = vmatprep.subr.mxu0 0.0
    %1879 = vmatpush1.msra.mxu0 0.0
    %1880 = vmatprep.subr.mxu0 0.0
    %1881 = vmatpush1.msra.mxu0 0.0
    %1882 = vmatprep.subr.mxu0 0.0
    %1883 = vmatpush1.msra.mxu0 0.0
    %1884 = vmatprep.subr.mxu0 0.0
    %1885 = vmatpush1.msra.mxu0 0.0
    %1886 = vmatprep.subr.mxu0 0.0
    %1887 = vmatpush1.msra.mxu0 0.0
    %1888 = vmatprep.mubr.f32.mxu0 0.0
    %1889 = vmatmul.mubr.f32.gmra.mrb[0].mxu0 %v1822
    %v1890 = vpop.f32.mrb[0].mxu0
    %v1891 = vadd.f32 0.0, %v1890
    %v1892 = vpop.f32.mrb[0].mxu0
    %v1893 = vadd.f32 0.0, %v1892
    %1894 = vdwg.mxu0
    %1895 = vmatprep.subr.mxu0 %v871
    %1896 = vmatpush1.msra.mxu0 %v870
    %1897 = vmatprep.subr.mxu0 %v875
    %1898 = vmatpush1.msra.mxu0 %v874
    %1899 = vmatprep.subr.mxu0 %v879
    %1900 = vmatpush1.msra.mxu0 %v878
    %1901 = vmatprep.subr.mxu0 %v883
    %1902 = vmatpush1.msra.mxu0 %v882
    %1903 = vmatprep.subr.mxu0 %v887
    %1904 = vmatpush1.msra.mxu0 %v886
    %1905 = vmatprep.subr.mxu0 %v891
    %1906 = vmatpush1.msra.mxu0 %v890
    %1907 = vmatprep.subr.mxu0 %v895
    %1908 = vmatpush1.msra.mxu0 %v894
    %1909 = vmatprep.subr.mxu0 %v899
    %1910 = vmatpush1.msra.mxu0 %v898
    %1911 = vmatprep.subr.mxu0 %v903
    %1912 = vmatpush1.msra.mxu0 %v902
    %1913 = vmatprep.subr.mxu0 %v907
    %1914 = vmatpush1.msra.mxu0 %v906
    %1915 = vmatprep.subr.mxu0 %v911
    %1916 = vmatpush1.msra.mxu0 %v910
    %1917 = vmatprep.subr.mxu0 %v915
    %1918 = vmatpush1.msra.mxu0 %v914
    %1919 = vmatprep.subr.mxu0 %v919
    %1920 = vmatpush1.msra.mxu0 %v918
    %1921 = vmatprep.subr.mxu0 %v923
    %1922 = vmatpush1.msra.mxu0 %v922
    %1923 = vmatprep.subr.mxu0 %v927
    %1924 = vmatpush1.msra.mxu0 %v926
    %1925 = vmatprep.subr.mxu0 %v931
    %1926 = vmatpush1.msra.mxu0 %v930
    %1927 = vmatprep.subr.mxu0 0.0
    %1928 = vmatpush1.msra.mxu0 0.0
    %1929 = vmatprep.subr.mxu0 0.0
    %1930 = vmatpush1.msra.mxu0 0.0
    %1931 = vmatprep.subr.mxu0 0.0
    %1932 = vmatpush1.msra.mxu0 0.0
    %1933 = vmatprep.subr.mxu0 0.0
    %1934 = vmatpush1.msra.mxu0 0.0
    %1935 = vmatprep.subr.mxu0 0.0
    %1936 = vmatpush1.msra.mxu0 0.0
    %1937 = vmatprep.subr.mxu0 0.0
    %1938 = vmatpush1.msra.mxu0 0.0
    %1939 = vmatprep.subr.mxu0 0.0
    %1940 = vmatpush1.msra.mxu0 0.0
    %1941 = vmatprep.subr.mxu0 0.0
    %1942 = vmatpush1.msra.mxu0 0.0
    %1943 = vmatprep.subr.mxu0 0.0
    %1944 = vmatpush1.msra.mxu0 0.0
    %1945 = vmatprep.subr.mxu0 0.0
    %1946 = vmatpush1.msra.mxu0 0.0
    %1947 = vmatprep.subr.mxu0 0.0
    %1948 = vmatpush1.msra.mxu0 0.0
    %1949 = vmatprep.subr.mxu0 0.0
    %1950 = vmatpush1.msra.mxu0 0.0
    %1951 = vmatprep.subr.mxu0 0.0
    %1952 = vmatpush1.msra.mxu0 0.0
    %1953 = vmatprep.subr.mxu0 0.0
    %1954 = vmatpush1.msra.mxu0 0.0
    %1955 = vmatprep.subr.mxu0 0.0
    %1956 = vmatpush1.msra.mxu0 0.0
    %1957 = vmatprep.subr.mxu0 0.0
    %1958 = vmatpush1.msra.mxu0 0.0
    %1959 = vmatprep.mubr.f32.mxu0 0.0
    %1960 = vmatmul.mubr.f32.gmra.mrb[0].mxu0 %v1822
    %v1961 = vpop.f32.mrb[0].mxu0
    %v1962 = vadd.f32 0.0, %v1961
    %v1963 = vpop.f32.mrb[0].mxu0
    %v1964 = vadd.f32 0.0, %v1963
    %1965 = vdwg.mxu0
    %v1970 = vrot.slane %v1891, 3
    %v1971 = vrot.slane %v1893, 3
    %v1972 = vrot.slane %v1962, 3
    %v1973 = vrot.slane %v1964, 3
    %v1978 = vadd.f32 %v791, %v1970
    %v1979 = vadd.f32 %v793, %v1971
    %v1980 = vadd.f32 %v862, %v1972
    %v1981 = vadd.f32 %v864, %v1973
    %v1982 = vmul.f32 %v1978, 0.5
    %v1983 = vtanh.pop %v1982
    %v1984 = vmul.f32 %v1983, 0.5
    %v1985 = vadd.f32 %v1984, 0.5
    %v1986 = vmul.f32 %v1979, 0.5
    %v1987 = vtanh.pop %v1986
    %v1988 = vmul.f32 %v1987, 0.5
    %v1989 = vadd.f32 %v1988, 0.5
    %v1990 = vtanh.pop %v1980
    %v1991 = vmul.f32 %v1981, 0.5
    %v1992 = vtanh.pop %v1991
    %v1993 = vmul.f32 %v1992, 0.5
    %v1994 = vadd.f32 %v1993, 0.5
    %v1996 = vrot.slane %v1818, 7
    %v1998 = vmul.f32 %v1989, %v1996
    %v1999 = vmul.f32 %v1985, %v1990
    %v2000 = vadd.f32 %v1998, %v1999
    %v2001 = vtanh.pop %v2000
    %v2002 = vmul.f32 %v1994, %v2001
    %v2004 = vrot.slane %v2002, 5
    %2006 = vmatprep.subr.mxu0 %v869
    %2007 = vmatpush1.msra.mxu0 %v868
    %2008 = vmatprep.subr.mxu0 %v873
    %2009 = vmatpush1.msra.mxu0 %v872
    %2010 = vmatprep.subr.mxu0 %v877
    %2011 = vmatpush1.msra.mxu0 %v876
    %2012 = vmatprep.subr.mxu0 %v881
    %2013 = vmatpush1.msra.mxu0 %v880
    %2014 = vmatprep.subr.mxu0 %v885
    %2015 = vmatpush1.msra.mxu0 %v884
    %2016 = vmatprep.subr.mxu0 %v889
    %2017 = vmatpush1.msra.mxu0 %v888
    %2018 = vmatprep.subr.mxu0 %v893
    %2019 = vmatpush1.msra.mxu0 %v892
    %2020 = vmatprep.subr.mxu0 %v897
    %2021 = vmatpush1.msra.mxu0 %v896
    %2022 = vmatprep.subr.mxu0 %v901
    %2023 = vmatpush1.msra.mxu0 %v900
    %2024 = vmatprep.subr.mxu0 %v905
    %2025 = vmatpush1.msra.mxu0 %v904
    %2026 = vmatprep.subr.mxu0 %v909
    %2027 = vmatpush1.msra.mxu0 %v908
    %2028 = vmatprep.subr.mxu0 %v913
    %2029 = vmatpush1.msra.mxu0 %v912
    %2030 = vmatprep.subr.mxu0 %v917
    %2031 = vmatpush1.msra.mxu0 %v916
    %2032 = vmatprep.subr.mxu0 %v921
    %2033 = vmatpush1.msra.mxu0 %v920
    %2034 = vmatprep.subr.mxu0 %v925
    %2035 = vmatpush1.msra.mxu0 %v924
    %2036 = vmatprep.subr.mxu0 %v929
    %2037 = vmatpush1.msra.mxu0 %v928
    %2038 = vmatprep.subr.mxu0 0.0
    %2039 = vmatpush1.msra.mxu0 0.0
    %2040 = vmatprep.subr.mxu0 0.0
    %2041 = vmatpush1.msra.mxu0 0.0
    %2042 = vmatprep.subr.mxu0 0.0
    %2043 = vmatpush1.msra.mxu0 0.0
    %2044 = vmatprep.subr.mxu0 0.0
    %2045 = vmatpush1.msra.mxu0 0.0
    %2046 = vmatprep.subr.mxu0 0.0
    %2047 = vmatpush1.msra.mxu0 0.0
    %2048 = vmatprep.subr.mxu0 0.0
    %2049 = vmatpush1.msra.mxu0 0.0
    %2050 = vmatprep.subr.mxu0 0.0
    %2051 = vmatpush1.msra.mxu0 0.0
    %2052 = vmatprep.subr.mxu0 0.0
    %2053 = vmatpush1.msra.mxu0 0.0
    %2054 = vmatprep.subr.mxu0 0.0
    %2055 = vmatpush1.msra.mxu0 0.0
    %2056 = vmatprep.subr.mxu0 0.0
    %2057 = vmatpush1.msra.mxu0 0.0
    %2058 = vmatprep.subr.mxu0 0.0
    %2059 = vmatpush1.msra.mxu0 0.0
    %2060 = vmatprep.subr.mxu0 0.0
    %2061 = vmatpush1.msra.mxu0 0.0
    %2062 = vmatprep.subr.mxu0 0.0
    %2063 = vmatpush1.msra.mxu0 0.0
    %2064 = vmatprep.subr.mxu0 0.0
    %2065 = vmatpush1.msra.mxu0 0.0
    %2066 = vmatprep.subr.mxu0 0.0
    %2067 = vmatpush1.msra.mxu0 0.0
    %2068 = vmatprep.subr.mxu0 0.0
    %2069 = vmatpush1.msra.mxu0 0.0
    %2070 = vmatprep.mubr.f32.mxu0 0.0
    %2071 = vmatmul.mubr.f32.gmra.mrb[0].mxu0 %v2004
    %v2072 = vpop.f32.mrb[0].mxu0
    %v2073 = vadd.f32 0.0, %v2072
    %v2074 = vpop.f32.mrb[0].mxu0
    %v2075 = vadd.f32 0.0, %v2074
    %2076 = vdwg.mxu0
    %2077 = vmatprep.subr.mxu0 %v871
    %2078 = vmatpush1.msra.mxu0 %v870
    %2079 = vmatprep.subr.mxu0 %v875
    %2080 = vmatpush1.msra.mxu0 %v874
    %2081 = vmatprep.subr.mxu0 %v879
    %2082 = vmatpush1.msra.mxu0 %v878
    %2083 = vmatprep.subr.mxu0 %v883
    %2084 = vmatpush1.msra.mxu0 %v882
    %2085 = vmatprep.subr.mxu0 %v887
    %2086 = vmatpush1.msra.mxu0 %v886
    %2087 = vmatprep.subr.mxu0 %v891
    %2088 = vmatpush1.msra.mxu0 %v890
    %2089 = vmatprep.subr.mxu0 %v895
    %2090 = vmatpush1.msra.mxu0 %v894
    %2091 = vmatprep.subr.mxu0 %v899
    %2092 = vmatpush1.msra.mxu0 %v898
    %2093 = vmatprep.subr.mxu0 %v903
    %2094 = vmatpush1.msra.mxu0 %v902
    %2095 = vmatprep.subr.mxu0 %v907
    %2096 = vmatpush1.msra.mxu0 %v906
    %2097 = vmatprep.subr.mxu0 %v911
    %2098 = vmatpush1.msra.mxu0 %v910
    %2099 = vmatprep.subr.mxu0 %v915
    %2100 = vmatpush1.msra.mxu0 %v914
    %2101 = vmatprep.subr.mxu0 %v919
    %2102 = vmatpush1.msra.mxu0 %v918
    %2103 = vmatprep.subr.mxu0 %v923
    %2104 = vmatpush1.msra.mxu0 %v922
    %2105 = vmatprep.subr.mxu0 %v927
    %2106 = vmatpush1.msra.mxu0 %v926
    %2107 = vmatprep.subr.mxu0 %v931
    %2108 = vmatpush1.msra.mxu0 %v930
    %2109 = vmatprep.subr.mxu0 0.0
    %2110 = vmatpush1.msra.mxu0 0.0
    %2111 = vmatprep.subr.mxu0 0.0
    %2112 = vmatpush1.msra.mxu0 0.0
    %2113 = vmatprep.subr.mxu0 0.0
    %2114 = vmatpush1.msra.mxu0 0.0
    %2115 = vmatprep.subr.mxu0 0.0
    %2116 = vmatpush1.msra.mxu0 0.0
    %2117 = vmatprep.subr.mxu0 0.0
    %2118 = vmatpush1.msra.mxu0 0.0
    %2119 = vmatprep.subr.mxu0 0.0
    %2120 = vmatpush1.msra.mxu0 0.0
    %2121 = vmatprep.subr.mxu0 0.0
    %2122 = vmatpush1.msra.mxu0 0.0
    %2123 = vmatprep.subr.mxu0 0.0
    %2124 = vmatpush1.msra.mxu0 0.0
    %2125 = vmatprep.subr.mxu0 0.0
    %2126 = vmatpush1.msra.mxu0 0.0
    %2127 = vmatprep.subr.mxu0 0.0
    %2128 = vmatpush1.msra.mxu0 0.0
    %2129 = vmatprep.subr.mxu0 0.0
    %2130 = vmatpush1.msra.mxu0 0.0
    %2131 = vmatprep.subr.mxu0 0.0
    %2132 = vmatpush1.msra.mxu0 0.0
    %2133 = vmatprep.subr.mxu0 0.0
    %2134 = vmatpush1.msra.mxu0 0.0
    %2135 = vmatprep.subr.mxu0 0.0
    %2136 = vmatpush1.msra.mxu0 0.0
    %2137 = vmatprep.subr.mxu0 0.0
    %2138 = vmatpush1.msra.mxu0 0.0
    %2139 = vmatprep.subr.mxu0 0.0
    %2140 = vmatpush1.msra.mxu0 0.0
    %2141 = vmatprep.mubr.f32.mxu0 0.0
    %2142 = vmatmul.mubr.f32.gmra.mrb[0].mxu0 %v2004
    %v2143 = vpop.f32.mrb[0].mxu0
    %v2144 = vadd.f32 0.0, %v2143
    %v2145 = vpop.f32.mrb[0].mxu0
    %v2146 = vadd.f32 0.0, %v2145
    %2147 = vdwg.mxu0
    %v2152 = vrot.slane %v2073, 2
    %v2153 = vrot.slane %v2075, 2
    %v2154 = vrot.slane %v2144, 2
    %v2155 = vrot.slane %v2146, 2
    %v2160 = vadd.f32 %v791, %v2152
    %v2161 = vadd.f32 %v793, %v2153
    %v2162 = vadd.f32 %v862, %v2154
    %v2163 = vadd.f32 %v864, %v2155
    %v2164 = vmul.f32 %v2160, 0.5
    %v2165 = vtanh.pop %v2164
    %v2166 = vmul.f32 %v2165, 0.5
    %v2167 = vadd.f32 %v2166, 0.5
    %v2168 = vmul.f32 %v2161, 0.5
    %v2169 = vtanh.pop %v2168
    %v2170 = vmul.f32 %v2169, 0.5
    %v2171 = vadd.f32 %v2170, 0.5
    %v2172 = vtanh.pop %v2162
    %v2173 = vmul.f32 %v2163, 0.5
    %v2174 = vtanh.pop %v2173
    %v2175 = vmul.f32 %v2174, 0.5
    %v2176 = vadd.f32 %v2175, 0.5
    %v2178 = vrot.slane %v2000, 7
    %v2180 = vmul.f32 %v2171, %v2178
    %v2181 = vmul.f32 %v2167, %v2172
    %v2182 = vadd.f32 %v2180, %v2181
    %v2183 = vtanh.pop %v2182
    %v2184 = vmul.f32 %v2176, %v2183
    %v2186 = vrot.slane %v2184, 6
    %2188 = vmatprep.subr.mxu0 %v869
    %2189 = vmatpush1.msra.mxu0 %v868
    %2190 = vmatprep.subr.mxu0 %v873
    %2191 = vmatpush1.msra.mxu0 %v872
    %2192 = vmatprep.subr.mxu0 %v877
    %2193 = vmatpush1.msra.mxu0 %v876
    %2194 = vmatprep.subr.mxu0 %v881
    %2195 = vmatpush1.msra.mxu0 %v880
    %2196 = vmatprep.subr.mxu0 %v885
    %2197 = vmatpush1.msra.mxu0 %v884
    %2198 = vmatprep.subr.mxu0 %v889
    %2199 = vmatpush1.msra.mxu0 %v888
    %2200 = vmatprep.subr.mxu0 %v893
    %2201 = vmatpush1.msra.mxu0 %v892
    %2202 = vmatprep.subr.mxu0 %v897
    %2203 = vmatpush1.msra.mxu0 %v896
    %2204 = vmatprep.subr.mxu0 %v901
    %2205 = vmatpush1.msra.mxu0 %v900
    %2206 = vmatprep.subr.mxu0 %v905
    %2207 = vmatpush1.msra.mxu0 %v904
    %2208 = vmatprep.subr.mxu0 %v909
    %2209 = vmatpush1.msra.mxu0 %v908
    %2210 = vmatprep.subr.mxu0 %v913
    %2211 = vmatpush1.msra.mxu0 %v912
    %2212 = vmatprep.subr.mxu0 %v917
    %2213 = vmatpush1.msra.mxu0 %v916
    %2214 = vmatprep.subr.mxu0 %v921
    %2215 = vmatpush1.msra.mxu0 %v920
    %2216 = vmatprep.subr.mxu0 %v925
    %2217 = vmatpush1.msra.mxu0 %v924
    %2218 = vmatprep.subr.mxu0 %v929
    %2219 = vmatpush1.msra.mxu0 %v928
    %2220 = vmatprep.subr.mxu0 0.0
    %2221 = vmatpush1.msra.mxu0 0.0
    %2222 = vmatprep.subr.mxu0 0.0
    %2223 = vmatpush1.msra.mxu0 0.0
    %2224 = vmatprep.subr.mxu0 0.0
    %2225 = vmatpush1.msra.mxu0 0.0
    %2226 = vmatprep.subr.mxu0 0.0
    %2227 = vmatpush1.msra.mxu0 0.0
    %2228 = vmatprep.subr.mxu0 0.0
    %2229 = vmatpush1.msra.mxu0 0.0
    %2230 = vmatprep.subr.mxu0 0.0
    %2231 = vmatpush1.msra.mxu0 0.0
    %2232 = vmatprep.subr.mxu0 0.0
    %2233 = vmatpush1.msra.mxu0 0.0
    %2234 = vmatprep.subr.mxu0 0.0
    %2235 = vmatpush1.msra.mxu0 0.0
    %2236 = vmatprep.subr.mxu0 0.0
    %2237 = vmatpush1.msra.mxu0 0.0
    %2238 = vmatprep.subr.mxu0 0.0
    %2239 = vmatpush1.msra.mxu0 0.0
    %2240 = vmatprep.subr.mxu0 0.0
    %2241 = vmatpush1.msra.mxu0 0.0
    %2242 = vmatprep.subr.mxu0 0.0
    %2243 = vmatpush1.msra.mxu0 0.0
    %2244 = vmatprep.subr.mxu0 0.0
    %2245 = vmatpush1.msra.mxu0 0.0
    %2246 = vmatprep.subr.mxu0 0.0
    %2247 = vmatpush1.msra.mxu0 0.0
    %2248 = vmatprep.subr.mxu0 0.0
    %2249 = vmatpush1.msra.mxu0 0.0
    %2250 = vmatprep.subr.mxu0 0.0
    %2251 = vmatpush1.msra.mxu0 0.0
    %2252 = vmatprep.mubr.f32.mxu0 0.0
    %2253 = vmatmul.mubr.f32.gmra.mrb[0].mxu0 %v2186
    %v2254 = vpop.f32.mrb[0].mxu0
    %v2255 = vadd.f32 0.0, %v2254
    %v2256 = vpop.f32.mrb[0].mxu0
    %v2257 = vadd.f32 0.0, %v2256
    %2258 = vdwg.mxu0
    %2259 = vmatprep.subr.mxu0 %v871
    %2260 = vmatpush1.msra.mxu0 %v870
    %2261 = vmatprep.subr.mxu0 %v875
    %2262 = vmatpush1.msra.mxu0 %v874
    %2263 = vmatprep.subr.mxu0 %v879
    %2264 = vmatpush1.msra.mxu0 %v878
    %2265 = vmatprep.subr.mxu0 %v883
    %2266 = vmatpush1.msra.mxu0 %v882
    %2267 = vmatprep.subr.mxu0 %v887
    %2268 = vmatpush1.msra.mxu0 %v886
    %2269 = vmatprep.subr.mxu0 %v891
    %2270 = vmatpush1.msra.mxu0 %v890
    %2271 = vmatprep.subr.mxu0 %v895
    %2272 = vmatpush1.msra.mxu0 %v894
    %2273 = vmatprep.subr.mxu0 %v899
    %2274 = vmatpush1.msra.mxu0 %v898
    %2275 = vmatprep.subr.mxu0 %v903
    %2276 = vmatpush1.msra.mxu0 %v902
    %2277 = vmatprep.subr.mxu0 %v907
    %2278 = vmatpush1.msra.mxu0 %v906
    %2279 = vmatprep.subr.mxu0 %v911
    %2280 = vmatpush1.msra.mxu0 %v910
    %2281 = vmatprep.subr.mxu0 %v915
    %2282 = vmatpush1.msra.mxu0 %v914
    %2283 = vmatprep.subr.mxu0 %v919
    %2284 = vmatpush1.msra.mxu0 %v918
    %2285 = vmatprep.subr.mxu0 %v923
    %2286 = vmatpush1.msra.mxu0 %v922
    %2287 = vmatprep.subr.mxu0 %v927
    %2288 = vmatpush1.msra.mxu0 %v926
    %2289 = vmatprep.subr.mxu0 %v931
    %2290 = vmatpush1.msra.mxu0 %v930
    %2291 = vmatprep.subr.mxu0 0.0
    %2292 = vmatpush1.msra.mxu0 0.0
    %2293 = vmatprep.subr.mxu0 0.0
    %2294 = vmatpush1.msra.mxu0 0.0
    %2295 = vmatprep.subr.mxu0 0.0
    %2296 = vmatpush1.msra.mxu0 0.0
    %2297 = vmatprep.subr.mxu0 0.0
    %2298 = vmatpush1.msra.mxu0 0.0
    %2299 = vmatprep.subr.mxu0 0.0
    %2300 = vmatpush1.msra.mxu0 0.0
    %2301 = vmatprep.subr.mxu0 0.0
    %2302 = vmatpush1.msra.mxu0 0.0
    %2303 = vmatprep.subr.mxu0 0.0
    %2304 = vmatpush1.msra.mxu0 0.0
    %2305 = vmatprep.subr.mxu0 0.0
    %2306 = vmatpush1.msra.mxu0 0.0
    %2307 = vmatprep.subr.mxu0 0.0
    %2308 = vmatpush1.msra.mxu0 0.0
    %2309 = vmatprep.subr.mxu0 0.0
    %2310 = vmatpush1.msra.mxu0 0.0
    %2311 = vmatprep.subr.mxu0 0.0
    %2312 = vmatpush1.msra.mxu0 0.0
    %2313 = vmatprep.subr.mxu0 0.0
    %2314 = vmatpush1.msra.mxu0 0.0
    %2315 = vmatprep.subr.mxu0 0.0
    %2316 = vmatpush1.msra.mxu0 0.0
    %2317 = vmatprep.subr.mxu0 0.0
    %2318 = vmatpush1.msra.mxu0 0.0
    %2319 = vmatprep.subr.mxu0 0.0
    %2320 = vmatpush1.msra.mxu0 0.0
    %2321 = vmatprep.subr.mxu0 0.0
    %2322 = vmatpush1.msra.mxu0 0.0
    %2323 = vmatprep.mubr.f32.mxu0 0.0
    %2324 = vmatmul.mubr.f32.gmra.mrb[0].mxu0 %v2186
    %v2325 = vpop.f32.mrb[0].mxu0
    %v2326 = vadd.f32 0.0, %v2325
    %v2327 = vpop.f32.mrb[0].mxu0
    %v2328 = vadd.f32 0.0, %v2327
    %2329 = vdwg.mxu0
    %v2334 = vrot.slane %v2255, 1
    %v2335 = vrot.slane %v2257, 1
    %v2336 = vrot.slane %v2326, 1
    %v2337 = vrot.slane %v2328, 1
    %v2342 = vadd.f32 %v791, %v2334
    %v2343 = vadd.f32 %v793, %v2335
    %v2344 = vadd.f32 %v862, %v2336
    %v2345 = vadd.f32 %v864, %v2337
    %v2346 = vmul.f32 %v2342, 0.5
    %v2347 = vtanh.pop %v2346
    %v2348 = vmul.f32 %v2347, 0.5
    %v2349 = vadd.f32 %v2348, 0.5
    %v2350 = vmul.f32 %v2343, 0.5
    %v2351 = vtanh.pop %v2350
    %v2352 = vmul.f32 %v2351, 0.5
    %v2353 = vadd.f32 %v2352, 0.5
    %v2354 = vtanh.pop %v2344
    %v2355 = vmul.f32 %v2345, 0.5
    %v2356 = vtanh.pop %v2355
    %v2357 = vmul.f32 %v2356, 0.5
    %v2358 = vadd.f32 %v2357, 0.5
    %v2360 = vrot.slane %v2182, 7
    %v2362 = vmul.f32 %v2353, %v2360
    %v2363 = vmul.f32 %v2349, %v2354
    %v2364 = vadd.f32 %v2362, %v2363
    %v2365 = vtanh.pop %v2364
    %v2366 = vmul.f32 %v2358, %v2365
    %2367 = vst [vmem:[%s10 - $0x7] sm:$0x80] %v2366
    %2368 = vst [vmem:[%s11 - $0x7] sm:$0x80] %v2364
    %vm2369 = vcmask 1040384
    %v2370 = vsel %vm2369, %v1095, %v1274
    %vm2371 = vcmask 1041408
    %v2372 = vsel %vm2371, %v2370, %v1456
    %vm2373 = vcmask 1042432
    %v2374 = vsel %vm2373, %v2372, %v1638
    %vm2375 = vcmask 1043456
    %v2376 = vsel %vm2375, %v2374, %v1820
    %vm2377 = vcmask 1044480
    %v2378 = vsel %vm2377, %v2376, %v2002
    %vm2379 = vcmask 1045504
    %v2380 = vsel %vm2379, %v2378, %v2184
    %vm2381 = vcmask 1046528
    %v2382 = vsel %vm2381, %v2380, %v2366
    %v2383 = vld [vmem:[%s7] sm:$0xf]
    %v2384 = vld [vmem:[%s7 + $0x4] sm:$0xf]
    %v2385 = vld [vmem:[%s7 + $0x8] sm:$0xf]
    %v2386 = vld [vmem:[%s7 + $0xc] sm:$0xf]
    %v2387 = vld [vmem:[%s7 + $0x10] sm:$0xf]
    %v2388 = vld [vmem:[%s7 + $0x14] sm:$0xf]
    %v2389 = vld [vmem:[%s7 + $0x18] sm:$0xf]
    %v2390 = vld [vmem:[%s7 + $0x1c] sm:$0xf]
    %v2391 = vld [vmem:[%s7 + $0x20] sm:$0xf]
    %v2392 = vld [vmem:[%s7 + $0x24] sm:$0xf]
    %v2393 = vld [vmem:[%s7 + $0x28] sm:$0xf]
    %v2394 = vld [vmem:[%s7 + $0x2c] sm:$0xf]
    %v2395 = vld [vmem:[%s7 + $0x30] sm:$0xf]
    %v2396 = vld [vmem:[%s7 + $0x34] sm:$0xf]
    %v2397 = vld [vmem:[%s7 + $0x38] sm:$0xf]
    %v2398 = vld [vmem:[%s7 + $0x3c] sm:$0xf]
    %v2399 = vunpack.c.l.bf16 %v2383
    %v2400 = vunpack.c.l.bf16 %v2384
    %v2401 = vunpack.c.l.bf16 %v2385
    %v2402 = vunpack.c.l.bf16 %v2386
    %v2403 = vunpack.c.l.bf16 %v2387
    %v2404 = vunpack.c.l.bf16 %v2388
    %v2405 = vunpack.c.l.bf16 %v2389
    %v2406 = vunpack.c.l.bf16 %v2390
    %v2407 = vunpack.c.l.bf16 %v2391
    %v2408 = vunpack.c.l.bf16 %v2392
    %v2409 = vunpack.c.l.bf16 %v2393
    %v2410 = vunpack.c.l.bf16 %v2394
    %v2411 = vunpack.c.l.bf16 %v2395
    %v2412 = vunpack.c.l.bf16 %v2396
    %v2413 = vunpack.c.l.bf16 %v2397
    %v2414 = vunpack.c.l.bf16 %v2398
    %v2415 = vld [vmem:[%s8] sm:$0x1]
    %v2417 = vlaneseq
    %v2418 = vshrl.u32 %v2417, 7
    %v2419 = vsub.s32 0, %v2418
    %v2420 = vrot.slane %v2415, %v2419
    %2422 = vmatprep.subr.mxu0 0.0
    %2423 = vmatpush1.msra.mxu0 %v2399
    %2424 = vmatprep.subr.mxu0 0.0
    %2425 = vmatpush1.msra.mxu0 %v2400
    %2426 = vmatprep.subr.mxu0 0.0
    %2427 = vmatpush1.msra.mxu0 %v2401
    %2428 = vmatprep.subr.mxu0 0.0
    %2429 = vmatpush1.msra.mxu0 %v2402
    %2430 = vmatprep.subr.mxu0 0.0
    %2431 = vmatpush1.msra.mxu0 %v2403
    %2432 = vmatprep.subr.mxu0 0.0
    %2433 = vmatpush1.msra.mxu0 %v2404
    %2434 = vmatprep.subr.mxu0 0.0
    %2435 = vmatpush1.msra.mxu0 %v2405
    %2436 = vmatprep.subr.mxu0 0.0
    %2437 = vmatpush1.msra.mxu0 %v2406
    %2438 = vmatprep.subr.mxu0 0.0
    %2439 = vmatpush1.msra.mxu0 %v2407
    %2440 = vmatprep.subr.mxu0 0.0
    %2441 = vmatpush1.msra.mxu0 %v2408
    %2442 = vmatprep.subr.mxu0 0.0
    %2443 = vmatpush1.msra.mxu0 %v2409
    %2444 = vmatprep.subr.mxu0 0.0
    %2445 = vmatpush1.msra.mxu0 %v2410
    %2446 = vmatprep.subr.mxu0 0.0
    %2447 = vmatpush1.msra.mxu0 %v2411
    %2448 = vmatprep.subr.mxu0 0.0
    %2449 = vmatpush1.msra.mxu0 %v2412
    %2450 = vmatprep.subr.mxu0 0.0
    %2451 = vmatpush1.msra.mxu0 %v2413
    %2452 = vmatprep.subr.mxu0 0.0
    %2453 = vmatpush1.msra.mxu0 %v2414
    %2454 = vmatprep.subr.mxu0 0.0
    %2455 = vmatpush1.msra.mxu0 0.0
    %2456 = vmatprep.subr.mxu0 0.0
    %2457 = vmatpush1.msra.mxu0 0.0
    %2458 = vmatprep.subr.mxu0 0.0
    %2459 = vmatpush1.msra.mxu0 0.0
    %2460 = vmatprep.subr.mxu0 0.0
    %2461 = vmatpush1.msra.mxu0 0.0
    %2462 = vmatprep.subr.mxu0 0.0
    %2463 = vmatpush1.msra.mxu0 0.0
    %2464 = vmatprep.subr.mxu0 0.0
    %2465 = vmatpush1.msra.mxu0 0.0
    %2466 = vmatprep.subr.mxu0 0.0
    %2467 = vmatpush1.msra.mxu0 0.0
    %2468 = vmatprep.subr.mxu0 0.0
    %2469 = vmatpush1.msra.mxu0 0.0
    %2470 = vmatprep.subr.mxu0 0.0
    %2471 = vmatpush1.msra.mxu0 0.0
    %2472 = vmatprep.subr.mxu0 0.0
    %2473 = vmatpush1.msra.mxu0 0.0
    %2474 = vmatprep.subr.mxu0 0.0
    %2475 = vmatpush1.msra.mxu0 0.0
    %2476 = vmatprep.subr.mxu0 0.0
    %2477 = vmatpush1.msra.mxu0 0.0
    %2478 = vmatprep.subr.mxu0 0.0
    %2479 = vmatpush1.msra.mxu0 0.0
    %2480 = vmatprep.subr.mxu0 0.0
    %2481 = vmatpush1.msra.mxu0 0.0
    %2482 = vmatprep.subr.mxu0 0.0
    %2483 = vmatpush1.msra.mxu0 0.0
    %2484 = vmatprep.subr.mxu0 0.0
    %2485 = vmatpush1.msra.mxu0 0.0
    %2486 = vmatprep.mubr.f32.mxu0 0.0
    %2487 = vmatmul.mubr.f32.gmra.mrb[0].mxu0 %v2382
    %v2488 = vpop.f32.mrb[0].mxu0
    %v2489 = vadd.f32 %v2420, %v2488
    %v2490 = vpop.f32.mrb[0].mxu0
    %2491 = vdwg.mxu0
    %2492 = vmax.xlane.f32.xlu0 %v2489
    %v2493 = vpop.xlane.xlu0 %2492
    %v2494 = vsub.f32 %v2489, %v2493
    %v2495 = vmul.f32 %v2494, 1.442695
    %v2496 = vpow.pop %v2495
    %2497 = vadd.xlane.f32.xlu0 %v2496
    %v2498 = vpop.xlane.xlu0 %2497
    %v2499 = vlog2.pop %v2498
    %v2500 = vmul.f32 %v2499, 0.6931472
    %v2501 = vsub.f32 %v2494, %v2500
    %2502 = vst [vmem:[#allocation8] sm:$0xff] %v2501
    // Predicated region
    $region278: #{fwd.1} parent=1 // pred_check
      _
    $region279: #{fwd.1} parent=1 // pred_check_branch
      %2504 = sbr.rel (0) target = $region281
    $region280: #{fwd.1} parent=1 // pred_region
      %s2506 = ssub.s32 128, 128
      %2507 = vsyncadd [#allocation6], %s2506
      %s2509 = sshll.u32 [#allocation8], 4
      %s2510 = int_to_ptr.vmem [resolvable:$true] %s2509
      %2512 = dma.vmem_to_hbm [thread:$0]  %s2510, 128, %s9, [#allocation6]
    $region281: #{fwd.1} parent=1 // pred_fallthru
      _
    // Predicated region
    $region282: #{fwd.1} parent=1 // pred_check
      _
    $region283: #{fwd.1} parent=1 // pred_check_branch
      %2514 = sbr.rel (0) target = $region285
    $region284: #{fwd.1} parent=1 // pred_region
      _
    $region285: #{fwd.1} parent=1 // pred_fallthru
      _
    // Predicated region
    $region286: #{fwd.1} parent=1 // pred_check
      _
    $region287: #{fwd.1} parent=1 // pred_check_branch
      %2516 = sbr.rel (0) target = $region289
    $region288: #{fwd.1} parent=1 // pred_region
      _
    $region289: #{fwd.1} parent=1 // pred_fallthru
      _
    // Predicated region
    $region290: #{fwd.1} parent=1 // pred_check
      _
    $region291: #{fwd.1} parent=1 // pred_check_branch
      %2518 = sbr.rel (0) target = $region293
    $region292: #{fwd.1} parent=1 // pred_region
      %2519 = dma.done [#allocation6], 128
    $region293: #{fwd.1} parent=1 // pred_fallthru
      _
    // Predicated region
    $region294: #{fwd.1} parent=1 // pred_check
      _
    $region295: #{fwd.1} parent=1 // pred_check_branch
      %2521 = sbr.rel (0) target = $region297
    $region296: #{fwd.1} parent=1 // pred_region
      _
    $region297: #{fwd.1} parent=1 // pred_fallthru
      _
    // Predicated region
    $region298: #{fwd.1} parent=1 // pred_check
      _
    $region299: #{fwd.1} parent=1 // pred_check_branch
      %2523 = sbr.rel (0) target = $region301
    $region300: #{fwd.1} parent=1 // pred_region
      _
    $region301: #{fwd.1} parent=1 // pred_fallthru
      _
    %2524 = vsyncpa [#allocation6], 1
    %2525 = vsyncpa [#allocation7], 1
  %2526 = vsyncmov [#allocation3]
  %s2527 = vpop.sfrf %2526
  %p2528 = scmp.eq.s32.totalorder %s2527, 0
  %p2529 = pneg %p2528
  %2531 = shalt.err (%p2529)
  %s2532 = scalar_lea.sflag [#allocation3], 1
  %2533 = vsyncmov %s2532
  %s2534 = vpop.sfrf %2533
  %p2535 = scmp.eq.s32.totalorder %s2534, 0
  %p2536 = pneg %p2535
  %2538 = shalt.err (%p2536)
  %s2539 = scalar_lea.sflag [#allocation3], 2
  %2540 = vsyncmov %s2539
  %s2541 = vpop.sfrf %2540
  %p2542 = scmp.eq.s32.totalorder %s2541, 0
  %p2543 = pneg %p2542
  %2545 = shalt.err (%p2543)
  %s2546 = scalar_lea.sflag [#allocation3], 3
  %2547 = vsyncmov %s2546
  %s2548 = vpop.sfrf %2547
  %p2549 = scmp.eq.s32.totalorder %s2548, 0
  %p2550 = pneg %p2549
  %2552 = shalt.err (%p2550)
  %s2553 = scalar_lea.sflag [#allocation3], 4
  %2554 = vsyncmov %s2553
  %s2555 = vpop.sfrf %2554
  %p2556 = scmp.eq.s32.totalorder %s2555, 0
  %p2557 = pneg %p2556
  %2559 = shalt.err (%p2557)
  %s2560 = scalar_lea.sflag [#allocation3], 5
  %2561 = vsyncmov %s2560
  %s2562 = vpop.sfrf %2561
  %p2563 = scmp.eq.s32.totalorder %s2562, 0
  %p2564 = pneg %p2563
  %2566 = shalt.err (%p2564)
  %s2567 = scalar_lea.sflag [#allocation3], 6
  %2568 = vsyncmov %s2567
  %s2569 = vpop.sfrf %2568
  %p2570 = scmp.eq.s32.totalorder %s2569, 0
  %p2571 = pneg %p2570
  %2573 = shalt.err (%p2571)
  %s2574 = scalar_lea.sflag [#allocation3], 7
  %2575 = vsyncmov %s2574
  %s2576 = vpop.sfrf %2575
  %p2577 = scmp.eq.s32.totalorder %s2576, 0
  %p2578 = pneg %p2577
  %2580 = shalt.err (%p2578)

</llo_original>
